<compile_context>
chip_gen: v6e
topology: v6e:2x2x1
jax: 0.10.0
libtpu: 0.0.40
codegen_flags: <defaults>
</compile_context>

<pallas_src>
import functools

import numpy as np
import jax
import jax.numpy as jnp
from jax.experimental import pallas as pl
from jax.experimental.pallas import tpu as pltpu


_MAX_OFF = 10          # largest tap offset over all depthwise kernels (21 taps -> +/-10)
_SQRT1_2 = 0.7071067811865476

# packed-operand layouts (shared between host wrapper and kernel)
_PW_ORDER = ('p1', 'p2', 'fa', 'c4')                        # 1x1-conv weights
_BIAS_ORDER = ('p1', 'p2', 'fa', 'c4',                      # all (C,1) biases
               'c0', 'c11', 'c12', 'c21', 'c22', 'c31', 'c32')
_DW_LAYOUT = (('c0', 5, 5), ('c11', 1, 7), ('c12', 7, 1),   # depthwise (name, kh, kw)
              ('c21', 1, 11), ('c22', 11, 1), ('c31', 1, 21), ('c32', 21, 1))
_PW_IDX = {n: i for i, n in enumerate(_PW_ORDER)}
_BIAS_IDX = {n: i for i, n in enumerate(_BIAS_ORDER)}
_DW_OFF = {}
_off = 0
for _n, _kh, _kw in _DW_LAYOUT:
    _DW_OFF[_n] = _off
    _off += _kh * _kw
_DW_COLS = _off


# --------------------------------------------------------------------------------------
# in-kernel helpers (pure jnp on traced values; all loops are static Python loops)
# --------------------------------------------------------------------------------------
def _erf(x):
    # Abramowitz & Stegun 7.1.26 (|abs err| <= 1.5e-7), stand-in for exact-erf GELU.
    p_c = 0.3275911
    a1, a2, a3, a4, a5 = 0.254829592, -0.284496736, 1.421413741, -1.453152027, 1.061405429
    sgn = jnp.where(x >= 0.0, 1.0, -1.0)
    ax = jnp.abs(x)
    t = 1.0 / (1.0 + p_c * ax)
    poly = ((((a5 * t + a4) * t + a3) * t + a2) * t + a1) * t
    return sgn * (1.0 - poly * jnp.exp(-ax * ax))


def _gelu(x):
    return 0.5 * x * (1.0 + _erf(x * _SQRT1_2))


def _shifted(x2d, delta, hw):
    # flat spatial shift: out[:, t] = x[:, (t + delta) mod hw].  Entries that wrapped
    # across an image border are zeroed by the boundary masks.  pltpu.roll follows
    # jnp.roll semantics (out[t] = x[(t - shift) mod n]), hence shift = (-delta) mod hw.
    if delta == 0:
        return x2d
    return pltpu.roll(x2d, (-delta) % hw, 1)


def _tap_mask(dh, dw, wm, hm):
    # boundary mask for a (dh, dw) tap: zero where the tap would read across the image
    # border (emulates 'same' zero padding).  wm/hm rows have shape (1, H*W).
    m = None
    if dw != 0:
        m = wm[_MAX_OFF + dw:_MAX_OFF + dw + 1]
    if dh != 0:
        hrow = hm[_MAX_OFF + dh:_MAX_OFF + dh + 1]
        m = hrow if m is None else m * hrow
    return m


def _dw_conv(x2d, w, b, kh, kw, hh, ww, wm, hm):
    # depthwise conv ('same' padding, torch cross-correlation) on the flattened
    # (rows, H*W) layout: per tap one lane-roll (XLU) + mask + fma (VPU).
    hw = hh * ww
    acc = jnp.zeros_like(x2d)
    for i in range(kh):
        dh = i - kh // 2
        for j in range(kw):
            dw = j - kw // 2
            src = _shifted(x2d, dh * ww + dw, hw)
            m = _tap_mask(dh, dw, wm, hm)
            if m is not None:
                src = src * m
            acc = acc + w[:, i * kw + j:i * kw + j + 1] * src
    return acc + b


# --------------------------------------------------------------------------------------
# the kernel: full SpatialAttention forward for one block of `nb` batch elements,
# lane-dense (nb*C, H*W) layout throughout.
# --------------------------------------------------------------------------------------
def _spatial_attention_kernel(
    x_ref,                      # (1, NBC, HW)
    pw_ref,                     # (NBC, 4*NBC)   packed block-diagonal 1x1-conv weights
    b_ref,                      # (NBC, 11)      packed biases
    dww_ref,                    # (NBC, 103)     packed depthwise weights
    pc3_ref,                    # (NBC, 9*NBC)   identity-augmented Partial_conv3 weight
    opa_ref, opb_ref,           # (HW, num_scales*HW) fused freq operators (Re / Im)
    wm_ref, hm_ref,             # (2*_MAX_OFF+1, HW) boundary masks
    out_ref,                    # (1, NBC, HW)
    *, NBC, H, W, num_scales,
):
    HW = H * W

    x2 = x_ref[0]                                              # (NBC, HW), lane-dense
    pw = pw_ref[...]
    b = b_ref[...]
    dww = dww_ref[...]
    wm = wm_ref[...]
    hm = hm_ref[...]

    def bias(name):
        k = _BIAS_IDX[name]
        return b[:, k:k + 1]

    def pwmat(name):
        k = _PW_IDX[name]
        return pw[:, k * NBC:(k + 1) * NBC]

    def dwmat(name, kh, kw):
        o = _DW_OFF[name]
        return dww[:, o:o + kh * kw]

    # ---- SpatialAttention: proj_1 (1x1, MXU) + GELU ----
    xg = _gelu(jnp.dot(pwmat('p1'), x2, preferred_element_type=jnp.float32) + bias('p1'))

    # ---- AttentionModule ----
    u = xg
    attn = _dw_conv(xg, dwmat('c0', 5, 5), bias('c0'), 5, 5, H, W, wm, hm)   # conv0 5x5

    # frequency branch: fused IDFT2 . diag(mask_s) . DFT2 operators (built on host),
    # two lane-dense MXU matmuls + magnitude.  Scale 0 (empty mask) is exactly zero
    # and was dropped from the stacked operators.
    # TODO(synk): torch.fft.fft2/ifft2 have no Pallas primitive; they are realised
    # exactly as precomputed dense DFT operators (fine at H=W=16).
    rr = jnp.dot(xg, opa_ref[...], preferred_element_type=jnp.float32)   # (NBC, S*HW)
    ri = jnp.dot(xg, opb_ref[...], preferred_element_type=jnp.float32)
    mag = jnp.sqrt(rr * rr + ri * ri)
    fm = mag[:, 0:HW]
    for s in range(1, num_scales):
        fm = fm + mag[:, s * HW:(s + 1) * HW]
    fm = fm * (1.0 / float(num_scales))
    fm = jnp.dot(pwmat('fa'), fm, preferred_element_type=jnp.float32) + bias('fa')
    attn = attn * fm

    # ---- Partial_conv3 (split_cat): full-channel im2col + one MXU matmul; untouched
    # channels pass through via identity weights at the centre tap ----
    patches = []
    for i in range(3):
        dh = i - 1
        for j in range(3):
            dw = j - 1
            src = _shifted(attn, dh * W + dw, HW)
            m = _tap_mask(dh, dw, wm, hm)
            patches.append(src if m is None else src * m)
    pt = jnp.concatenate(patches, axis=0)                      # (9*NBC, HW)
    attn0 = jnp.dot(pc3_ref[...], pt, preferred_element_type=jnp.float32)

    # ---- attn1/2/3 first stage: shared horizontal rolled+masked slabs ----
    hslab = {}
    for d in range(-_MAX_OFF, _MAX_OFF + 1):
        s = _shifted(attn, d, HW)
        if d != 0:
            s = s * wm[_MAX_OFF + d:_MAX_OFF + d + 1]
        hslab[d] = s

    def hconv(name, kw):
        w = dwmat(name, 1, kw)
        half = kw // 2
        acc = bias(name)
        for j in range(kw):
            acc = acc + w[:, j:j + 1] * hslab[j - half]
        return acc

    attn1 = _dw_conv(hconv('c11', 7), dwmat('c12', 7, 1), bias('c12'), 7, 1, H, W, wm, hm)
    attn2 = _dw_conv(hconv('c21', 11), dwmat('c22', 11, 1), bias('c22'), 11, 1, H, W, wm, hm)
    attn3 = _dw_conv(hconv('c31', 21), dwmat('c32', 21, 1), bias('c32'), 21, 1, H, W, wm, hm)

    a = attn + attn0 + attn1 + attn2 + attn3
    a = jnp.dot(pwmat('c4'), a, preferred_element_type=jnp.float32) + bias('c4')  # conv4
    a = a * u                                                                     # attn * u

    # ---- proj_2 (1x1) + residual ----
    out = jnp.dot(pwmat('p2'), a, preferred_element_type=jnp.float32) + bias('p2') + x2
    out_ref[0] = out


# --------------------------------------------------------------------------------------
# host-side glue: fused frequency operators, boundary masks, parameter packing, call
# --------------------------------------------------------------------------------------
def _freq_fused_operators(h, w, num_scales):
    # Per-scale building blocks of  IDFT2 . diag(mask_s) . DFT2  in row-vector
    # convention (apply as x_row @ op).  Scale 0 has an empty mask and is dropped.
    hw = h * w
    kh = np.arange(h)
    kw = np.arange(w)
    fh = np.exp(-2j * np.pi * np.outer(kh, kh) / h)
    fw = np.exp(-2j * np.pi * np.outer(kw, kw) / w)
    gh = np.exp(2j * np.pi * np.outer(kh, kh) / h) / h
    gw = np.exp(2j * np.pi * np.outer(kw, kw) / w) / w
    f2 = np.kron(fh, fw)       # forward DFT2, h-major flattened spatial axis
    g2 = np.kron(gh, gw)       # inverse DFT2
    fr, fi = f2.real, f2.imag
    gr, gi = g2.real, g2.imag
    ch, cw = h // 2, w // 2
    p1, p2, p3, p4 = [], [], [], []
    for s in range(1, num_scales + 1):
        m = np.zeros((h, w), np.float64)
        m[ch - s:ch + s, cw - s:cw + s] = 1.0                  # torch's biased 2s x 2s crop
        d = np.fft.ifftshift(m).reshape(hw)[:, None]           # mask in unshifted coords
        dfr = d * fr
        dfi = d * fi
        p1.append((gr @ dfr).T.astype(np.float32))
        p2.append((gi @ dfi).T.astype(np.float32))
        p3.append((gi @ dfr).T.astype(np.float32))
        p4.append((gr @ dfi).T.astype(np.float32))
    return p1, p2, p3, p4


def _boundary_masks(h, w):
    hw = h * w
    wpos = np.tile(np.arange(w), h)
    hpos = np.repeat(np.arange(h), w)
    n = 2 * _MAX_OFF + 1
    wm = np.zeros((n, hw), np.float32)
    hm = np.zeros((n, hw), np.float32)
    for d in range(-_MAX_OFF, _MAX_OFF + 1):
        wm[d + _MAX_OFF] = ((wpos + d >= 0) & (wpos + d < w)).astype(np.float32)
        hm[d + _MAX_OFF] = ((hpos + d >= 0) & (hpos + d < h)).astype(np.float32)
    return wm, hm


def init_params(key, d_model):
    C = d_model
    Cc = C // 4
    keys = iter(jax.random.split(key, 32))

    def nrm(shape, scale=0.1):
        return (scale * jax.random.normal(next(keys), shape)).astype(jnp.float32)

    p = {}
    for name in _PW_ORDER:                                     # proj_1, proj_2, fa, conv4
        p[name + 'w'] = nrm((C, C))
        p[name + 'b'] = nrm((C, 1), 0.05)
    p['pc3w'] = nrm((Cc, Cc, 3, 3))                            # Partial_conv3 (no bias)
    for name, kh, kw in _DW_LAYOUT:                            # depthwise convs
        w = nrm((C, 1, kh, kw))                                # torch depthwise layout
        p[name + 'w'] = w.reshape(C, kh * kw)
        p[name + 'b'] = nrm((C, 1), 0.05)
    p['freq_w_real'] = jax.random.normal(next(keys), ()).astype(jnp.float32)
    p['freq_w_imag'] = jax.random.normal(next(keys), ()).astype(jnp.float32)
    return p


def spatial_attention_forward(x, params, num_scales=4, batch_block=None):
    x = x.astype(jnp.float32)
    N, C, H, W = x.shape
    HW = H * W

    # --- batch folding: pack nb batch elements per grid block so nb*C fills the 8
    # f32 sublanes (and the grid shrinks accordingly); requires N % nb == 0.
    if batch_block is None:
        nb = 1
        for cand in range(min(N, max(1, 8 // max(C, 1))), 0, -1):
            if N % cand == 0:
                nb = cand
                break
    else:
        nb = int(batch_block)
        assert N % nb == 0, "batch_block must divide N"
    NBC = nb * C
    G = N // nb

    # --- pack / fold parameters into the kernel's batched layouts.
    eye_nb = jnp.eye(nb, dtype=jnp.float32)
    pw_all = jnp.concatenate(
        [jnp.kron(eye_nb, params[n + 'w']) for n in _PW_ORDER], axis=1)      # (NBC, 4*NBC)
    b_all = jnp.concatenate(
        [jnp.tile(params[n + 'b'], (nb, 1)) for n in _BIAS_ORDER], axis=1)   # (NBC, 11)
    dww_all = jnp.concatenate(
        [jnp.tile(params[n + 'w'], (nb, 1)) for n, _, _ in _DW_LAYOUT], axis=1)  # (NBC, 103)

    # Partial_conv3: identity-augmented full-channel weight (NBC, 9*NBC).
    w3 = params['pc3w']
    Cc = w3.shape[0]
    w3t = jnp.transpose(w3, (0, 2, 3, 1)).reshape(Cc, 9, Cc)   # (cout, tap, cin)
    pc3_full = jnp.zeros((NBC, 9, NBC), jnp.float32)
    for n in range(nb):
        pc3_full = pc3_full.at[n * C:n * C + Cc, :, n * C:n * C + Cc].set(w3t)
    untouched = jnp.asarray(
        np.array([1.0 if (i % C) >= Cc else 0.0 for i in range(NBC)], np.float32))
    pc3_full = pc3_full.at[:, 4, :].add(jnp.diag(untouched))   # centre-tap identity
    pc3_full = pc3_full.reshape(NBC, 9 * NBC)

    # fused frequency operators, with the learnable real/imag scalings folded in
    # (torch's dwconv_in_freq scales Re and Im independently - no cross terms).
    p1s, p2s, p3s, p4s = _freq_fused_operators(H, W, num_scales)
    wr = params['freq_w_real'].astype(jnp.float32)
    wi = params['freq_w_imag'].astype(jnp.float32)
    op_re = jnp.concatenate([wr * p1s[s] - wi * p2s[s] for s in range(num_scales)], axis=1)
    op_im = jnp.concatenate([wr * p3s[s] + wi * p4s[s] for s in range(num_scales)], axis=1)

    wmask, hmask = _boundary_masks(H, W)
    consts = [pw_all, b_all, dww_all, pc3_full, op_re, op_im,
              jnp.asarray(wmask), jnp.asarray(hmask)]

    def vconst(a):
        shp = tuple(jnp.shape(a))
        nd = len(shp)
        return pl.BlockSpec(shp, lambda i, _nd=nd: (0,) * _nd)

    in_specs = ([pl.BlockSpec((1, NBC, HW), lambda i: (i, 0, 0))]
                + [vconst(a) for a in consts])

    # right-sized VMEM budget (consts double-buffered by the pipeline + headroom for
    # kernel intermediates); keeps well inside v7x's 64 MiB / TC.
    const_bytes = sum(int(np.prod(jnp.shape(a))) * 4 for a in consts)
    block_bytes = NBC * HW * 4
    vmem_limit = int(min(60 << 20, max(16 << 20,
                                       2 * const_bytes + 4 * block_bytes + (12 << 20))))

    kernel = functools.partial(_spatial_attention_kernel,
                               NBC=NBC, H=H, W=W, num_scales=num_scales)

    out = pl.pallas_call(
        kernel,
        grid=(G,),
        in_specs=in_specs,
        out_specs=pl.BlockSpec((1, NBC, HW), lambda i: (i, 0, 0)),
        out_shape=jax.ShapeDtypeStruct((G, NBC, HW), jnp.float32),
        compiler_params=pltpu.CompilerParams(
            dimension_semantics=("parallel",),     # block axis -> megacore / dual-TC
            vmem_limit_bytes=vmem_limit,
        ),
    )(x.reshape(G, NBC, HW), *consts)
    return out.reshape(N, C, H, W)


if __name__ == "__main__":
    key = jax.random.PRNGKey(0)
    k_param, k_x = jax.random.split(key)

    d_model = 4                       # must be a multiple of 4 (Partial_conv3 n_div=4)
    N, H, W = 2, 16, 16

    params = init_params(k_param, d_model)
    x = jax.random.normal(k_x, (N, d_model, H, W), dtype=jnp.float32)

    y = spatial_attention_forward(x, params)
    y = jax.block_until_ready(y)

    assert y.shape == (N, d_model, H, W)
    assert bool(jnp.all(jnp.isfinite(y)))
    print("KERNEL_OK")
</pallas_src>

<mosaic_0001>
module attributes {stable_mosaic.version = 11 : i64} {
  func.func @_spatial_attention_kernel(%arg0: i32, %arg1: memref<1x8x256xf32, #tpu.memory_space<vmem>>, %arg2: memref<8x32xf32, #tpu.memory_space<vmem>>, %arg3: memref<8x11xf32, #tpu.memory_space<vmem>>, %arg4: memref<8x103xf32, #tpu.memory_space<vmem>>, %arg5: memref<8x72xf32, #tpu.memory_space<vmem>>, %arg6: memref<256x1024xf32, #tpu.memory_space<vmem>>, %arg7: memref<256x1024xf32, #tpu.memory_space<vmem>>, %arg8: memref<21x256xf32, #tpu.memory_space<vmem>>, %arg9: memref<21x256xf32, #tpu.memory_space<vmem>>, %arg10: memref<1x8x256xf32, #tpu.memory_space<vmem>>) attributes {dimension_semantics = [#tpu.dimension_semantics<parallel>], iteration_bounds = array<i64: 1>, scalar_prefetch = 0 : i64, scratch_operands = 0 : i64, tpu.core_type = #tpu.core_type<tc>, window_params = [{transform_indices = @transform_0, window_bounds = array<i64: 1, 8, 256>}, {pipeline_mode = #tpu.pipeline_mode<synchronous>, transform_indices = @transform_1, window_bounds = array<i64: 8, 32>}, {pipeline_mode = #tpu.pipeline_mode<synchronous>, transform_indices = @transform_2, window_bounds = array<i64: 8, 11>}, {pipeline_mode = #tpu.pipeline_mode<synchronous>, transform_indices = @transform_3, window_bounds = array<i64: 8, 103>}, {pipeline_mode = #tpu.pipeline_mode<synchronous>, transform_indices = @transform_4, window_bounds = array<i64: 8, 72>}, {pipeline_mode = #tpu.pipeline_mode<synchronous>, transform_indices = @transform_5, window_bounds = array<i64: 256, 1024>}, {pipeline_mode = #tpu.pipeline_mode<synchronous>, transform_indices = @transform_6, window_bounds = array<i64: 256, 1024>}, {pipeline_mode = #tpu.pipeline_mode<synchronous>, transform_indices = @transform_7, window_bounds = array<i64: 21, 256>}, {pipeline_mode = #tpu.pipeline_mode<synchronous>, transform_indices = @transform_8, window_bounds = array<i64: 21, 256>}, {transform_indices = @transform_9, window_bounds = array<i64: 1, 8, 256>}]} {
    %c0 = arith.constant 0 : index
    %c0_0 = arith.constant 0 : index
    %c0_1 = arith.constant 0 : index
    %0 = vector.load %arg1[%c0, %c0_0, %c0_1] : memref<1x8x256xf32, #tpu.memory_space<vmem>>, vector<1x8x256xf32>
    %1 = vector.shape_cast %0 : vector<1x8x256xf32> to vector<8x256xf32>
    %c0_2 = arith.constant 0 : index
    %c0_3 = arith.constant 0 : index
    %2 = vector.load %arg2[%c0_2, %c0_3] : memref<8x32xf32, #tpu.memory_space<vmem>>, vector<8x32xf32>
    %c0_4 = arith.constant 0 : index
    %c0_5 = arith.constant 0 : index
    %3 = vector.load %arg3[%c0_4, %c0_5] : memref<8x11xf32, #tpu.memory_space<vmem>>, vector<8x11xf32>
    %c0_6 = arith.constant 0 : index
    %c0_7 = arith.constant 0 : index
    %4 = vector.load %arg4[%c0_6, %c0_7] : memref<8x103xf32, #tpu.memory_space<vmem>>, vector<8x103xf32>
    %c0_8 = arith.constant 0 : index
    %c0_9 = arith.constant 0 : index
    %5 = vector.load %arg8[%c0_8, %c0_9] : memref<21x256xf32, #tpu.memory_space<vmem>>, vector<21x256xf32>
    %c0_10 = arith.constant 0 : index
    %c0_11 = arith.constant 0 : index
    %6 = vector.load %arg9[%c0_10, %c0_11] : memref<21x256xf32, #tpu.memory_space<vmem>>, vector<21x256xf32>
    %7 = vector.extract_strided_slice %2 {offsets = [0, 0], sizes = [8, 8], strides = [1, 1]} : vector<8x32xf32> to vector<8x8xf32>
    %cst = arith.constant dense<0.000000e+00> : vector<8x256xf32>
    %8 = tpu.matmul %7, %1, %cst {dimension_numbers = #tpu.dot_dimension_numbers<[1], [0], [0], [1], [0, 0, 1, 1], [], []>} : vector<8x8xf32>, vector<8x256xf32>, vector<8x256xf32> -> vector<8x256xf32>
    %9 = vector.extract_strided_slice %3 {offsets = [0, 0], sizes = [8, 1], strides = [1, 1]} : vector<8x11xf32> to vector<8x1xf32>
    %10 = vector.broadcast %9 : vector<8x1xf32> to vector<8x256xf32>
    %11 = arith.addf %8, %10 : vector<8x256xf32>
    %cst_12 = arith.constant 5.000000e-01 : f32
    %12 = vector.broadcast %cst_12 : f32 to vector<8x256xf32>
    %13 = arith.mulf %12, %11 : vector<8x256xf32>
    %cst_13 = arith.constant 0.707106769 : f32
    %14 = vector.broadcast %cst_13 : f32 to vector<8x256xf32>
    %15 = arith.mulf %11, %14 : vector<8x256xf32>
    %cst_14 = arith.constant 0.000000e+00 : f32
    %16 = vector.broadcast %cst_14 : f32 to vector<8x256xf32>
    %17 = arith.cmpf oge, %15, %16 : vector<8x256xf32>
    %cst_15 = arith.constant 1.000000e+00 : f32
    %cst_16 = arith.constant -1.000000e+00 : f32
    %18 = vector.broadcast %cst_15 : f32 to vector<8x256xf32>
    %19 = vector.broadcast %cst_16 : f32 to vector<8x256xf32>
    %20 = arith.select %17, %18, %19 : vector<8x256xi1>, vector<8x256xf32>
    %21 = math.absf %15 : vector<8x256xf32>
    %cst_17 = arith.constant 0.327591091 : f32
    %22 = vector.broadcast %cst_17 : f32 to vector<8x256xf32>
    %23 = arith.mulf %22, %21 : vector<8x256xf32>
    %cst_18 = arith.constant 1.000000e+00 : f32
    %24 = vector.broadcast %cst_18 : f32 to vector<8x256xf32>
    %25 = arith.addf %24, %23 : vector<8x256xf32>
    %cst_19 = arith.constant 1.000000e+00 : f32
    %26 = vector.broadcast %cst_19 : f32 to vector<8x256xf32>
    %27 = arith.divf %26, %25 : vector<8x256xf32>
    %cst_20 = arith.constant 1.06140542 : f32
    %28 = vector.broadcast %cst_20 : f32 to vector<8x256xf32>
    %29 = arith.mulf %28, %27 : vector<8x256xf32>
    %cst_21 = arith.constant -1.45315206 : f32
    %30 = vector.broadcast %cst_21 : f32 to vector<8x256xf32>
    %31 = arith.addf %29, %30 : vector<8x256xf32>
    %32 = arith.mulf %31, %27 : vector<8x256xf32>
    %cst_22 = arith.constant 1.42141378 : f32
    %33 = vector.broadcast %cst_22 : f32 to vector<8x256xf32>
    %34 = arith.addf %32, %33 : vector<8x256xf32>
    %35 = arith.mulf %34, %27 : vector<8x256xf32>
    %cst_23 = arith.constant -0.284496725 : f32
    %36 = vector.broadcast %cst_23 : f32 to vector<8x256xf32>
    %37 = arith.addf %35, %36 : vector<8x256xf32>
    %38 = arith.mulf %37, %27 : vector<8x256xf32>
    %cst_24 = arith.constant 0.254829586 : f32
    %39 = vector.broadcast %cst_24 : f32 to vector<8x256xf32>
    %40 = arith.addf %38, %39 : vector<8x256xf32>
    %41 = arith.mulf %40, %27 : vector<8x256xf32>
    %cst_25 = arith.constant 0.000000e+00 : f32
    %42 = vector.broadcast %cst_25 : f32 to vector<8x256xf32>
    %43 = arith.subf %42, %21 : vector<8x256xf32>
    %44 = arith.mulf %43, %21 : vector<8x256xf32>
    %45 = math.exp %44 : vector<8x256xf32>
    %46 = arith.mulf %41, %45 : vector<8x256xf32>
    %cst_26 = arith.constant 1.000000e+00 : f32
    %47 = vector.broadcast %cst_26 : f32 to vector<8x256xf32>
    %48 = arith.subf %47, %46 : vector<8x256xf32>
    %49 = arith.mulf %20, %48 : vector<8x256xf32>
    %cst_27 = arith.constant 1.000000e+00 : f32
    %50 = vector.broadcast %cst_27 : f32 to vector<8x256xf32>
    %51 = arith.addf %50, %49 : vector<8x256xf32>
    %52 = arith.mulf %13, %51 : vector<8x256xf32>
    %53 = vector.extract_strided_slice %4 {offsets = [0, 0], sizes = [8, 25], strides = [1, 1]} : vector<8x103xf32> to vector<8x25xf32>
    %54 = vector.extract_strided_slice %3 {offsets = [0, 4], sizes = [8, 1], strides = [1, 1]} : vector<8x11xf32> to vector<8x1xf32>
    %cst_28 = arith.constant 0.000000e+00 : f32
    %55 = vector.broadcast %cst_28 : f32 to vector<8x256xf32>
    %c34_i32 = arith.constant 34 : i32
    %56 = tpu.dynamic_rotate %52 by %c34_i32 dim 1 : vector<8x256xf32>, i32 -> vector<8x256xf32>
    %57 = vector.extract_strided_slice %5 {offsets = [8, 0], sizes = [1, 256], strides = [1, 1]} : vector<21x256xf32> to vector<1x256xf32>
    %58 = vector.extract_strided_slice %6 {offsets = [8, 0], sizes = [1, 256], strides = [1, 1]} : vector<21x256xf32> to vector<1x256xf32>
    %59 = arith.mulf %57, %58 : vector<1x256xf32>
    %60 = vector.broadcast %59 : vector<1x256xf32> to vector<8x256xf32>
    %61 = arith.mulf %56, %60 : vector<8x256xf32>
    %62 = vector.extract_strided_slice %53 {offsets = [0, 0], sizes = [8, 1], strides = [1, 1]} : vector<8x25xf32> to vector<8x1xf32>
    %63 = vector.broadcast %62 : vector<8x1xf32> to vector<8x256xf32>
    %64 = arith.mulf %63, %61 : vector<8x256xf32>
    %65 = arith.addf %55, %64 : vector<8x256xf32>
    %c33_i32 = arith.constant 33 : i32
    %66 = tpu.dynamic_rotate %52 by %c33_i32 dim 1 : vector<8x256xf32>, i32 -> vector<8x256xf32>
    %67 = vector.extract_strided_slice %5 {offsets = [9, 0], sizes = [1, 256], strides = [1, 1]} : vector<21x256xf32> to vector<1x256xf32>
    %68 = vector.extract_strided_slice %6 {offsets = [8, 0], sizes = [1, 256], strides = [1, 1]} : vector<21x256xf32> to vector<1x256xf32>
    %69 = arith.mulf %67, %68 : vector<1x256xf32>
    %70 = vector.broadcast %69 : vector<1x256xf32> to vector<8x256xf32>
    %71 = arith.mulf %66, %70 : vector<8x256xf32>
    %72 = vector.extract_strided_slice %53 {offsets = [0, 1], sizes = [8, 1], strides = [1, 1]} : vector<8x25xf32> to vector<8x1xf32>
    %73 = vector.broadcast %72 : vector<8x1xf32> to vector<8x256xf32>
    %74 = arith.mulf %73, %71 : vector<8x256xf32>
    %75 = arith.addf %65, %74 : vector<8x256xf32>
    %c32_i32 = arith.constant 32 : i32
    %76 = tpu.dynamic_rotate %52 by %c32_i32 dim 1 : vector<8x256xf32>, i32 -> vector<8x256xf32>
    %77 = vector.extract_strided_slice %6 {offsets = [8, 0], sizes = [1, 256], strides = [1, 1]} : vector<21x256xf32> to vector<1x256xf32>
    %78 = vector.broadcast %77 : vector<1x256xf32> to vector<8x256xf32>
    %79 = arith.mulf %76, %78 : vector<8x256xf32>
    %80 = vector.extract_strided_slice %53 {offsets = [0, 2], sizes = [8, 1], strides = [1, 1]} : vector<8x25xf32> to vector<8x1xf32>
    %81 = vector.broadcast %80 : vector<8x1xf32> to vector<8x256xf32>
    %82 = arith.mulf %81, %79 : vector<8x256xf32>
    %83 = arith.addf %75, %82 : vector<8x256xf32>
    %c31_i32 = arith.constant 31 : i32
    %84 = tpu.dynamic_rotate %52 by %c31_i32 dim 1 : vector<8x256xf32>, i32 -> vector<8x256xf32>
    %85 = vector.extract_strided_slice %5 {offsets = [11, 0], sizes = [1, 256], strides = [1, 1]} : vector<21x256xf32> to vector<1x256xf32>
    %86 = vector.extract_strided_slice %6 {offsets = [8, 0], sizes = [1, 256], strides = [1, 1]} : vector<21x256xf32> to vector<1x256xf32>
    %87 = arith.mulf %85, %86 : vector<1x256xf32>
    %88 = vector.broadcast %87 : vector<1x256xf32> to vector<8x256xf32>
    %89 = arith.mulf %84, %88 : vector<8x256xf32>
    %90 = vector.extract_strided_slice %53 {offsets = [0, 3], sizes = [8, 1], strides = [1, 1]} : vector<8x25xf32> to vector<8x1xf32>
    %91 = vector.broadcast %90 : vector<8x1xf32> to vector<8x256xf32>
    %92 = arith.mulf %91, %89 : vector<8x256xf32>
    %93 = arith.addf %83, %92 : vector<8x256xf32>
    %c30_i32 = arith.constant 30 : i32
    %94 = tpu.dynamic_rotate %52 by %c30_i32 dim 1 : vector<8x256xf32>, i32 -> vector<8x256xf32>
    %95 = vector.extract_strided_slice %5 {offsets = [12, 0], sizes = [1, 256], strides = [1, 1]} : vector<21x256xf32> to vector<1x256xf32>
    %96 = vector.extract_strided_slice %6 {offsets = [8, 0], sizes = [1, 256], strides = [1, 1]} : vector<21x256xf32> to vector<1x256xf32>
    %97 = arith.mulf %95, %96 : vector<1x256xf32>
    %98 = vector.broadcast %97 : vector<1x256xf32> to vector<8x256xf32>
    %99 = arith.mulf %94, %98 : vector<8x256xf32>
    %100 = vector.extract_strided_slice %53 {offsets = [0, 4], sizes = [8, 1], strides = [1, 1]} : vector<8x25xf32> to vector<8x1xf32>
    %101 = vector.broadcast %100 : vector<8x1xf32> to vector<8x256xf32>
    %102 = arith.mulf %101, %99 : vector<8x256xf32>
    %103 = arith.addf %93, %102 : vector<8x256xf32>
    %c18_i32 = arith.constant 18 : i32
    %104 = tpu.dynamic_rotate %52 by %c18_i32 dim 1 : vector<8x256xf32>, i32 -> vector<8x256xf32>
    %105 = vector.extract_strided_slice %5 {offsets = [8, 0], sizes = [1, 256], strides = [1, 1]} : vector<21x256xf32> to vector<1x256xf32>
    %106 = vector.extract_strided_slice %6 {offsets = [9, 0], sizes = [1, 256], strides = [1, 1]} : vector<21x256xf32> to vector<1x256xf32>
    %107 = arith.mulf %105, %106 : vector<1x256xf32>
    %108 = vector.broadcast %107 : vector<1x256xf32> to vector<8x256xf32>
    %109 = arith.mulf %104, %108 : vector<8x256xf32>
    %110 = vector.extract_strided_slice %53 {offsets = [0, 5], sizes = [8, 1], strides = [1, 1]} : vector<8x25xf32> to vector<8x1xf32>
    %111 = vector.broadcast %110 : vector<8x1xf32> to vector<8x256xf32>
    %112 = arith.mulf %111, %109 : vector<8x256xf32>
    %113 = arith.addf %103, %112 : vector<8x256xf32>
    %c17_i32 = arith.constant 17 : i32
    %114 = tpu.dynamic_rotate %52 by %c17_i32 dim 1 : vector<8x256xf32>, i32 -> vector<8x256xf32>
    %115 = vector.extract_strided_slice %5 {offsets = [9, 0], sizes = [1, 256], strides = [1, 1]} : vector<21x256xf32> to vector<1x256xf32>
    %116 = vector.extract_strided_slice %6 {offsets = [9, 0], sizes = [1, 256], strides = [1, 1]} : vector<21x256xf32> to vector<1x256xf32>
    %117 = arith.mulf %115, %116 : vector<1x256xf32>
    %118 = vector.broadcast %117 : vector<1x256xf32> to vector<8x256xf32>
    %119 = arith.mulf %114, %118 : vector<8x256xf32>
    %120 = vector.extract_strided_slice %53 {offsets = [0, 6], sizes = [8, 1], strides = [1, 1]} : vector<8x25xf32> to vector<8x1xf32>
    %121 = vector.broadcast %120 : vector<8x1xf32> to vector<8x256xf32>
    %122 = arith.mulf %121, %119 : vector<8x256xf32>
    %123 = arith.addf %113, %122 : vector<8x256xf32>
    %c16_i32 = arith.constant 16 : i32
    %124 = tpu.dynamic_rotate %52 by %c16_i32 dim 1 : vector<8x256xf32>, i32 -> vector<8x256xf32>
    %125 = vector.extract_strided_slice %6 {offsets = [9, 0], sizes = [1, 256], strides = [1, 1]} : vector<21x256xf32> to vector<1x256xf32>
    %126 = vector.broadcast %125 : vector<1x256xf32> to vector<8x256xf32>
    %127 = arith.mulf %124, %126 : vector<8x256xf32>
    %128 = vector.extract_strided_slice %53 {offsets = [0, 7], sizes = [8, 1], strides = [1, 1]} : vector<8x25xf32> to vector<8x1xf32>
    %129 = vector.broadcast %128 : vector<8x1xf32> to vector<8x256xf32>
    %130 = arith.mulf %129, %127 : vector<8x256xf32>
    %131 = arith.addf %123, %130 : vector<8x256xf32>
    %c15_i32 = arith.constant 15 : i32
    %132 = tpu.dynamic_rotate %52 by %c15_i32 dim 1 : vector<8x256xf32>, i32 -> vector<8x256xf32>
    %133 = vector.extract_strided_slice %5 {offsets = [11, 0], sizes = [1, 256], strides = [1, 1]} : vector<21x256xf32> to vector<1x256xf32>
    %134 = vector.extract_strided_slice %6 {offsets = [9, 0], sizes = [1, 256], strides = [1, 1]} : vector<21x256xf32> to vector<1x256xf32>
    %135 = arith.mulf %133, %134 : vector<1x256xf32>
    %136 = vector.broadcast %135 : vector<1x256xf32> to vector<8x256xf32>
    %137 = arith.mulf %132, %136 : vector<8x256xf32>
    %138 = vector.extract_strided_slice %53 {offsets = [0, 8], sizes = [8, 1], strides = [1, 1]} : vector<8x25xf32> to vector<8x1xf32>
    %139 = vector.broadcast %138 : vector<8x1xf32> to vector<8x256xf32>
    %140 = arith.mulf %139, %137 : vector<8x256xf32>
    %141 = arith.addf %131, %140 : vector<8x256xf32>
    %c14_i32 = arith.constant 14 : i32
    %142 = tpu.dynamic_rotate %52 by %c14_i32 dim 1 : vector<8x256xf32>, i32 -> vector<8x256xf32>
    %143 = vector.extract_strided_slice %5 {offsets = [12, 0], sizes = [1, 256], strides = [1, 1]} : vector<21x256xf32> to vector<1x256xf32>
    %144 = vector.extract_strided_slice %6 {offsets = [9, 0], sizes = [1, 256], strides = [1, 1]} : vector<21x256xf32> to vector<1x256xf32>
    %145 = arith.mulf %143, %144 : vector<1x256xf32>
    %146 = vector.broadcast %145 : vector<1x256xf32> to vector<8x256xf32>
    %147 = arith.mulf %142, %146 : vector<8x256xf32>
    %148 = vector.extract_strided_slice %53 {offsets = [0, 9], sizes = [8, 1], strides = [1, 1]} : vector<8x25xf32> to vector<8x1xf32>
    %149 = vector.broadcast %148 : vector<8x1xf32> to vector<8x256xf32>
    %150 = arith.mulf %149, %147 : vector<8x256xf32>
    %151 = arith.addf %141, %150 : vector<8x256xf32>
    %c2_i32 = arith.constant 2 : i32
    %152 = tpu.dynamic_rotate %52 by %c2_i32 dim 1 : vector<8x256xf32>, i32 -> vector<8x256xf32>
    %153 = vector.extract_strided_slice %5 {offsets = [8, 0], sizes = [1, 256], strides = [1, 1]} : vector<21x256xf32> to vector<1x256xf32>
    %154 = vector.broadcast %153 : vector<1x256xf32> to vector<8x256xf32>
    %155 = arith.mulf %152, %154 : vector<8x256xf32>
    %156 = vector.extract_strided_slice %53 {offsets = [0, 10], sizes = [8, 1], strides = [1, 1]} : vector<8x25xf32> to vector<8x1xf32>
    %157 = vector.broadcast %156 : vector<8x1xf32> to vector<8x256xf32>
    %158 = arith.mulf %157, %155 : vector<8x256xf32>
    %159 = arith.addf %151, %158 : vector<8x256xf32>
    %c1_i32 = arith.constant 1 : i32
    %160 = tpu.dynamic_rotate %52 by %c1_i32 dim 1 : vector<8x256xf32>, i32 -> vector<8x256xf32>
    %161 = vector.extract_strided_slice %5 {offsets = [9, 0], sizes = [1, 256], strides = [1, 1]} : vector<21x256xf32> to vector<1x256xf32>
    %162 = vector.broadcast %161 : vector<1x256xf32> to vector<8x256xf32>
    %163 = arith.mulf %160, %162 : vector<8x256xf32>
    %164 = vector.extract_strided_slice %53 {offsets = [0, 11], sizes = [8, 1], strides = [1, 1]} : vector<8x25xf32> to vector<8x1xf32>
    %165 = vector.broadcast %164 : vector<8x1xf32> to vector<8x256xf32>
    %166 = arith.mulf %165, %163 : vector<8x256xf32>
    %167 = arith.addf %159, %166 : vector<8x256xf32>
    %168 = vector.extract_strided_slice %53 {offsets = [0, 12], sizes = [8, 1], strides = [1, 1]} : vector<8x25xf32> to vector<8x1xf32>
    %169 = vector.broadcast %168 : vector<8x1xf32> to vector<8x256xf32>
    %170 = arith.mulf %169, %52 : vector<8x256xf32>
    %171 = arith.addf %167, %170 : vector<8x256xf32>
    %c255_i32 = arith.constant 255 : i32
    %172 = tpu.dynamic_rotate %52 by %c255_i32 dim 1 : vector<8x256xf32>, i32 -> vector<8x256xf32>
    %173 = vector.extract_strided_slice %5 {offsets = [11, 0], sizes = [1, 256], strides = [1, 1]} : vector<21x256xf32> to vector<1x256xf32>
    %174 = vector.broadcast %173 : vector<1x256xf32> to vector<8x256xf32>
    %175 = arith.mulf %172, %174 : vector<8x256xf32>
    %176 = vector.extract_strided_slice %53 {offsets = [0, 13], sizes = [8, 1], strides = [1, 1]} : vector<8x25xf32> to vector<8x1xf32>
    %177 = vector.broadcast %176 : vector<8x1xf32> to vector<8x256xf32>
    %178 = arith.mulf %177, %175 : vector<8x256xf32>
    %179 = arith.addf %171, %178 : vector<8x256xf32>
    %c254_i32 = arith.constant 254 : i32
    %180 = tpu.dynamic_rotate %52 by %c254_i32 dim 1 : vector<8x256xf32>, i32 -> vector<8x256xf32>
    %181 = vector.extract_strided_slice %5 {offsets = [12, 0], sizes = [1, 256], strides = [1, 1]} : vector<21x256xf32> to vector<1x256xf32>
    %182 = vector.broadcast %181 : vector<1x256xf32> to vector<8x256xf32>
    %183 = arith.mulf %180, %182 : vector<8x256xf32>
    %184 = vector.extract_strided_slice %53 {offsets = [0, 14], sizes = [8, 1], strides = [1, 1]} : vector<8x25xf32> to vector<8x1xf32>
    %185 = vector.broadcast %184 : vector<8x1xf32> to vector<8x256xf32>
    %186 = arith.mulf %185, %183 : vector<8x256xf32>
    %187 = arith.addf %179, %186 : vector<8x256xf32>
    %c242_i32 = arith.constant 242 : i32
    %188 = tpu.dynamic_rotate %52 by %c242_i32 dim 1 : vector<8x256xf32>, i32 -> vector<8x256xf32>
    %189 = vector.extract_strided_slice %5 {offsets = [8, 0], sizes = [1, 256], strides = [1, 1]} : vector<21x256xf32> to vector<1x256xf32>
    %190 = vector.extract_strided_slice %6 {offsets = [11, 0], sizes = [1, 256], strides = [1, 1]} : vector<21x256xf32> to vector<1x256xf32>
    %191 = arith.mulf %189, %190 : vector<1x256xf32>
    %192 = vector.broadcast %191 : vector<1x256xf32> to vector<8x256xf32>
    %193 = arith.mulf %188, %192 : vector<8x256xf32>
    %194 = vector.extract_strided_slice %53 {offsets = [0, 15], sizes = [8, 1], strides = [1, 1]} : vector<8x25xf32> to vector<8x1xf32>
    %195 = vector.broadcast %194 : vector<8x1xf32> to vector<8x256xf32>
    %196 = arith.mulf %195, %193 : vector<8x256xf32>
    %197 = arith.addf %187, %196 : vector<8x256xf32>
    %c241_i32 = arith.constant 241 : i32
    %198 = tpu.dynamic_rotate %52 by %c241_i32 dim 1 : vector<8x256xf32>, i32 -> vector<8x256xf32>
    %199 = vector.extract_strided_slice %5 {offsets = [9, 0], sizes = [1, 256], strides = [1, 1]} : vector<21x256xf32> to vector<1x256xf32>
    %200 = vector.extract_strided_slice %6 {offsets = [11, 0], sizes = [1, 256], strides = [1, 1]} : vector<21x256xf32> to vector<1x256xf32>
    %201 = arith.mulf %199, %200 : vector<1x256xf32>
    %202 = vector.broadcast %201 : vector<1x256xf32> to vector<8x256xf32>
    %203 = arith.mulf %198, %202 : vector<8x256xf32>
    %204 = vector.extract_strided_slice %53 {offsets = [0, 16], sizes = [8, 1], strides = [1, 1]} : vector<8x25xf32> to vector<8x1xf32>
    %205 = vector.broadcast %204 : vector<8x1xf32> to vector<8x256xf32>
    %206 = arith.mulf %205, %203 : vector<8x256xf32>
    %207 = arith.addf %197, %206 : vector<8x256xf32>
    %c240_i32 = arith.constant 240 : i32
    %208 = tpu.dynamic_rotate %52 by %c240_i32 dim 1 : vector<8x256xf32>, i32 -> vector<8x256xf32>
    %209 = vector.extract_strided_slice %6 {offsets = [11, 0], sizes = [1, 256], strides = [1, 1]} : vector<21x256xf32> to vector<1x256xf32>
    %210 = vector.broadcast %209 : vector<1x256xf32> to vector<8x256xf32>
    %211 = arith.mulf %208, %210 : vector<8x256xf32>
    %212 = vector.extract_strided_slice %53 {offsets = [0, 17], sizes = [8, 1], strides = [1, 1]} : vector<8x25xf32> to vector<8x1xf32>
    %213 = vector.broadcast %212 : vector<8x1xf32> to vector<8x256xf32>
    %214 = arith.mulf %213, %211 : vector<8x256xf32>
    %215 = arith.addf %207, %214 : vector<8x256xf32>
    %c239_i32 = arith.constant 239 : i32
    %216 = tpu.dynamic_rotate %52 by %c239_i32 dim 1 : vector<8x256xf32>, i32 -> vector<8x256xf32>
    %217 = vector.extract_strided_slice %5 {offsets = [11, 0], sizes = [1, 256], strides = [1, 1]} : vector<21x256xf32> to vector<1x256xf32>
    %218 = vector.extract_strided_slice %6 {offsets = [11, 0], sizes = [1, 256], strides = [1, 1]} : vector<21x256xf32> to vector<1x256xf32>
    %219 = arith.mulf %217, %218 : vector<1x256xf32>
    %220 = vector.broadcast %219 : vector<1x256xf32> to vector<8x256xf32>
    %221 = arith.mulf %216, %220 : vector<8x256xf32>
    %222 = vector.extract_strided_slice %53 {offsets = [0, 18], sizes = [8, 1], strides = [1, 1]} : vector<8x25xf32> to vector<8x1xf32>
    %223 = vector.broadcast %222 : vector<8x1xf32> to vector<8x256xf32>
    %224 = arith.mulf %223, %221 : vector<8x256xf32>
    %225 = arith.addf %215, %224 : vector<8x256xf32>
    %c238_i32 = arith.constant 238 : i32
    %226 = tpu.dynamic_rotate %52 by %c238_i32 dim 1 : vector<8x256xf32>, i32 -> vector<8x256xf32>
    %227 = vector.extract_strided_slice %5 {offsets = [12, 0], sizes = [1, 256], strides = [1, 1]} : vector<21x256xf32> to vector<1x256xf32>
    %228 = vector.extract_strided_slice %6 {offsets = [11, 0], sizes = [1, 256], strides = [1, 1]} : vector<21x256xf32> to vector<1x256xf32>
    %229 = arith.mulf %227, %228 : vector<1x256xf32>
    %230 = vector.broadcast %229 : vector<1x256xf32> to vector<8x256xf32>
    %231 = arith.mulf %226, %230 : vector<8x256xf32>
    %232 = vector.extract_strided_slice %53 {offsets = [0, 19], sizes = [8, 1], strides = [1, 1]} : vector<8x25xf32> to vector<8x1xf32>
    %233 = vector.broadcast %232 : vector<8x1xf32> to vector<8x256xf32>
    %234 = arith.mulf %233, %231 : vector<8x256xf32>
    %235 = arith.addf %225, %234 : vector<8x256xf32>
    %c226_i32 = arith.constant 226 : i32
    %236 = tpu.dynamic_rotate %52 by %c226_i32 dim 1 : vector<8x256xf32>, i32 -> vector<8x256xf32>
    %237 = vector.extract_strided_slice %5 {offsets = [8, 0], sizes = [1, 256], strides = [1, 1]} : vector<21x256xf32> to vector<1x256xf32>
    %238 = vector.extract_strided_slice %6 {offsets = [12, 0], sizes = [1, 256], strides = [1, 1]} : vector<21x256xf32> to vector<1x256xf32>
    %239 = arith.mulf %237, %238 : vector<1x256xf32>
    %240 = vector.broadcast %239 : vector<1x256xf32> to vector<8x256xf32>
    %241 = arith.mulf %236, %240 : vector<8x256xf32>
    %242 = vector.extract_strided_slice %53 {offsets = [0, 20], sizes = [8, 1], strides = [1, 1]} : vector<8x25xf32> to vector<8x1xf32>
    %243 = vector.broadcast %242 : vector<8x1xf32> to vector<8x256xf32>
    %244 = arith.mulf %243, %241 : vector<8x256xf32>
    %245 = arith.addf %235, %244 : vector<8x256xf32>
    %c225_i32 = arith.constant 225 : i32
    %246 = tpu.dynamic_rotate %52 by %c225_i32 dim 1 : vector<8x256xf32>, i32 -> vector<8x256xf32>
    %247 = vector.extract_strided_slice %5 {offsets = [9, 0], sizes = [1, 256], strides = [1, 1]} : vector<21x256xf32> to vector<1x256xf32>
    %248 = vector.extract_strided_slice %6 {offsets = [12, 0], sizes = [1, 256], strides = [1, 1]} : vector<21x256xf32> to vector<1x256xf32>
    %249 = arith.mulf %247, %248 : vector<1x256xf32>
    %250 = vector.broadcast %249 : vector<1x256xf32> to vector<8x256xf32>
    %251 = arith.mulf %246, %250 : vector<8x256xf32>
    %252 = vector.extract_strided_slice %53 {offsets = [0, 21], sizes = [8, 1], strides = [1, 1]} : vector<8x25xf32> to vector<8x1xf32>
    %253 = vector.broadcast %252 : vector<8x1xf32> to vector<8x256xf32>
    %254 = arith.mulf %253, %251 : vector<8x256xf32>
    %255 = arith.addf %245, %254 : vector<8x256xf32>
    %c224_i32 = arith.constant 224 : i32
    %256 = tpu.dynamic_rotate %52 by %c224_i32 dim 1 : vector<8x256xf32>, i32 -> vector<8x256xf32>
    %257 = vector.extract_strided_slice %6 {offsets = [12, 0], sizes = [1, 256], strides = [1, 1]} : vector<21x256xf32> to vector<1x256xf32>
    %258 = vector.broadcast %257 : vector<1x256xf32> to vector<8x256xf32>
    %259 = arith.mulf %256, %258 : vector<8x256xf32>
    %260 = vector.extract_strided_slice %53 {offsets = [0, 22], sizes = [8, 1], strides = [1, 1]} : vector<8x25xf32> to vector<8x1xf32>
    %261 = vector.broadcast %260 : vector<8x1xf32> to vector<8x256xf32>
    %262 = arith.mulf %261, %259 : vector<8x256xf32>
    %263 = arith.addf %255, %262 : vector<8x256xf32>
    %c223_i32 = arith.constant 223 : i32
    %264 = tpu.dynamic_rotate %52 by %c223_i32 dim 1 : vector<8x256xf32>, i32 -> vector<8x256xf32>
    %265 = vector.extract_strided_slice %5 {offsets = [11, 0], sizes = [1, 256], strides = [1, 1]} : vector<21x256xf32> to vector<1x256xf32>
    %266 = vector.extract_strided_slice %6 {offsets = [12, 0], sizes = [1, 256], strides = [1, 1]} : vector<21x256xf32> to vector<1x256xf32>
    %267 = arith.mulf %265, %266 : vector<1x256xf32>
    %268 = vector.broadcast %267 : vector<1x256xf32> to vector<8x256xf32>
    %269 = arith.mulf %264, %268 : vector<8x256xf32>
    %270 = vector.extract_strided_slice %53 {offsets = [0, 23], sizes = [8, 1], strides = [1, 1]} : vector<8x25xf32> to vector<8x1xf32>
    %271 = vector.broadcast %270 : vector<8x1xf32> to vector<8x256xf32>
    %272 = arith.mulf %271, %269 : vector<8x256xf32>
    %273 = arith.addf %263, %272 : vector<8x256xf32>
    %c222_i32 = arith.constant 222 : i32
    %274 = tpu.dynamic_rotate %52 by %c222_i32 dim 1 : vector<8x256xf32>, i32 -> vector<8x256xf32>
    %275 = vector.extract_strided_slice %5 {offsets = [12, 0], sizes = [1, 256], strides = [1, 1]} : vector<21x256xf32> to vector<1x256xf32>
    %276 = vector.extract_strided_slice %6 {offsets = [12, 0], sizes = [1, 256], strides = [1, 1]} : vector<21x256xf32> to vector<1x256xf32>
    %277 = arith.mulf %275, %276 : vector<1x256xf32>
    %278 = vector.broadcast %277 : vector<1x256xf32> to vector<8x256xf32>
    %279 = arith.mulf %274, %278 : vector<8x256xf32>
    %280 = vector.extract_strided_slice %53 {offsets = [0, 24], sizes = [8, 1], strides = [1, 1]} : vector<8x25xf32> to vector<8x1xf32>
    %281 = vector.broadcast %280 : vector<8x1xf32> to vector<8x256xf32>
    %282 = arith.mulf %281, %279 : vector<8x256xf32>
    %283 = arith.addf %273, %282 : vector<8x256xf32>
    %284 = vector.broadcast %54 : vector<8x1xf32> to vector<8x256xf32>
    %285 = arith.addf %283, %284 : vector<8x256xf32>
    %c0_29 = arith.constant 0 : index
    %c0_30 = arith.constant 0 : index
    %286 = vector.load %arg6[%c0_29, %c0_30] : memref<256x1024xf32, #tpu.memory_space<vmem>>, vector<256x1024xf32>
    %cst_31 = arith.constant dense<0.000000e+00> : vector<8x1024xf32>
    %287 = tpu.matmul %52, %286, %cst_31 {dimension_numbers = #tpu.dot_dimension_numbers<[1], [0], [0], [1], [0, 0, 1, 1], [], []>} : vector<8x256xf32>, vector<256x1024xf32>, vector<8x1024xf32> -> vector<8x1024xf32>
    %c0_32 = arith.constant 0 : index
    %c0_33 = arith.constant 0 : index
    %288 = vector.load %arg7[%c0_32, %c0_33] : memref<256x1024xf32, #tpu.memory_space<vmem>>, vector<256x1024xf32>
    %cst_34 = arith.constant dense<0.000000e+00> : vector<8x1024xf32>
    %289 = tpu.matmul %52, %288, %cst_34 {dimension_numbers = #tpu.dot_dimension_numbers<[1], [0], [0], [1], [0, 0, 1, 1], [], []>} : vector<8x256xf32>, vector<256x1024xf32>, vector<8x1024xf32> -> vector<8x1024xf32>
    %290 = arith.mulf %287, %287 : vector<8x1024xf32>
    %291 = arith.mulf %289, %289 : vector<8x1024xf32>
    %292 = arith.addf %290, %291 : vector<8x1024xf32>
    %293 = math.sqrt %292 : vector<8x1024xf32>
    %294 = vector.extract_strided_slice %293 {offsets = [0, 0], sizes = [8, 256], strides = [1, 1]} : vector<8x1024xf32> to vector<8x256xf32>
    %295 = vector.extract_strided_slice %293 {offsets = [0, 256], sizes = [8, 256], strides = [1, 1]} : vector<8x1024xf32> to vector<8x256xf32>
    %296 = arith.addf %294, %295 : vector<8x256xf32>
    %297 = vector.extract_strided_slice %293 {offsets = [0, 512], sizes = [8, 256], strides = [1, 1]} : vector<8x1024xf32> to vector<8x256xf32>
    %298 = arith.addf %296, %297 : vector<8x256xf32>
    %299 = vector.extract_strided_slice %293 {offsets = [0, 768], sizes = [8, 256], strides = [1, 1]} : vector<8x1024xf32> to vector<8x256xf32>
    %300 = arith.addf %298, %299 : vector<8x256xf32>
    %cst_35 = arith.constant 2.500000e-01 : f32
    %301 = vector.broadcast %cst_35 : f32 to vector<8x256xf32>
    %302 = arith.mulf %300, %301 : vector<8x256xf32>
    %303 = vector.extract_strided_slice %2 {offsets = [0, 16], sizes = [8, 8], strides = [1, 1]} : vector<8x32xf32> to vector<8x8xf32>
    %cst_36 = arith.constant dense<0.000000e+00> : vector<8x256xf32>
    %304 = tpu.matmul %303, %302, %cst_36 {dimension_numbers = #tpu.dot_dimension_numbers<[1], [0], [0], [1], [0, 0, 1, 1], [], []>} : vector<8x8xf32>, vector<8x256xf32>, vector<8x256xf32> -> vector<8x256xf32>
    %305 = vector.extract_strided_slice %3 {offsets = [0, 2], sizes = [8, 1], strides = [1, 1]} : vector<8x11xf32> to vector<8x1xf32>
    %306 = vector.broadcast %305 : vector<8x1xf32> to vector<8x256xf32>
    %307 = arith.addf %304, %306 : vector<8x256xf32>
    %308 = arith.mulf %285, %307 : vector<8x256xf32>
    %c17_i32_37 = arith.constant 17 : i32
    %309 = tpu.dynamic_rotate %308 by %c17_i32_37 dim 1 : vector<8x256xf32>, i32 -> vector<8x256xf32>
    %310 = vector.extract_strided_slice %5 {offsets = [9, 0], sizes = [1, 256], strides = [1, 1]} : vector<21x256xf32> to vector<1x256xf32>
    %311 = vector.extract_strided_slice %6 {offsets = [9, 0], sizes = [1, 256], strides = [1, 1]} : vector<21x256xf32> to vector<1x256xf32>
    %312 = arith.mulf %310, %311 : vector<1x256xf32>
    %313 = vector.broadcast %312 : vector<1x256xf32> to vector<8x256xf32>
    %314 = arith.mulf %309, %313 : vector<8x256xf32>
    %c16_i32_38 = arith.constant 16 : i32
    %315 = tpu.dynamic_rotate %308 by %c16_i32_38 dim 1 : vector<8x256xf32>, i32 -> vector<8x256xf32>
    %316 = vector.extract_strided_slice %6 {offsets = [9, 0], sizes = [1, 256], strides = [1, 1]} : vector<21x256xf32> to vector<1x256xf32>
    %317 = vector.broadcast %316 : vector<1x256xf32> to vector<8x256xf32>
    %318 = arith.mulf %315, %317 : vector<8x256xf32>
    %c15_i32_39 = arith.constant 15 : i32
    %319 = tpu.dynamic_rotate %308 by %c15_i32_39 dim 1 : vector<8x256xf32>, i32 -> vector<8x256xf32>
    %320 = vector.extract_strided_slice %5 {offsets = [11, 0], sizes = [1, 256], strides = [1, 1]} : vector<21x256xf32> to vector<1x256xf32>
    %321 = vector.extract_strided_slice %6 {offsets = [9, 0], sizes = [1, 256], strides = [1, 1]} : vector<21x256xf32> to vector<1x256xf32>
    %322 = arith.mulf %320, %321 : vector<1x256xf32>
    %323 = vector.broadcast %322 : vector<1x256xf32> to vector<8x256xf32>
    %324 = arith.mulf %319, %323 : vector<8x256xf32>
    %c1_i32_40 = arith.constant 1 : i32
    %325 = tpu.dynamic_rotate %308 by %c1_i32_40 dim 1 : vector<8x256xf32>, i32 -> vector<8x256xf32>
    %326 = vector.extract_strided_slice %5 {offsets = [9, 0], sizes = [1, 256], strides = [1, 1]} : vector<21x256xf32> to vector<1x256xf32>
    %327 = vector.broadcast %326 : vector<1x256xf32> to vector<8x256xf32>
    %328 = arith.mulf %325, %327 : vector<8x256xf32>
    %c255_i32_41 = arith.constant 255 : i32
    %329 = tpu.dynamic_rotate %308 by %c255_i32_41 dim 1 : vector<8x256xf32>, i32 -> vector<8x256xf32>
    %330 = vector.extract_strided_slice %5 {offsets = [11, 0], sizes = [1, 256], strides = [1, 1]} : vector<21x256xf32> to vector<1x256xf32>
    %331 = vector.broadcast %330 : vector<1x256xf32> to vector<8x256xf32>
    %332 = arith.mulf %329, %331 : vector<8x256xf32>
    %c241_i32_42 = arith.constant 241 : i32
    %333 = tpu.dynamic_rotate %308 by %c241_i32_42 dim 1 : vector<8x256xf32>, i32 -> vector<8x256xf32>
    %334 = vector.extract_strided_slice %5 {offsets = [9, 0], sizes = [1, 256], strides = [1, 1]} : vector<21x256xf32> to vector<1x256xf32>
    %335 = vector.extract_strided_slice %6 {offsets = [11, 0], sizes = [1, 256], strides = [1, 1]} : vector<21x256xf32> to vector<1x256xf32>
    %336 = arith.mulf %334, %335 : vector<1x256xf32>
    %337 = vector.broadcast %336 : vector<1x256xf32> to vector<8x256xf32>
    %338 = arith.mulf %333, %337 : vector<8x256xf32>
    %c240_i32_43 = arith.constant 240 : i32
    %339 = tpu.dynamic_rotate %308 by %c240_i32_43 dim 1 : vector<8x256xf32>, i32 -> vector<8x256xf32>
    %340 = vector.extract_strided_slice %6 {offsets = [11, 0], sizes = [1, 256], strides = [1, 1]} : vector<21x256xf32> to vector<1x256xf32>
    %341 = vector.broadcast %340 : vector<1x256xf32> to vector<8x256xf32>
    %342 = arith.mulf %339, %341 : vector<8x256xf32>
    %c239_i32_44 = arith.constant 239 : i32
    %343 = tpu.dynamic_rotate %308 by %c239_i32_44 dim 1 : vector<8x256xf32>, i32 -> vector<8x256xf32>
    %344 = vector.extract_strided_slice %5 {offsets = [11, 0], sizes = [1, 256], strides = [1, 1]} : vector<21x256xf32> to vector<1x256xf32>
    %345 = vector.extract_strided_slice %6 {offsets = [11, 0], sizes = [1, 256], strides = [1, 1]} : vector<21x256xf32> to vector<1x256xf32>
    %346 = arith.mulf %344, %345 : vector<1x256xf32>
    %347 = vector.broadcast %346 : vector<1x256xf32> to vector<8x256xf32>
    %348 = arith.mulf %343, %347 : vector<8x256xf32>
    %349 = tpu.concatenate %314, %318, %324, %328, %308, %332, %338, %342, %348 in 0 : vector<8x256xf32>, vector<8x256xf32>, vector<8x256xf32>, vector<8x256xf32>, vector<8x256xf32>, vector<8x256xf32>, vector<8x256xf32>, vector<8x256xf32>, vector<8x256xf32> -> vector<72x256xf32>
    %c0_45 = arith.constant 0 : index
    %c0_46 = arith.constant 0 : index
    %350 = vector.load %arg5[%c0_45, %c0_46] : memref<8x72xf32, #tpu.memory_space<vmem>>, vector<8x72xf32>
    %cst_47 = arith.constant dense<0.000000e+00> : vector<8x256xf32>
    %351 = tpu.matmul %350, %349, %cst_47 {dimension_numbers = #tpu.dot_dimension_numbers<[1], [0], [0], [1], [0, 0, 1, 1], [], []>} : vector<8x72xf32>, vector<72x256xf32>, vector<8x256xf32> -> vector<8x256xf32>
    %c10_i32 = arith.constant 10 : i32
    %352 = tpu.dynamic_rotate %308 by %c10_i32 dim 1 : vector<8x256xf32>, i32 -> vector<8x256xf32>
    %353 = vector.extract_strided_slice %5 {offsets = [0, 0], sizes = [1, 256], strides = [1, 1]} : vector<21x256xf32> to vector<1x256xf32>
    %354 = vector.broadcast %353 : vector<1x256xf32> to vector<8x256xf32>
    %355 = arith.mulf %352, %354 : vector<8x256xf32>
    %c9_i32 = arith.constant 9 : i32
    %356 = tpu.dynamic_rotate %308 by %c9_i32 dim 1 : vector<8x256xf32>, i32 -> vector<8x256xf32>
    %357 = vector.extract_strided_slice %5 {offsets = [1, 0], sizes = [1, 256], strides = [1, 1]} : vector<21x256xf32> to vector<1x256xf32>
    %358 = vector.broadcast %357 : vector<1x256xf32> to vector<8x256xf32>
    %359 = arith.mulf %356, %358 : vector<8x256xf32>
    %c8_i32 = arith.constant 8 : i32
    %360 = tpu.dynamic_rotate %308 by %c8_i32 dim 1 : vector<8x256xf32>, i32 -> vector<8x256xf32>
    %361 = vector.extract_strided_slice %5 {offsets = [2, 0], sizes = [1, 256], strides = [1, 1]} : vector<21x256xf32> to vector<1x256xf32>
    %362 = vector.broadcast %361 : vector<1x256xf32> to vector<8x256xf32>
    %363 = arith.mulf %360, %362 : vector<8x256xf32>
    %c7_i32 = arith.constant 7 : i32
    %364 = tpu.dynamic_rotate %308 by %c7_i32 dim 1 : vector<8x256xf32>, i32 -> vector<8x256xf32>
    %365 = vector.extract_strided_slice %5 {offsets = [3, 0], sizes = [1, 256], strides = [1, 1]} : vector<21x256xf32> to vector<1x256xf32>
    %366 = vector.broadcast %365 : vector<1x256xf32> to vector<8x256xf32>
    %367 = arith.mulf %364, %366 : vector<8x256xf32>
    %c6_i32 = arith.constant 6 : i32
    %368 = tpu.dynamic_rotate %308 by %c6_i32 dim 1 : vector<8x256xf32>, i32 -> vector<8x256xf32>
    %369 = vector.extract_strided_slice %5 {offsets = [4, 0], sizes = [1, 256], strides = [1, 1]} : vector<21x256xf32> to vector<1x256xf32>
    %370 = vector.broadcast %369 : vector<1x256xf32> to vector<8x256xf32>
    %371 = arith.mulf %368, %370 : vector<8x256xf32>
    %c5_i32 = arith.constant 5 : i32
    %372 = tpu.dynamic_rotate %308 by %c5_i32 dim 1 : vector<8x256xf32>, i32 -> vector<8x256xf32>
    %373 = vector.extract_strided_slice %5 {offsets = [5, 0], sizes = [1, 256], strides = [1, 1]} : vector<21x256xf32> to vector<1x256xf32>
    %374 = vector.broadcast %373 : vector<1x256xf32> to vector<8x256xf32>
    %375 = arith.mulf %372, %374 : vector<8x256xf32>
    %c4_i32 = arith.constant 4 : i32
    %376 = tpu.dynamic_rotate %308 by %c4_i32 dim 1 : vector<8x256xf32>, i32 -> vector<8x256xf32>
    %377 = vector.extract_strided_slice %5 {offsets = [6, 0], sizes = [1, 256], strides = [1, 1]} : vector<21x256xf32> to vector<1x256xf32>
    %378 = vector.broadcast %377 : vector<1x256xf32> to vector<8x256xf32>
    %379 = arith.mulf %376, %378 : vector<8x256xf32>
    %c3_i32 = arith.constant 3 : i32
    %380 = tpu.dynamic_rotate %308 by %c3_i32 dim 1 : vector<8x256xf32>, i32 -> vector<8x256xf32>
    %381 = vector.extract_strided_slice %5 {offsets = [7, 0], sizes = [1, 256], strides = [1, 1]} : vector<21x256xf32> to vector<1x256xf32>
    %382 = vector.broadcast %381 : vector<1x256xf32> to vector<8x256xf32>
    %383 = arith.mulf %380, %382 : vector<8x256xf32>
    %c2_i32_48 = arith.constant 2 : i32
    %384 = tpu.dynamic_rotate %308 by %c2_i32_48 dim 1 : vector<8x256xf32>, i32 -> vector<8x256xf32>
    %385 = vector.extract_strided_slice %5 {offsets = [8, 0], sizes = [1, 256], strides = [1, 1]} : vector<21x256xf32> to vector<1x256xf32>
    %386 = vector.broadcast %385 : vector<1x256xf32> to vector<8x256xf32>
    %387 = arith.mulf %384, %386 : vector<8x256xf32>
    %c1_i32_49 = arith.constant 1 : i32
    %388 = tpu.dynamic_rotate %308 by %c1_i32_49 dim 1 : vector<8x256xf32>, i32 -> vector<8x256xf32>
    %389 = vector.extract_strided_slice %5 {offsets = [9, 0], sizes = [1, 256], strides = [1, 1]} : vector<21x256xf32> to vector<1x256xf32>
    %390 = vector.broadcast %389 : vector<1x256xf32> to vector<8x256xf32>
    %391 = arith.mulf %388, %390 : vector<8x256xf32>
    %c255_i32_50 = arith.constant 255 : i32
    %392 = tpu.dynamic_rotate %308 by %c255_i32_50 dim 1 : vector<8x256xf32>, i32 -> vector<8x256xf32>
    %393 = vector.extract_strided_slice %5 {offsets = [11, 0], sizes = [1, 256], strides = [1, 1]} : vector<21x256xf32> to vector<1x256xf32>
    %394 = vector.broadcast %393 : vector<1x256xf32> to vector<8x256xf32>
    %395 = arith.mulf %392, %394 : vector<8x256xf32>
    %c254_i32_51 = arith.constant 254 : i32
    %396 = tpu.dynamic_rotate %308 by %c254_i32_51 dim 1 : vector<8x256xf32>, i32 -> vector<8x256xf32>
    %397 = vector.extract_strided_slice %5 {offsets = [12, 0], sizes = [1, 256], strides = [1, 1]} : vector<21x256xf32> to vector<1x256xf32>
    %398 = vector.broadcast %397 : vector<1x256xf32> to vector<8x256xf32>
    %399 = arith.mulf %396, %398 : vector<8x256xf32>
    %c253_i32 = arith.constant 253 : i32
    %400 = tpu.dynamic_rotate %308 by %c253_i32 dim 1 : vector<8x256xf32>, i32 -> vector<8x256xf32>
    %401 = vector.extract_strided_slice %5 {offsets = [13, 0], sizes = [1, 256], strides = [1, 1]} : vector<21x256xf32> to vector<1x256xf32>
    %402 = vector.broadcast %401 : vector<1x256xf32> to vector<8x256xf32>
    %403 = arith.mulf %400, %402 : vector<8x256xf32>
    %c252_i32 = arith.constant 252 : i32
    %404 = tpu.dynamic_rotate %308 by %c252_i32 dim 1 : vector<8x256xf32>, i32 -> vector<8x256xf32>
    %405 = vector.extract_strided_slice %5 {offsets = [14, 0], sizes = [1, 256], strides = [1, 1]} : vector<21x256xf32> to vector<1x256xf32>
    %406 = vector.broadcast %405 : vector<1x256xf32> to vector<8x256xf32>
    %407 = arith.mulf %404, %406 : vector<8x256xf32>
    %c251_i32 = arith.constant 251 : i32
    %408 = tpu.dynamic_rotate %308 by %c251_i32 dim 1 : vector<8x256xf32>, i32 -> vector<8x256xf32>
    %409 = vector.extract_strided_slice %5 {offsets = [15, 0], sizes = [1, 256], strides = [1, 1]} : vector<21x256xf32> to vector<1x256xf32>
    %410 = vector.broadcast %409 : vector<1x256xf32> to vector<8x256xf32>
    %411 = arith.mulf %408, %410 : vector<8x256xf32>
    %c250_i32 = arith.constant 250 : i32
    %412 = tpu.dynamic_rotate %308 by %c250_i32 dim 1 : vector<8x256xf32>, i32 -> vector<8x256xf32>
    %413 = vector.extract_strided_slice %5 {offsets = [16, 0], sizes = [1, 256], strides = [1, 1]} : vector<21x256xf32> to vector<1x256xf32>
    %414 = vector.broadcast %413 : vector<1x256xf32> to vector<8x256xf32>
    %415 = arith.mulf %412, %414 : vector<8x256xf32>
    %c249_i32 = arith.constant 249 : i32
    %416 = tpu.dynamic_rotate %308 by %c249_i32 dim 1 : vector<8x256xf32>, i32 -> vector<8x256xf32>
    %417 = vector.extract_strided_slice %5 {offsets = [17, 0], sizes = [1, 256], strides = [1, 1]} : vector<21x256xf32> to vector<1x256xf32>
    %418 = vector.broadcast %417 : vector<1x256xf32> to vector<8x256xf32>
    %419 = arith.mulf %416, %418 : vector<8x256xf32>
    %c248_i32 = arith.constant 248 : i32
    %420 = tpu.dynamic_rotate %308 by %c248_i32 dim 1 : vector<8x256xf32>, i32 -> vector<8x256xf32>
    %421 = vector.extract_strided_slice %5 {offsets = [18, 0], sizes = [1, 256], strides = [1, 1]} : vector<21x256xf32> to vector<1x256xf32>
    %422 = vector.broadcast %421 : vector<1x256xf32> to vector<8x256xf32>
    %423 = arith.mulf %420, %422 : vector<8x256xf32>
    %c247_i32 = arith.constant 247 : i32
    %424 = tpu.dynamic_rotate %308 by %c247_i32 dim 1 : vector<8x256xf32>, i32 -> vector<8x256xf32>
    %425 = vector.extract_strided_slice %5 {offsets = [19, 0], sizes = [1, 256], strides = [1, 1]} : vector<21x256xf32> to vector<1x256xf32>
    %426 = vector.broadcast %425 : vector<1x256xf32> to vector<8x256xf32>
    %427 = arith.mulf %424, %426 : vector<8x256xf32>
    %c246_i32 = arith.constant 246 : i32
    %428 = tpu.dynamic_rotate %308 by %c246_i32 dim 1 : vector<8x256xf32>, i32 -> vector<8x256xf32>
    %429 = vector.extract_strided_slice %5 {offsets = [20, 0], sizes = [1, 256], strides = [1, 1]} : vector<21x256xf32> to vector<1x256xf32>
    %430 = vector.broadcast %429 : vector<1x256xf32> to vector<8x256xf32>
    %431 = arith.mulf %428, %430 : vector<8x256xf32>
    %432 = vector.extract_strided_slice %4 {offsets = [0, 25], sizes = [8, 7], strides = [1, 1]} : vector<8x103xf32> to vector<8x7xf32>
    %433 = vector.extract_strided_slice %3 {offsets = [0, 5], sizes = [8, 1], strides = [1, 1]} : vector<8x11xf32> to vector<8x1xf32>
    %434 = vector.extract_strided_slice %432 {offsets = [0, 0], sizes = [8, 1], strides = [1, 1]} : vector<8x7xf32> to vector<8x1xf32>
    %435 = vector.broadcast %434 : vector<8x1xf32> to vector<8x256xf32>
    %436 = arith.mulf %435, %383 : vector<8x256xf32>
    %437 = vector.broadcast %433 : vector<8x1xf32> to vector<8x256xf32>
    %438 = arith.addf %437, %436 : vector<8x256xf32>
    %439 = vector.extract_strided_slice %432 {offsets = [0, 1], sizes = [8, 1], strides = [1, 1]} : vector<8x7xf32> to vector<8x1xf32>
    %440 = vector.broadcast %439 : vector<8x1xf32> to vector<8x256xf32>
    %441 = arith.mulf %440, %387 : vector<8x256xf32>
    %442 = arith.addf %438, %441 : vector<8x256xf32>
    %443 = vector.extract_strided_slice %432 {offsets = [0, 2], sizes = [8, 1], strides = [1, 1]} : vector<8x7xf32> to vector<8x1xf32>
    %444 = vector.broadcast %443 : vector<8x1xf32> to vector<8x256xf32>
    %445 = arith.mulf %444, %391 : vector<8x256xf32>
    %446 = arith.addf %442, %445 : vector<8x256xf32>
    %447 = vector.extract_strided_slice %432 {offsets = [0, 3], sizes = [8, 1], strides = [1, 1]} : vector<8x7xf32> to vector<8x1xf32>
    %448 = vector.broadcast %447 : vector<8x1xf32> to vector<8x256xf32>
    %449 = arith.mulf %448, %308 : vector<8x256xf32>
    %450 = arith.addf %446, %449 : vector<8x256xf32>
    %451 = vector.extract_strided_slice %432 {offsets = [0, 4], sizes = [8, 1], strides = [1, 1]} : vector<8x7xf32> to vector<8x1xf32>
    %452 = vector.broadcast %451 : vector<8x1xf32> to vector<8x256xf32>
    %453 = arith.mulf %452, %395 : vector<8x256xf32>
    %454 = arith.addf %450, %453 : vector<8x256xf32>
    %455 = vector.extract_strided_slice %432 {offsets = [0, 5], sizes = [8, 1], strides = [1, 1]} : vector<8x7xf32> to vector<8x1xf32>
    %456 = vector.broadcast %455 : vector<8x1xf32> to vector<8x256xf32>
    %457 = arith.mulf %456, %399 : vector<8x256xf32>
    %458 = arith.addf %454, %457 : vector<8x256xf32>
    %459 = vector.extract_strided_slice %432 {offsets = [0, 6], sizes = [8, 1], strides = [1, 1]} : vector<8x7xf32> to vector<8x1xf32>
    %460 = vector.broadcast %459 : vector<8x1xf32> to vector<8x256xf32>
    %461 = arith.mulf %460, %403 : vector<8x256xf32>
    %462 = arith.addf %458, %461 : vector<8x256xf32>
    %463 = vector.extract_strided_slice %4 {offsets = [0, 32], sizes = [8, 7], strides = [1, 1]} : vector<8x103xf32> to vector<8x7xf32>
    %464 = vector.extract_strided_slice %3 {offsets = [0, 6], sizes = [8, 1], strides = [1, 1]} : vector<8x11xf32> to vector<8x1xf32>
    %cst_52 = arith.constant 0.000000e+00 : f32
    %465 = vector.broadcast %cst_52 : f32 to vector<8x256xf32>
    %c48_i32 = arith.constant 48 : i32
    %466 = tpu.dynamic_rotate %462 by %c48_i32 dim 1 : vector<8x256xf32>, i32 -> vector<8x256xf32>
    %467 = vector.extract_strided_slice %6 {offsets = [7, 0], sizes = [1, 256], strides = [1, 1]} : vector<21x256xf32> to vector<1x256xf32>
    %468 = vector.broadcast %467 : vector<1x256xf32> to vector<8x256xf32>
    %469 = arith.mulf %466, %468 : vector<8x256xf32>
    %470 = vector.extract_strided_slice %463 {offsets = [0, 0], sizes = [8, 1], strides = [1, 1]} : vector<8x7xf32> to vector<8x1xf32>
    %471 = vector.broadcast %470 : vector<8x1xf32> to vector<8x256xf32>
    %472 = arith.mulf %471, %469 : vector<8x256xf32>
    %473 = arith.addf %465, %472 : vector<8x256xf32>
    %c32_i32_53 = arith.constant 32 : i32
    %474 = tpu.dynamic_rotate %462 by %c32_i32_53 dim 1 : vector<8x256xf32>, i32 -> vector<8x256xf32>
    %475 = vector.extract_strided_slice %6 {offsets = [8, 0], sizes = [1, 256], strides = [1, 1]} : vector<21x256xf32> to vector<1x256xf32>
    %476 = vector.broadcast %475 : vector<1x256xf32> to vector<8x256xf32>
    %477 = arith.mulf %474, %476 : vector<8x256xf32>
    %478 = vector.extract_strided_slice %463 {offsets = [0, 1], sizes = [8, 1], strides = [1, 1]} : vector<8x7xf32> to vector<8x1xf32>
    %479 = vector.broadcast %478 : vector<8x1xf32> to vector<8x256xf32>
    %480 = arith.mulf %479, %477 : vector<8x256xf32>
    %481 = arith.addf %473, %480 : vector<8x256xf32>
    %c16_i32_54 = arith.constant 16 : i32
    %482 = tpu.dynamic_rotate %462 by %c16_i32_54 dim 1 : vector<8x256xf32>, i32 -> vector<8x256xf32>
    %483 = vector.extract_strided_slice %6 {offsets = [9, 0], sizes = [1, 256], strides = [1, 1]} : vector<21x256xf32> to vector<1x256xf32>
    %484 = vector.broadcast %483 : vector<1x256xf32> to vector<8x256xf32>
    %485 = arith.mulf %482, %484 : vector<8x256xf32>
    %486 = vector.extract_strided_slice %463 {offsets = [0, 2], sizes = [8, 1], strides = [1, 1]} : vector<8x7xf32> to vector<8x1xf32>
    %487 = vector.broadcast %486 : vector<8x1xf32> to vector<8x256xf32>
    %488 = arith.mulf %487, %485 : vector<8x256xf32>
    %489 = arith.addf %481, %488 : vector<8x256xf32>
    %490 = vector.extract_strided_slice %463 {offsets = [0, 3], sizes = [8, 1], strides = [1, 1]} : vector<8x7xf32> to vector<8x1xf32>
    %491 = vector.broadcast %490 : vector<8x1xf32> to vector<8x256xf32>
    %492 = arith.mulf %491, %462 : vector<8x256xf32>
    %493 = arith.addf %489, %492 : vector<8x256xf32>
    %c240_i32_55 = arith.constant 240 : i32
    %494 = tpu.dynamic_rotate %462 by %c240_i32_55 dim 1 : vector<8x256xf32>, i32 -> vector<8x256xf32>
    %495 = vector.extract_strided_slice %6 {offsets = [11, 0], sizes = [1, 256], strides = [1, 1]} : vector<21x256xf32> to vector<1x256xf32>
    %496 = vector.broadcast %495 : vector<1x256xf32> to vector<8x256xf32>
    %497 = arith.mulf %494, %496 : vector<8x256xf32>
    %498 = vector.extract_strided_slice %463 {offsets = [0, 4], sizes = [8, 1], strides = [1, 1]} : vector<8x7xf32> to vector<8x1xf32>
    %499 = vector.broadcast %498 : vector<8x1xf32> to vector<8x256xf32>
    %500 = arith.mulf %499, %497 : vector<8x256xf32>
    %501 = arith.addf %493, %500 : vector<8x256xf32>
    %c224_i32_56 = arith.constant 224 : i32
    %502 = tpu.dynamic_rotate %462 by %c224_i32_56 dim 1 : vector<8x256xf32>, i32 -> vector<8x256xf32>
    %503 = vector.extract_strided_slice %6 {offsets = [12, 0], sizes = [1, 256], strides = [1, 1]} : vector<21x256xf32> to vector<1x256xf32>
    %504 = vector.broadcast %503 : vector<1x256xf32> to vector<8x256xf32>
    %505 = arith.mulf %502, %504 : vector<8x256xf32>
    %506 = vector.extract_strided_slice %463 {offsets = [0, 5], sizes = [8, 1], strides = [1, 1]} : vector<8x7xf32> to vector<8x1xf32>
    %507 = vector.broadcast %506 : vector<8x1xf32> to vector<8x256xf32>
    %508 = arith.mulf %507, %505 : vector<8x256xf32>
    %509 = arith.addf %501, %508 : vector<8x256xf32>
    %c208_i32 = arith.constant 208 : i32
    %510 = tpu.dynamic_rotate %462 by %c208_i32 dim 1 : vector<8x256xf32>, i32 -> vector<8x256xf32>
    %511 = vector.extract_strided_slice %6 {offsets = [13, 0], sizes = [1, 256], strides = [1, 1]} : vector<21x256xf32> to vector<1x256xf32>
    %512 = vector.broadcast %511 : vector<1x256xf32> to vector<8x256xf32>
    %513 = arith.mulf %510, %512 : vector<8x256xf32>
    %514 = vector.extract_strided_slice %463 {offsets = [0, 6], sizes = [8, 1], strides = [1, 1]} : vector<8x7xf32> to vector<8x1xf32>
    %515 = vector.broadcast %514 : vector<8x1xf32> to vector<8x256xf32>
    %516 = arith.mulf %515, %513 : vector<8x256xf32>
    %517 = arith.addf %509, %516 : vector<8x256xf32>
    %518 = vector.broadcast %464 : vector<8x1xf32> to vector<8x256xf32>
    %519 = arith.addf %517, %518 : vector<8x256xf32>
    %520 = vector.extract_strided_slice %4 {offsets = [0, 39], sizes = [8, 11], strides = [1, 1]} : vector<8x103xf32> to vector<8x11xf32>
    %521 = vector.extract_strided_slice %3 {offsets = [0, 7], sizes = [8, 1], strides = [1, 1]} : vector<8x11xf32> to vector<8x1xf32>
    %522 = vector.extract_strided_slice %520 {offsets = [0, 0], sizes = [8, 1], strides = [1, 1]} : vector<8x11xf32> to vector<8x1xf32>
    %523 = vector.broadcast %522 : vector<8x1xf32> to vector<8x256xf32>
    %524 = arith.mulf %523, %375 : vector<8x256xf32>
    %525 = vector.broadcast %521 : vector<8x1xf32> to vector<8x256xf32>
    %526 = arith.addf %525, %524 : vector<8x256xf32>
    %527 = vector.extract_strided_slice %520 {offsets = [0, 1], sizes = [8, 1], strides = [1, 1]} : vector<8x11xf32> to vector<8x1xf32>
    %528 = vector.broadcast %527 : vector<8x1xf32> to vector<8x256xf32>
    %529 = arith.mulf %528, %379 : vector<8x256xf32>
    %530 = arith.addf %526, %529 : vector<8x256xf32>
    %531 = vector.extract_strided_slice %520 {offsets = [0, 2], sizes = [8, 1], strides = [1, 1]} : vector<8x11xf32> to vector<8x1xf32>
    %532 = vector.broadcast %531 : vector<8x1xf32> to vector<8x256xf32>
    %533 = arith.mulf %532, %383 : vector<8x256xf32>
    %534 = arith.addf %530, %533 : vector<8x256xf32>
    %535 = vector.extract_strided_slice %520 {offsets = [0, 3], sizes = [8, 1], strides = [1, 1]} : vector<8x11xf32> to vector<8x1xf32>
    %536 = vector.broadcast %535 : vector<8x1xf32> to vector<8x256xf32>
    %537 = arith.mulf %536, %387 : vector<8x256xf32>
    %538 = arith.addf %534, %537 : vector<8x256xf32>
    %539 = vector.extract_strided_slice %520 {offsets = [0, 4], sizes = [8, 1], strides = [1, 1]} : vector<8x11xf32> to vector<8x1xf32>
    %540 = vector.broadcast %539 : vector<8x1xf32> to vector<8x256xf32>
    %541 = arith.mulf %540, %391 : vector<8x256xf32>
    %542 = arith.addf %538, %541 : vector<8x256xf32>
    %543 = vector.extract_strided_slice %520 {offsets = [0, 5], sizes = [8, 1], strides = [1, 1]} : vector<8x11xf32> to vector<8x1xf32>
    %544 = vector.broadcast %543 : vector<8x1xf32> to vector<8x256xf32>
    %545 = arith.mulf %544, %308 : vector<8x256xf32>
    %546 = arith.addf %542, %545 : vector<8x256xf32>
    %547 = vector.extract_strided_slice %520 {offsets = [0, 6], sizes = [8, 1], strides = [1, 1]} : vector<8x11xf32> to vector<8x1xf32>
    %548 = vector.broadcast %547 : vector<8x1xf32> to vector<8x256xf32>
    %549 = arith.mulf %548, %395 : vector<8x256xf32>
    %550 = arith.addf %546, %549 : vector<8x256xf32>
    %551 = vector.extract_strided_slice %520 {offsets = [0, 7], sizes = [8, 1], strides = [1, 1]} : vector<8x11xf32> to vector<8x1xf32>
    %552 = vector.broadcast %551 : vector<8x1xf32> to vector<8x256xf32>
    %553 = arith.mulf %552, %399 : vector<8x256xf32>
    %554 = arith.addf %550, %553 : vector<8x256xf32>
    %555 = vector.extract_strided_slice %520 {offsets = [0, 8], sizes = [8, 1], strides = [1, 1]} : vector<8x11xf32> to vector<8x1xf32>
    %556 = vector.broadcast %555 : vector<8x1xf32> to vector<8x256xf32>
    %557 = arith.mulf %556, %403 : vector<8x256xf32>
    %558 = arith.addf %554, %557 : vector<8x256xf32>
    %559 = vector.extract_strided_slice %520 {offsets = [0, 9], sizes = [8, 1], strides = [1, 1]} : vector<8x11xf32> to vector<8x1xf32>
    %560 = vector.broadcast %559 : vector<8x1xf32> to vector<8x256xf32>
    %561 = arith.mulf %560, %407 : vector<8x256xf32>
    %562 = arith.addf %558, %561 : vector<8x256xf32>
    %563 = vector.extract_strided_slice %520 {offsets = [0, 10], sizes = [8, 1], strides = [1, 1]} : vector<8x11xf32> to vector<8x1xf32>
    %564 = vector.broadcast %563 : vector<8x1xf32> to vector<8x256xf32>
    %565 = arith.mulf %564, %411 : vector<8x256xf32>
    %566 = arith.addf %562, %565 : vector<8x256xf32>
    %567 = vector.extract_strided_slice %4 {offsets = [0, 50], sizes = [8, 11], strides = [1, 1]} : vector<8x103xf32> to vector<8x11xf32>
    %568 = vector.extract_strided_slice %3 {offsets = [0, 8], sizes = [8, 1], strides = [1, 1]} : vector<8x11xf32> to vector<8x1xf32>
    %cst_57 = arith.constant 0.000000e+00 : f32
    %569 = vector.broadcast %cst_57 : f32 to vector<8x256xf32>
    %c80_i32 = arith.constant 80 : i32
    %570 = tpu.dynamic_rotate %566 by %c80_i32 dim 1 : vector<8x256xf32>, i32 -> vector<8x256xf32>
    %571 = vector.extract_strided_slice %6 {offsets = [5, 0], sizes = [1, 256], strides = [1, 1]} : vector<21x256xf32> to vector<1x256xf32>
    %572 = vector.broadcast %571 : vector<1x256xf32> to vector<8x256xf32>
    %573 = arith.mulf %570, %572 : vector<8x256xf32>
    %574 = vector.extract_strided_slice %567 {offsets = [0, 0], sizes = [8, 1], strides = [1, 1]} : vector<8x11xf32> to vector<8x1xf32>
    %575 = vector.broadcast %574 : vector<8x1xf32> to vector<8x256xf32>
    %576 = arith.mulf %575, %573 : vector<8x256xf32>
    %577 = arith.addf %569, %576 : vector<8x256xf32>
    %c64_i32 = arith.constant 64 : i32
    %578 = tpu.dynamic_rotate %566 by %c64_i32 dim 1 : vector<8x256xf32>, i32 -> vector<8x256xf32>
    %579 = vector.extract_strided_slice %6 {offsets = [6, 0], sizes = [1, 256], strides = [1, 1]} : vector<21x256xf32> to vector<1x256xf32>
    %580 = vector.broadcast %579 : vector<1x256xf32> to vector<8x256xf32>
    %581 = arith.mulf %578, %580 : vector<8x256xf32>
    %582 = vector.extract_strided_slice %567 {offsets = [0, 1], sizes = [8, 1], strides = [1, 1]} : vector<8x11xf32> to vector<8x1xf32>
    %583 = vector.broadcast %582 : vector<8x1xf32> to vector<8x256xf32>
    %584 = arith.mulf %583, %581 : vector<8x256xf32>
    %585 = arith.addf %577, %584 : vector<8x256xf32>
    %c48_i32_58 = arith.constant 48 : i32
    %586 = tpu.dynamic_rotate %566 by %c48_i32_58 dim 1 : vector<8x256xf32>, i32 -> vector<8x256xf32>
    %587 = vector.extract_strided_slice %6 {offsets = [7, 0], sizes = [1, 256], strides = [1, 1]} : vector<21x256xf32> to vector<1x256xf32>
    %588 = vector.broadcast %587 : vector<1x256xf32> to vector<8x256xf32>
    %589 = arith.mulf %586, %588 : vector<8x256xf32>
    %590 = vector.extract_strided_slice %567 {offsets = [0, 2], sizes = [8, 1], strides = [1, 1]} : vector<8x11xf32> to vector<8x1xf32>
    %591 = vector.broadcast %590 : vector<8x1xf32> to vector<8x256xf32>
    %592 = arith.mulf %591, %589 : vector<8x256xf32>
    %593 = arith.addf %585, %592 : vector<8x256xf32>
    %c32_i32_59 = arith.constant 32 : i32
    %594 = tpu.dynamic_rotate %566 by %c32_i32_59 dim 1 : vector<8x256xf32>, i32 -> vector<8x256xf32>
    %595 = vector.extract_strided_slice %6 {offsets = [8, 0], sizes = [1, 256], strides = [1, 1]} : vector<21x256xf32> to vector<1x256xf32>
    %596 = vector.broadcast %595 : vector<1x256xf32> to vector<8x256xf32>
    %597 = arith.mulf %594, %596 : vector<8x256xf32>
    %598 = vector.extract_strided_slice %567 {offsets = [0, 3], sizes = [8, 1], strides = [1, 1]} : vector<8x11xf32> to vector<8x1xf32>
    %599 = vector.broadcast %598 : vector<8x1xf32> to vector<8x256xf32>
    %600 = arith.mulf %599, %597 : vector<8x256xf32>
    %601 = arith.addf %593, %600 : vector<8x256xf32>
    %c16_i32_60 = arith.constant 16 : i32
    %602 = tpu.dynamic_rotate %566 by %c16_i32_60 dim 1 : vector<8x256xf32>, i32 -> vector<8x256xf32>
    %603 = vector.extract_strided_slice %6 {offsets = [9, 0], sizes = [1, 256], strides = [1, 1]} : vector<21x256xf32> to vector<1x256xf32>
    %604 = vector.broadcast %603 : vector<1x256xf32> to vector<8x256xf32>
    %605 = arith.mulf %602, %604 : vector<8x256xf32>
    %606 = vector.extract_strided_slice %567 {offsets = [0, 4], sizes = [8, 1], strides = [1, 1]} : vector<8x11xf32> to vector<8x1xf32>
    %607 = vector.broadcast %606 : vector<8x1xf32> to vector<8x256xf32>
    %608 = arith.mulf %607, %605 : vector<8x256xf32>
    %609 = arith.addf %601, %608 : vector<8x256xf32>
    %610 = vector.extract_strided_slice %567 {offsets = [0, 5], sizes = [8, 1], strides = [1, 1]} : vector<8x11xf32> to vector<8x1xf32>
    %611 = vector.broadcast %610 : vector<8x1xf32> to vector<8x256xf32>
    %612 = arith.mulf %611, %566 : vector<8x256xf32>
    %613 = arith.addf %609, %612 : vector<8x256xf32>
    %c240_i32_61 = arith.constant 240 : i32
    %614 = tpu.dynamic_rotate %566 by %c240_i32_61 dim 1 : vector<8x256xf32>, i32 -> vector<8x256xf32>
    %615 = vector.extract_strided_slice %6 {offsets = [11, 0], sizes = [1, 256], strides = [1, 1]} : vector<21x256xf32> to vector<1x256xf32>
    %616 = vector.broadcast %615 : vector<1x256xf32> to vector<8x256xf32>
    %617 = arith.mulf %614, %616 : vector<8x256xf32>
    %618 = vector.extract_strided_slice %567 {offsets = [0, 6], sizes = [8, 1], strides = [1, 1]} : vector<8x11xf32> to vector<8x1xf32>
    %619 = vector.broadcast %618 : vector<8x1xf32> to vector<8x256xf32>
    %620 = arith.mulf %619, %617 : vector<8x256xf32>
    %621 = arith.addf %613, %620 : vector<8x256xf32>
    %c224_i32_62 = arith.constant 224 : i32
    %622 = tpu.dynamic_rotate %566 by %c224_i32_62 dim 1 : vector<8x256xf32>, i32 -> vector<8x256xf32>
    %623 = vector.extract_strided_slice %6 {offsets = [12, 0], sizes = [1, 256], strides = [1, 1]} : vector<21x256xf32> to vector<1x256xf32>
    %624 = vector.broadcast %623 : vector<1x256xf32> to vector<8x256xf32>
    %625 = arith.mulf %622, %624 : vector<8x256xf32>
    %626 = vector.extract_strided_slice %567 {offsets = [0, 7], sizes = [8, 1], strides = [1, 1]} : vector<8x11xf32> to vector<8x1xf32>
    %627 = vector.broadcast %626 : vector<8x1xf32> to vector<8x256xf32>
    %628 = arith.mulf %627, %625 : vector<8x256xf32>
    %629 = arith.addf %621, %628 : vector<8x256xf32>
    %c208_i32_63 = arith.constant 208 : i32
    %630 = tpu.dynamic_rotate %566 by %c208_i32_63 dim 1 : vector<8x256xf32>, i32 -> vector<8x256xf32>
    %631 = vector.extract_strided_slice %6 {offsets = [13, 0], sizes = [1, 256], strides = [1, 1]} : vector<21x256xf32> to vector<1x256xf32>
    %632 = vector.broadcast %631 : vector<1x256xf32> to vector<8x256xf32>
    %633 = arith.mulf %630, %632 : vector<8x256xf32>
    %634 = vector.extract_strided_slice %567 {offsets = [0, 8], sizes = [8, 1], strides = [1, 1]} : vector<8x11xf32> to vector<8x1xf32>
    %635 = vector.broadcast %634 : vector<8x1xf32> to vector<8x256xf32>
    %636 = arith.mulf %635, %633 : vector<8x256xf32>
    %637 = arith.addf %629, %636 : vector<8x256xf32>
    %c192_i32 = arith.constant 192 : i32
    %638 = tpu.dynamic_rotate %566 by %c192_i32 dim 1 : vector<8x256xf32>, i32 -> vector<8x256xf32>
    %639 = vector.extract_strided_slice %6 {offsets = [14, 0], sizes = [1, 256], strides = [1, 1]} : vector<21x256xf32> to vector<1x256xf32>
    %640 = vector.broadcast %639 : vector<1x256xf32> to vector<8x256xf32>
    %641 = arith.mulf %638, %640 : vector<8x256xf32>
    %642 = vector.extract_strided_slice %567 {offsets = [0, 9], sizes = [8, 1], strides = [1, 1]} : vector<8x11xf32> to vector<8x1xf32>
    %643 = vector.broadcast %642 : vector<8x1xf32> to vector<8x256xf32>
    %644 = arith.mulf %643, %641 : vector<8x256xf32>
    %645 = arith.addf %637, %644 : vector<8x256xf32>
    %c176_i32 = arith.constant 176 : i32
    %646 = tpu.dynamic_rotate %566 by %c176_i32 dim 1 : vector<8x256xf32>, i32 -> vector<8x256xf32>
    %647 = vector.extract_strided_slice %6 {offsets = [15, 0], sizes = [1, 256], strides = [1, 1]} : vector<21x256xf32> to vector<1x256xf32>
    %648 = vector.broadcast %647 : vector<1x256xf32> to vector<8x256xf32>
    %649 = arith.mulf %646, %648 : vector<8x256xf32>
    %650 = vector.extract_strided_slice %567 {offsets = [0, 10], sizes = [8, 1], strides = [1, 1]} : vector<8x11xf32> to vector<8x1xf32>
    %651 = vector.broadcast %650 : vector<8x1xf32> to vector<8x256xf32>
    %652 = arith.mulf %651, %649 : vector<8x256xf32>
    %653 = arith.addf %645, %652 : vector<8x256xf32>
    %654 = vector.broadcast %568 : vector<8x1xf32> to vector<8x256xf32>
    %655 = arith.addf %653, %654 : vector<8x256xf32>
    %656 = vector.extract_strided_slice %4 {offsets = [0, 61], sizes = [8, 21], strides = [1, 1]} : vector<8x103xf32> to vector<8x21xf32>
    %657 = vector.extract_strided_slice %3 {offsets = [0, 9], sizes = [8, 1], strides = [1, 1]} : vector<8x11xf32> to vector<8x1xf32>
    %658 = vector.extract_strided_slice %656 {offsets = [0, 0], sizes = [8, 1], strides = [1, 1]} : vector<8x21xf32> to vector<8x1xf32>
    %659 = vector.broadcast %658 : vector<8x1xf32> to vector<8x256xf32>
    %660 = arith.mulf %659, %355 : vector<8x256xf32>
    %661 = vector.broadcast %657 : vector<8x1xf32> to vector<8x256xf32>
    %662 = arith.addf %661, %660 : vector<8x256xf32>
    %663 = vector.extract_strided_slice %656 {offsets = [0, 1], sizes = [8, 1], strides = [1, 1]} : vector<8x21xf32> to vector<8x1xf32>
    %664 = vector.broadcast %663 : vector<8x1xf32> to vector<8x256xf32>
    %665 = arith.mulf %664, %359 : vector<8x256xf32>
    %666 = arith.addf %662, %665 : vector<8x256xf32>
    %667 = vector.extract_strided_slice %656 {offsets = [0, 2], sizes = [8, 1], strides = [1, 1]} : vector<8x21xf32> to vector<8x1xf32>
    %668 = vector.broadcast %667 : vector<8x1xf32> to vector<8x256xf32>
    %669 = arith.mulf %668, %363 : vector<8x256xf32>
    %670 = arith.addf %666, %669 : vector<8x256xf32>
    %671 = vector.extract_strided_slice %656 {offsets = [0, 3], sizes = [8, 1], strides = [1, 1]} : vector<8x21xf32> to vector<8x1xf32>
    %672 = vector.broadcast %671 : vector<8x1xf32> to vector<8x256xf32>
    %673 = arith.mulf %672, %367 : vector<8x256xf32>
    %674 = arith.addf %670, %673 : vector<8x256xf32>
    %675 = vector.extract_strided_slice %656 {offsets = [0, 4], sizes = [8, 1], strides = [1, 1]} : vector<8x21xf32> to vector<8x1xf32>
    %676 = vector.broadcast %675 : vector<8x1xf32> to vector<8x256xf32>
    %677 = arith.mulf %676, %371 : vector<8x256xf32>
    %678 = arith.addf %674, %677 : vector<8x256xf32>
    %679 = vector.extract_strided_slice %656 {offsets = [0, 5], sizes = [8, 1], strides = [1, 1]} : vector<8x21xf32> to vector<8x1xf32>
    %680 = vector.broadcast %679 : vector<8x1xf32> to vector<8x256xf32>
    %681 = arith.mulf %680, %375 : vector<8x256xf32>
    %682 = arith.addf %678, %681 : vector<8x256xf32>
    %683 = vector.extract_strided_slice %656 {offsets = [0, 6], sizes = [8, 1], strides = [1, 1]} : vector<8x21xf32> to vector<8x1xf32>
    %684 = vector.broadcast %683 : vector<8x1xf32> to vector<8x256xf32>
    %685 = arith.mulf %684, %379 : vector<8x256xf32>
    %686 = arith.addf %682, %685 : vector<8x256xf32>
    %687 = vector.extract_strided_slice %656 {offsets = [0, 7], sizes = [8, 1], strides = [1, 1]} : vector<8x21xf32> to vector<8x1xf32>
    %688 = vector.broadcast %687 : vector<8x1xf32> to vector<8x256xf32>
    %689 = arith.mulf %688, %383 : vector<8x256xf32>
    %690 = arith.addf %686, %689 : vector<8x256xf32>
    %691 = vector.extract_strided_slice %656 {offsets = [0, 8], sizes = [8, 1], strides = [1, 1]} : vector<8x21xf32> to vector<8x1xf32>
    %692 = vector.broadcast %691 : vector<8x1xf32> to vector<8x256xf32>
    %693 = arith.mulf %692, %387 : vector<8x256xf32>
    %694 = arith.addf %690, %693 : vector<8x256xf32>
    %695 = vector.extract_strided_slice %656 {offsets = [0, 9], sizes = [8, 1], strides = [1, 1]} : vector<8x21xf32> to vector<8x1xf32>
    %696 = vector.broadcast %695 : vector<8x1xf32> to vector<8x256xf32>
    %697 = arith.mulf %696, %391 : vector<8x256xf32>
    %698 = arith.addf %694, %697 : vector<8x256xf32>
    %699 = vector.extract_strided_slice %656 {offsets = [0, 10], sizes = [8, 1], strides = [1, 1]} : vector<8x21xf32> to vector<8x1xf32>
    %700 = vector.broadcast %699 : vector<8x1xf32> to vector<8x256xf32>
    %701 = arith.mulf %700, %308 : vector<8x256xf32>
    %702 = arith.addf %698, %701 : vector<8x256xf32>
    %703 = vector.extract_strided_slice %656 {offsets = [0, 11], sizes = [8, 1], strides = [1, 1]} : vector<8x21xf32> to vector<8x1xf32>
    %704 = vector.broadcast %703 : vector<8x1xf32> to vector<8x256xf32>
    %705 = arith.mulf %704, %395 : vector<8x256xf32>
    %706 = arith.addf %702, %705 : vector<8x256xf32>
    %707 = vector.extract_strided_slice %656 {offsets = [0, 12], sizes = [8, 1], strides = [1, 1]} : vector<8x21xf32> to vector<8x1xf32>
    %708 = vector.broadcast %707 : vector<8x1xf32> to vector<8x256xf32>
    %709 = arith.mulf %708, %399 : vector<8x256xf32>
    %710 = arith.addf %706, %709 : vector<8x256xf32>
    %711 = vector.extract_strided_slice %656 {offsets = [0, 13], sizes = [8, 1], strides = [1, 1]} : vector<8x21xf32> to vector<8x1xf32>
    %712 = vector.broadcast %711 : vector<8x1xf32> to vector<8x256xf32>
    %713 = arith.mulf %712, %403 : vector<8x256xf32>
    %714 = arith.addf %710, %713 : vector<8x256xf32>
    %715 = vector.extract_strided_slice %656 {offsets = [0, 14], sizes = [8, 1], strides = [1, 1]} : vector<8x21xf32> to vector<8x1xf32>
    %716 = vector.broadcast %715 : vector<8x1xf32> to vector<8x256xf32>
    %717 = arith.mulf %716, %407 : vector<8x256xf32>
    %718 = arith.addf %714, %717 : vector<8x256xf32>
    %719 = vector.extract_strided_slice %656 {offsets = [0, 15], sizes = [8, 1], strides = [1, 1]} : vector<8x21xf32> to vector<8x1xf32>
    %720 = vector.broadcast %719 : vector<8x1xf32> to vector<8x256xf32>
    %721 = arith.mulf %720, %411 : vector<8x256xf32>
    %722 = arith.addf %718, %721 : vector<8x256xf32>
    %723 = vector.extract_strided_slice %656 {offsets = [0, 16], sizes = [8, 1], strides = [1, 1]} : vector<8x21xf32> to vector<8x1xf32>
    %724 = vector.broadcast %723 : vector<8x1xf32> to vector<8x256xf32>
    %725 = arith.mulf %724, %415 : vector<8x256xf32>
    %726 = arith.addf %722, %725 : vector<8x256xf32>
    %727 = vector.extract_strided_slice %656 {offsets = [0, 17], sizes = [8, 1], strides = [1, 1]} : vector<8x21xf32> to vector<8x1xf32>
    %728 = vector.broadcast %727 : vector<8x1xf32> to vector<8x256xf32>
    %729 = arith.mulf %728, %419 : vector<8x256xf32>
    %730 = arith.addf %726, %729 : vector<8x256xf32>
    %731 = vector.extract_strided_slice %656 {offsets = [0, 18], sizes = [8, 1], strides = [1, 1]} : vector<8x21xf32> to vector<8x1xf32>
    %732 = vector.broadcast %731 : vector<8x1xf32> to vector<8x256xf32>
    %733 = arith.mulf %732, %423 : vector<8x256xf32>
    %734 = arith.addf %730, %733 : vector<8x256xf32>
    %735 = vector.extract_strided_slice %656 {offsets = [0, 19], sizes = [8, 1], strides = [1, 1]} : vector<8x21xf32> to vector<8x1xf32>
    %736 = vector.broadcast %735 : vector<8x1xf32> to vector<8x256xf32>
    %737 = arith.mulf %736, %427 : vector<8x256xf32>
    %738 = arith.addf %734, %737 : vector<8x256xf32>
    %739 = vector.extract_strided_slice %656 {offsets = [0, 20], sizes = [8, 1], strides = [1, 1]} : vector<8x21xf32> to vector<8x1xf32>
    %740 = vector.broadcast %739 : vector<8x1xf32> to vector<8x256xf32>
    %741 = arith.mulf %740, %431 : vector<8x256xf32>
    %742 = arith.addf %738, %741 : vector<8x256xf32>
    %743 = vector.extract_strided_slice %4 {offsets = [0, 82], sizes = [8, 21], strides = [1, 1]} : vector<8x103xf32> to vector<8x21xf32>
    %744 = vector.extract_strided_slice %3 {offsets = [0, 10], sizes = [8, 1], strides = [1, 1]} : vector<8x11xf32> to vector<8x1xf32>
    %cst_64 = arith.constant 0.000000e+00 : f32
    %745 = vector.broadcast %cst_64 : f32 to vector<8x256xf32>
    %c160_i32 = arith.constant 160 : i32
    %746 = tpu.dynamic_rotate %742 by %c160_i32 dim 1 : vector<8x256xf32>, i32 -> vector<8x256xf32>
    %747 = vector.extract_strided_slice %6 {offsets = [0, 0], sizes = [1, 256], strides = [1, 1]} : vector<21x256xf32> to vector<1x256xf32>
    %748 = vector.broadcast %747 : vector<1x256xf32> to vector<8x256xf32>
    %749 = arith.mulf %746, %748 : vector<8x256xf32>
    %750 = vector.extract_strided_slice %743 {offsets = [0, 0], sizes = [8, 1], strides = [1, 1]} : vector<8x21xf32> to vector<8x1xf32>
    %751 = vector.broadcast %750 : vector<8x1xf32> to vector<8x256xf32>
    %752 = arith.mulf %751, %749 : vector<8x256xf32>
    %753 = arith.addf %745, %752 : vector<8x256xf32>
    %c144_i32 = arith.constant 144 : i32
    %754 = tpu.dynamic_rotate %742 by %c144_i32 dim 1 : vector<8x256xf32>, i32 -> vector<8x256xf32>
    %755 = vector.extract_strided_slice %6 {offsets = [1, 0], sizes = [1, 256], strides = [1, 1]} : vector<21x256xf32> to vector<1x256xf32>
    %756 = vector.broadcast %755 : vector<1x256xf32> to vector<8x256xf32>
    %757 = arith.mulf %754, %756 : vector<8x256xf32>
    %758 = vector.extract_strided_slice %743 {offsets = [0, 1], sizes = [8, 1], strides = [1, 1]} : vector<8x21xf32> to vector<8x1xf32>
    %759 = vector.broadcast %758 : vector<8x1xf32> to vector<8x256xf32>
    %760 = arith.mulf %759, %757 : vector<8x256xf32>
    %761 = arith.addf %753, %760 : vector<8x256xf32>
    %c128_i32 = arith.constant 128 : i32
    %762 = tpu.dynamic_rotate %742 by %c128_i32 dim 1 : vector<8x256xf32>, i32 -> vector<8x256xf32>
    %763 = vector.extract_strided_slice %6 {offsets = [2, 0], sizes = [1, 256], strides = [1, 1]} : vector<21x256xf32> to vector<1x256xf32>
    %764 = vector.broadcast %763 : vector<1x256xf32> to vector<8x256xf32>
    %765 = arith.mulf %762, %764 : vector<8x256xf32>
    %766 = vector.extract_strided_slice %743 {offsets = [0, 2], sizes = [8, 1], strides = [1, 1]} : vector<8x21xf32> to vector<8x1xf32>
    %767 = vector.broadcast %766 : vector<8x1xf32> to vector<8x256xf32>
    %768 = arith.mulf %767, %765 : vector<8x256xf32>
    %769 = arith.addf %761, %768 : vector<8x256xf32>
    %c112_i32 = arith.constant 112 : i32
    %770 = tpu.dynamic_rotate %742 by %c112_i32 dim 1 : vector<8x256xf32>, i32 -> vector<8x256xf32>
    %771 = vector.extract_strided_slice %6 {offsets = [3, 0], sizes = [1, 256], strides = [1, 1]} : vector<21x256xf32> to vector<1x256xf32>
    %772 = vector.broadcast %771 : vector<1x256xf32> to vector<8x256xf32>
    %773 = arith.mulf %770, %772 : vector<8x256xf32>
    %774 = vector.extract_strided_slice %743 {offsets = [0, 3], sizes = [8, 1], strides = [1, 1]} : vector<8x21xf32> to vector<8x1xf32>
    %775 = vector.broadcast %774 : vector<8x1xf32> to vector<8x256xf32>
    %776 = arith.mulf %775, %773 : vector<8x256xf32>
    %777 = arith.addf %769, %776 : vector<8x256xf32>
    %c96_i32 = arith.constant 96 : i32
    %778 = tpu.dynamic_rotate %742 by %c96_i32 dim 1 : vector<8x256xf32>, i32 -> vector<8x256xf32>
    %779 = vector.extract_strided_slice %6 {offsets = [4, 0], sizes = [1, 256], strides = [1, 1]} : vector<21x256xf32> to vector<1x256xf32>
    %780 = vector.broadcast %779 : vector<1x256xf32> to vector<8x256xf32>
    %781 = arith.mulf %778, %780 : vector<8x256xf32>
    %782 = vector.extract_strided_slice %743 {offsets = [0, 4], sizes = [8, 1], strides = [1, 1]} : vector<8x21xf32> to vector<8x1xf32>
    %783 = vector.broadcast %782 : vector<8x1xf32> to vector<8x256xf32>
    %784 = arith.mulf %783, %781 : vector<8x256xf32>
    %785 = arith.addf %777, %784 : vector<8x256xf32>
    %c80_i32_65 = arith.constant 80 : i32
    %786 = tpu.dynamic_rotate %742 by %c80_i32_65 dim 1 : vector<8x256xf32>, i32 -> vector<8x256xf32>
    %787 = vector.extract_strided_slice %6 {offsets = [5, 0], sizes = [1, 256], strides = [1, 1]} : vector<21x256xf32> to vector<1x256xf32>
    %788 = vector.broadcast %787 : vector<1x256xf32> to vector<8x256xf32>
    %789 = arith.mulf %786, %788 : vector<8x256xf32>
    %790 = vector.extract_strided_slice %743 {offsets = [0, 5], sizes = [8, 1], strides = [1, 1]} : vector<8x21xf32> to vector<8x1xf32>
    %791 = vector.broadcast %790 : vector<8x1xf32> to vector<8x256xf32>
    %792 = arith.mulf %791, %789 : vector<8x256xf32>
    %793 = arith.addf %785, %792 : vector<8x256xf32>
    %c64_i32_66 = arith.constant 64 : i32
    %794 = tpu.dynamic_rotate %742 by %c64_i32_66 dim 1 : vector<8x256xf32>, i32 -> vector<8x256xf32>
    %795 = vector.extract_strided_slice %6 {offsets = [6, 0], sizes = [1, 256], strides = [1, 1]} : vector<21x256xf32> to vector<1x256xf32>
    %796 = vector.broadcast %795 : vector<1x256xf32> to vector<8x256xf32>
    %797 = arith.mulf %794, %796 : vector<8x256xf32>
    %798 = vector.extract_strided_slice %743 {offsets = [0, 6], sizes = [8, 1], strides = [1, 1]} : vector<8x21xf32> to vector<8x1xf32>
    %799 = vector.broadcast %798 : vector<8x1xf32> to vector<8x256xf32>
    %800 = arith.mulf %799, %797 : vector<8x256xf32>
    %801 = arith.addf %793, %800 : vector<8x256xf32>
    %c48_i32_67 = arith.constant 48 : i32
    %802 = tpu.dynamic_rotate %742 by %c48_i32_67 dim 1 : vector<8x256xf32>, i32 -> vector<8x256xf32>
    %803 = vector.extract_strided_slice %6 {offsets = [7, 0], sizes = [1, 256], strides = [1, 1]} : vector<21x256xf32> to vector<1x256xf32>
    %804 = vector.broadcast %803 : vector<1x256xf32> to vector<8x256xf32>
    %805 = arith.mulf %802, %804 : vector<8x256xf32>
    %806 = vector.extract_strided_slice %743 {offsets = [0, 7], sizes = [8, 1], strides = [1, 1]} : vector<8x21xf32> to vector<8x1xf32>
    %807 = vector.broadcast %806 : vector<8x1xf32> to vector<8x256xf32>
    %808 = arith.mulf %807, %805 : vector<8x256xf32>
    %809 = arith.addf %801, %808 : vector<8x256xf32>
    %c32_i32_68 = arith.constant 32 : i32
    %810 = tpu.dynamic_rotate %742 by %c32_i32_68 dim 1 : vector<8x256xf32>, i32 -> vector<8x256xf32>
    %811 = vector.extract_strided_slice %6 {offsets = [8, 0], sizes = [1, 256], strides = [1, 1]} : vector<21x256xf32> to vector<1x256xf32>
    %812 = vector.broadcast %811 : vector<1x256xf32> to vector<8x256xf32>
    %813 = arith.mulf %810, %812 : vector<8x256xf32>
    %814 = vector.extract_strided_slice %743 {offsets = [0, 8], sizes = [8, 1], strides = [1, 1]} : vector<8x21xf32> to vector<8x1xf32>
    %815 = vector.broadcast %814 : vector<8x1xf32> to vector<8x256xf32>
    %816 = arith.mulf %815, %813 : vector<8x256xf32>
    %817 = arith.addf %809, %816 : vector<8x256xf32>
    %c16_i32_69 = arith.constant 16 : i32
    %818 = tpu.dynamic_rotate %742 by %c16_i32_69 dim 1 : vector<8x256xf32>, i32 -> vector<8x256xf32>
    %819 = vector.extract_strided_slice %6 {offsets = [9, 0], sizes = [1, 256], strides = [1, 1]} : vector<21x256xf32> to vector<1x256xf32>
    %820 = vector.broadcast %819 : vector<1x256xf32> to vector<8x256xf32>
    %821 = arith.mulf %818, %820 : vector<8x256xf32>
    %822 = vector.extract_strided_slice %743 {offsets = [0, 9], sizes = [8, 1], strides = [1, 1]} : vector<8x21xf32> to vector<8x1xf32>
    %823 = vector.broadcast %822 : vector<8x1xf32> to vector<8x256xf32>
    %824 = arith.mulf %823, %821 : vector<8x256xf32>
    %825 = arith.addf %817, %824 : vector<8x256xf32>
    %826 = vector.extract_strided_slice %743 {offsets = [0, 10], sizes = [8, 1], strides = [1, 1]} : vector<8x21xf32> to vector<8x1xf32>
    %827 = vector.broadcast %826 : vector<8x1xf32> to vector<8x256xf32>
    %828 = arith.mulf %827, %742 : vector<8x256xf32>
    %829 = arith.addf %825, %828 : vector<8x256xf32>
    %c240_i32_70 = arith.constant 240 : i32
    %830 = tpu.dynamic_rotate %742 by %c240_i32_70 dim 1 : vector<8x256xf32>, i32 -> vector<8x256xf32>
    %831 = vector.extract_strided_slice %6 {offsets = [11, 0], sizes = [1, 256], strides = [1, 1]} : vector<21x256xf32> to vector<1x256xf32>
    %832 = vector.broadcast %831 : vector<1x256xf32> to vector<8x256xf32>
    %833 = arith.mulf %830, %832 : vector<8x256xf32>
    %834 = vector.extract_strided_slice %743 {offsets = [0, 11], sizes = [8, 1], strides = [1, 1]} : vector<8x21xf32> to vector<8x1xf32>
    %835 = vector.broadcast %834 : vector<8x1xf32> to vector<8x256xf32>
    %836 = arith.mulf %835, %833 : vector<8x256xf32>
    %837 = arith.addf %829, %836 : vector<8x256xf32>
    %c224_i32_71 = arith.constant 224 : i32
    %838 = tpu.dynamic_rotate %742 by %c224_i32_71 dim 1 : vector<8x256xf32>, i32 -> vector<8x256xf32>
    %839 = vector.extract_strided_slice %6 {offsets = [12, 0], sizes = [1, 256], strides = [1, 1]} : vector<21x256xf32> to vector<1x256xf32>
    %840 = vector.broadcast %839 : vector<1x256xf32> to vector<8x256xf32>
    %841 = arith.mulf %838, %840 : vector<8x256xf32>
    %842 = vector.extract_strided_slice %743 {offsets = [0, 12], sizes = [8, 1], strides = [1, 1]} : vector<8x21xf32> to vector<8x1xf32>
    %843 = vector.broadcast %842 : vector<8x1xf32> to vector<8x256xf32>
    %844 = arith.mulf %843, %841 : vector<8x256xf32>
    %845 = arith.addf %837, %844 : vector<8x256xf32>
    %c208_i32_72 = arith.constant 208 : i32
    %846 = tpu.dynamic_rotate %742 by %c208_i32_72 dim 1 : vector<8x256xf32>, i32 -> vector<8x256xf32>
    %847 = vector.extract_strided_slice %6 {offsets = [13, 0], sizes = [1, 256], strides = [1, 1]} : vector<21x256xf32> to vector<1x256xf32>
    %848 = vector.broadcast %847 : vector<1x256xf32> to vector<8x256xf32>
    %849 = arith.mulf %846, %848 : vector<8x256xf32>
    %850 = vector.extract_strided_slice %743 {offsets = [0, 13], sizes = [8, 1], strides = [1, 1]} : vector<8x21xf32> to vector<8x1xf32>
    %851 = vector.broadcast %850 : vector<8x1xf32> to vector<8x256xf32>
    %852 = arith.mulf %851, %849 : vector<8x256xf32>
    %853 = arith.addf %845, %852 : vector<8x256xf32>
    %c192_i32_73 = arith.constant 192 : i32
    %854 = tpu.dynamic_rotate %742 by %c192_i32_73 dim 1 : vector<8x256xf32>, i32 -> vector<8x256xf32>
    %855 = vector.extract_strided_slice %6 {offsets = [14, 0], sizes = [1, 256], strides = [1, 1]} : vector<21x256xf32> to vector<1x256xf32>
    %856 = vector.broadcast %855 : vector<1x256xf32> to vector<8x256xf32>
    %857 = arith.mulf %854, %856 : vector<8x256xf32>
    %858 = vector.extract_strided_slice %743 {offsets = [0, 14], sizes = [8, 1], strides = [1, 1]} : vector<8x21xf32> to vector<8x1xf32>
    %859 = vector.broadcast %858 : vector<8x1xf32> to vector<8x256xf32>
    %860 = arith.mulf %859, %857 : vector<8x256xf32>
    %861 = arith.addf %853, %860 : vector<8x256xf32>
    %c176_i32_74 = arith.constant 176 : i32
    %862 = tpu.dynamic_rotate %742 by %c176_i32_74 dim 1 : vector<8x256xf32>, i32 -> vector<8x256xf32>
    %863 = vector.extract_strided_slice %6 {offsets = [15, 0], sizes = [1, 256], strides = [1, 1]} : vector<21x256xf32> to vector<1x256xf32>
    %864 = vector.broadcast %863 : vector<1x256xf32> to vector<8x256xf32>
    %865 = arith.mulf %862, %864 : vector<8x256xf32>
    %866 = vector.extract_strided_slice %743 {offsets = [0, 15], sizes = [8, 1], strides = [1, 1]} : vector<8x21xf32> to vector<8x1xf32>
    %867 = vector.broadcast %866 : vector<8x1xf32> to vector<8x256xf32>
    %868 = arith.mulf %867, %865 : vector<8x256xf32>
    %869 = arith.addf %861, %868 : vector<8x256xf32>
    %c160_i32_75 = arith.constant 160 : i32
    %870 = tpu.dynamic_rotate %742 by %c160_i32_75 dim 1 : vector<8x256xf32>, i32 -> vector<8x256xf32>
    %871 = vector.extract_strided_slice %6 {offsets = [16, 0], sizes = [1, 256], strides = [1, 1]} : vector<21x256xf32> to vector<1x256xf32>
    %872 = vector.broadcast %871 : vector<1x256xf32> to vector<8x256xf32>
    %873 = arith.mulf %870, %872 : vector<8x256xf32>
    %874 = vector.extract_strided_slice %743 {offsets = [0, 16], sizes = [8, 1], strides = [1, 1]} : vector<8x21xf32> to vector<8x1xf32>
    %875 = vector.broadcast %874 : vector<8x1xf32> to vector<8x256xf32>
    %876 = arith.mulf %875, %873 : vector<8x256xf32>
    %877 = arith.addf %869, %876 : vector<8x256xf32>
    %c144_i32_76 = arith.constant 144 : i32
    %878 = tpu.dynamic_rotate %742 by %c144_i32_76 dim 1 : vector<8x256xf32>, i32 -> vector<8x256xf32>
    %879 = vector.extract_strided_slice %6 {offsets = [17, 0], sizes = [1, 256], strides = [1, 1]} : vector<21x256xf32> to vector<1x256xf32>
    %880 = vector.broadcast %879 : vector<1x256xf32> to vector<8x256xf32>
    %881 = arith.mulf %878, %880 : vector<8x256xf32>
    %882 = vector.extract_strided_slice %743 {offsets = [0, 17], sizes = [8, 1], strides = [1, 1]} : vector<8x21xf32> to vector<8x1xf32>
    %883 = vector.broadcast %882 : vector<8x1xf32> to vector<8x256xf32>
    %884 = arith.mulf %883, %881 : vector<8x256xf32>
    %885 = arith.addf %877, %884 : vector<8x256xf32>
    %c128_i32_77 = arith.constant 128 : i32
    %886 = tpu.dynamic_rotate %742 by %c128_i32_77 dim 1 : vector<8x256xf32>, i32 -> vector<8x256xf32>
    %887 = vector.extract_strided_slice %6 {offsets = [18, 0], sizes = [1, 256], strides = [1, 1]} : vector<21x256xf32> to vector<1x256xf32>
    %888 = vector.broadcast %887 : vector<1x256xf32> to vector<8x256xf32>
    %889 = arith.mulf %886, %888 : vector<8x256xf32>
    %890 = vector.extract_strided_slice %743 {offsets = [0, 18], sizes = [8, 1], strides = [1, 1]} : vector<8x21xf32> to vector<8x1xf32>
    %891 = vector.broadcast %890 : vector<8x1xf32> to vector<8x256xf32>
    %892 = arith.mulf %891, %889 : vector<8x256xf32>
    %893 = arith.addf %885, %892 : vector<8x256xf32>
    %c112_i32_78 = arith.constant 112 : i32
    %894 = tpu.dynamic_rotate %742 by %c112_i32_78 dim 1 : vector<8x256xf32>, i32 -> vector<8x256xf32>
    %895 = vector.extract_strided_slice %6 {offsets = [19, 0], sizes = [1, 256], strides = [1, 1]} : vector<21x256xf32> to vector<1x256xf32>
    %896 = vector.broadcast %895 : vector<1x256xf32> to vector<8x256xf32>
    %897 = arith.mulf %894, %896 : vector<8x256xf32>
    %898 = vector.extract_strided_slice %743 {offsets = [0, 19], sizes = [8, 1], strides = [1, 1]} : vector<8x21xf32> to vector<8x1xf32>
    %899 = vector.broadcast %898 : vector<8x1xf32> to vector<8x256xf32>
    %900 = arith.mulf %899, %897 : vector<8x256xf32>
    %901 = arith.addf %893, %900 : vector<8x256xf32>
    %c96_i32_79 = arith.constant 96 : i32
    %902 = tpu.dynamic_rotate %742 by %c96_i32_79 dim 1 : vector<8x256xf32>, i32 -> vector<8x256xf32>
    %903 = vector.extract_strided_slice %6 {offsets = [20, 0], sizes = [1, 256], strides = [1, 1]} : vector<21x256xf32> to vector<1x256xf32>
    %904 = vector.broadcast %903 : vector<1x256xf32> to vector<8x256xf32>
    %905 = arith.mulf %902, %904 : vector<8x256xf32>
    %906 = vector.extract_strided_slice %743 {offsets = [0, 20], sizes = [8, 1], strides = [1, 1]} : vector<8x21xf32> to vector<8x1xf32>
    %907 = vector.broadcast %906 : vector<8x1xf32> to vector<8x256xf32>
    %908 = arith.mulf %907, %905 : vector<8x256xf32>
    %909 = arith.addf %901, %908 : vector<8x256xf32>
    %910 = vector.broadcast %744 : vector<8x1xf32> to vector<8x256xf32>
    %911 = arith.addf %909, %910 : vector<8x256xf32>
    %912 = arith.addf %308, %351 : vector<8x256xf32>
    %913 = arith.addf %912, %519 : vector<8x256xf32>
    %914 = arith.addf %913, %655 : vector<8x256xf32>
    %915 = arith.addf %914, %911 : vector<8x256xf32>
    %916 = vector.extract_strided_slice %2 {offsets = [0, 24], sizes = [8, 8], strides = [1, 1]} : vector<8x32xf32> to vector<8x8xf32>
    %cst_80 = arith.constant dense<0.000000e+00> : vector<8x256xf32>
    %917 = tpu.matmul %916, %915, %cst_80 {dimension_numbers = #tpu.dot_dimension_numbers<[1], [0], [0], [1], [0, 0, 1, 1], [], []>} : vector<8x8xf32>, vector<8x256xf32>, vector<8x256xf32> -> vector<8x256xf32>
    %918 = vector.extract_strided_slice %3 {offsets = [0, 3], sizes = [8, 1], strides = [1, 1]} : vector<8x11xf32> to vector<8x1xf32>
    %919 = vector.broadcast %918 : vector<8x1xf32> to vector<8x256xf32>
    %920 = arith.addf %917, %919 : vector<8x256xf32>
    %921 = arith.mulf %920, %52 : vector<8x256xf32>
    %922 = vector.extract_strided_slice %2 {offsets = [0, 8], sizes = [8, 8], strides = [1, 1]} : vector<8x32xf32> to vector<8x8xf32>
    %cst_81 = arith.constant dense<0.000000e+00> : vector<8x256xf32>
    %923 = tpu.matmul %922, %921, %cst_81 {dimension_numbers = #tpu.dot_dimension_numbers<[1], [0], [0], [1], [0, 0, 1, 1], [], []>} : vector<8x8xf32>, vector<8x256xf32>, vector<8x256xf32> -> vector<8x256xf32>
    %924 = vector.extract_strided_slice %3 {offsets = [0, 1], sizes = [8, 1], strides = [1, 1]} : vector<8x11xf32> to vector<8x1xf32>
    %925 = vector.broadcast %924 : vector<8x1xf32> to vector<8x256xf32>
    %926 = arith.addf %923, %925 : vector<8x256xf32>
    %927 = arith.addf %926, %1 : vector<8x256xf32>
    %c0_82 = arith.constant 0 : index
    %c0_83 = arith.constant 0 : index
    %c0_84 = arith.constant 0 : index
    %928 = vector.load %arg10[%c0_82, %c0_83, %c0_84] : memref<1x8x256xf32, #tpu.memory_space<vmem>>, vector<1x8x256xf32>
    %929 = vector.shape_cast %928 : vector<1x8x256xf32> to vector<8x256xf32>
    %930 = vector.shape_cast %927 : vector<8x256xf32> to vector<1x8x256xf32>
    tpu.vector_store %arg10[%c0_82, %c0_83, %c0_84], %930 {strides = array<i32>} : memref<1x8x256xf32, #tpu.memory_space<vmem>>, vector<1x8x256xf32>,
    return
  }
  func.func @transform_0(%arg0: i32) -> (i32, i32, i32) {
    %c0_i32 = arith.constant 0 : i32
    %c0_i32_0 = arith.constant 0 : i32
    %c0_i32_1 = arith.constant 0 : i32
    return %arg0, %c0_i32, %c0_i32_0 : i32, i32, i32
  }
  func.func @transform_1(%arg0: i32) -> (i32, i32) {
    %c0_i32 = arith.constant 0 : i32
    %c0_i32_0 = arith.constant 0 : i32
    %c0_i32_1 = arith.constant 0 : i32
    return %c0_i32, %c0_i32_0 : i32, i32
  }
  func.func @transform_2(%arg0: i32) -> (i32, i32) {
    %c0_i32 = arith.constant 0 : i32
    %c0_i32_0 = arith.constant 0 : i32
    %c0_i32_1 = arith.constant 0 : i32
    return %c0_i32, %c0_i32_0 : i32, i32
  }
  func.func @transform_3(%arg0: i32) -> (i32, i32) {
    %c0_i32 = arith.constant 0 : i32
    %c0_i32_0 = arith.constant 0 : i32
    %c0_i32_1 = arith.constant 0 : i32
    return %c0_i32, %c0_i32_0 : i32, i32
  }
  func.func @transform_4(%arg0: i32) -> (i32, i32) {
    %c0_i32 = arith.constant 0 : i32
    %c0_i32_0 = arith.constant 0 : i32
    %c0_i32_1 = arith.constant 0 : i32
    return %c0_i32, %c0_i32_0 : i32, i32
  }
  func.func @transform_5(%arg0: i32) -> (i32, i32) {
    %c0_i32 = arith.constant 0 : i32
    %c0_i32_0 = arith.constant 0 : i32
    %c0_i32_1 = arith.constant 0 : i32
    return %c0_i32, %c0_i32_0 : i32, i32
  }
  func.func @transform_6(%arg0: i32) -> (i32, i32) {
    %c0_i32 = arith.constant 0 : i32
    %c0_i32_0 = arith.constant 0 : i32
    %c0_i32_1 = arith.constant 0 : i32
    return %c0_i32, %c0_i32_0 : i32, i32
  }
  func.func @transform_7(%arg0: i32) -> (i32, i32) {
    %c0_i32 = arith.constant 0 : i32
    %c0_i32_0 = arith.constant 0 : i32
    %c0_i32_1 = arith.constant 0 : i32
    return %c0_i32, %c0_i32_0 : i32, i32
  }
  func.func @transform_8(%arg0: i32) -> (i32, i32) {
    %c0_i32 = arith.constant 0 : i32
    %c0_i32_0 = arith.constant 0 : i32
    %c0_i32_1 = arith.constant 0 : i32
    return %c0_i32, %c0_i32_0 : i32, i32
  }
  func.func @transform_9(%arg0: i32) -> (i32, i32, i32) {
    %c0_i32 = arith.constant 0 : i32
    %c0_i32_0 = arith.constant 0 : i32
    %c0_i32_1 = arith.constant 0 : i32
    return %arg0, %c0_i32, %c0_i32_0 : i32, i32, i32
  }
}

</mosaic_0001>

<llo_original>
// kernel: tpu_custom_call.1
$region0: #{tpu_custom_call.1}
  #allocation0 [shape = 'u32[]', space=smem, size = 0x4, offset = 0x4, fixed_abs, tag = 'smem constant byte address 0x4 - core index']
  #allocation1 [shape = 'u32[144,128]{1,0:T(1,128)}', space=vmem, size = 0x12000, scoped, tag = 'internal scratch']
  %s0 = inlined_call_operand.hbm [shape: f32[1,8,256], index: 0, kind: input, shape index: {}]
  %s1 = inlined_call_operand.hbm [shape: f32[8,32], index: 1, kind: input, shape index: {}]
  %s2 = inlined_call_operand.hbm [shape: f32[8,11], index: 2, kind: input, shape index: {}]
  %s3 = inlined_call_operand.hbm [shape: f32[8,103], index: 3, kind: input, shape index: {}]
  %s4 = inlined_call_operand.hbm [shape: f32[8,72], index: 4, kind: input, shape index: {}]
  %s5 = inlined_call_operand.hbm [shape: f32[256,1024], index: 5, kind: input, shape index: {}]
  %s6 = inlined_call_operand.hbm [shape: f32[256,1024], index: 6, kind: input, shape index: {}]
  %s7 = inlined_call_operand.hbm [shape: f32[21,256], index: 7, kind: input, shape index: {}]
  %s8 = inlined_call_operand.hbm [shape: f32[21,256], index: 8, kind: input, shape index: {}]
  %s9 = inlined_call_operand.hbm [shape: f32[1,8,256], index: 9, kind: output, shape index: {}]
  %s10 = sld [smem:[#allocation0]]
  $region82: #{tpu_custom_call.1} parent=0
    _
  %s12 = ssub.s32 1, %s10
  %s13 = scalar_select 0, %s12, %s10
  $region1: #{tpu_custom_call.1} parent=0
    #allocation2 [shape = 'u8[8192]{0}', space=vmem, size = 0x2000, scoped, tag = 'input window, operand 0, single buffered']
    #allocation3 [shape = 's32[1]{0}', space=sflag, size = 0x4, scoped, tag = 'scoped memory for tpu_custom_call.1']
    #allocation4 [shape = 's32[1]{0}', space=sflag, size = 0x4, scoped, tag = 'scoped memory for tpu_custom_call.1']
    #allocation5 [shape = 'u8[4096]{0}', space=vmem, size = 0x1000, scoped, tag = 'input window, operand 1, single buffered']
    #allocation6 [shape = 's32[1]{0}', space=sflag, size = 0x4, scoped, tag = 'scoped memory for tpu_custom_call.1']
    #allocation7 [shape = 'u8[4096]{0}', space=vmem, size = 0x1000, scoped, tag = 'input window, operand 2, single buffered']
    #allocation8 [shape = 'u8[4096]{0}', space=vmem, size = 0x1000, scoped, tag = 'input window, operand 3, single buffered']
    #allocation9 [shape = 's32[1]{0}', space=sflag, size = 0x4, scoped, tag = 'scoped memory for tpu_custom_call.1']
    #allocation10 [shape = 'u8[4096]{0}', space=vmem, size = 0x1000, scoped, tag = 'input window, operand 4, single buffered']
    #allocation11 [shape = 'u8[1048576]{0}', space=vmem, size = 0x100000, scoped, tag = 'input window, operand 5, single buffered']
    #allocation12 [shape = 's32[1]{0}', space=sflag, size = 0x4, scoped, tag = 'scoped memory for tpu_custom_call.1']
    #allocation13 [shape = 'u8[1048576]{0}', space=vmem, size = 0x100000, scoped, tag = 'input window, operand 6, single buffered']
    #allocation14 [shape = 'u8[24576]{0}', space=vmem, size = 0x6000, scoped, tag = 'input window, operand 7, single buffered']
    #allocation15 [shape = 's32[1]{0}', space=sflag, size = 0x4, scoped, tag = 'scoped memory for tpu_custom_call.1']
    #allocation16 [shape = 'u8[24576]{0}', space=vmem, size = 0x6000, scoped, tag = 'input window, operand 8, single buffered']
    #allocation17 [shape = 'u8[8192]{0}', space=vmem, size = 0x2000, scoped, tag = 'output window, operand 0, single buffered']
    %14 = vsyncpa [#allocation3], 0
    %15 = vsyncpa [#allocation6], 0
    %16 = vsyncpa [#allocation9], 0
    %17 = vsyncpa [#allocation12], 0
    %18 = vsyncpa [#allocation15], 0
    %19 = vsyncpa [#allocation4], 0
    // Predicated region
    $region2: #{tpu_custom_call.1} parent=1 // pred_check
      _
    $region3: #{tpu_custom_call.1} parent=1 // pred_check_branch
      %21 = sbr.rel (0) target = $region5
    $region4: #{tpu_custom_call.1} parent=1 // pred_region
      %s23 = ssub.s32 256, 256
      %24 = vsyncadd [#allocation3], %s23
      %s26 = sshll.u32 [#allocation2], 4
      %s27 = int_to_ptr.vmem [resolvable:$true] %s26
      %29 = dma.hbm_to_vmem [thread:$0]  %s0, 256, %s27, [#allocation3]
    $region5: #{tpu_custom_call.1} parent=1 // pred_fallthru
      _
    // Predicated region
    $region6: #{tpu_custom_call.1} parent=1 // pred_check
      _
    $region7: #{tpu_custom_call.1} parent=1 // pred_check_branch
      %31 = sbr.rel (0) target = $region9
    $region8: #{tpu_custom_call.1} parent=1 // pred_region
      %s33 = ssub.s32 128, 128
      %34 = vsyncadd [#allocation6], %s33
      %s36 = sshll.u32 [#allocation5], 4
      %s37 = int_to_ptr.vmem [resolvable:$true] %s36
      %39 = dma.hbm_to_vmem [thread:$0]  %s1, 128, %s37, [#allocation6]
    $region9: #{tpu_custom_call.1} parent=1 // pred_fallthru
      _
    // Predicated region
    $region10: #{tpu_custom_call.1} parent=1 // pred_check
      _
    $region11: #{tpu_custom_call.1} parent=1 // pred_check_branch
      %41 = sbr.rel (0) target = $region13
    $region12: #{tpu_custom_call.1} parent=1 // pred_region
      %s43 = ssub.s32 128, 128
      %44 = vsyncadd [#allocation6], %s43
      %s46 = sshll.u32 [#allocation7], 4
      %s47 = int_to_ptr.vmem [resolvable:$true] %s46
      %49 = dma.hbm_to_vmem [thread:$0]  %s2, 128, %s47, [#allocation6]
    $region13: #{tpu_custom_call.1} parent=1 // pred_fallthru
      _
    // Predicated region
    $region14: #{tpu_custom_call.1} parent=1 // pred_check
      _
    $region15: #{tpu_custom_call.1} parent=1 // pred_check_branch
      %51 = sbr.rel (0) target = $region17
    $region16: #{tpu_custom_call.1} parent=1 // pred_region
      %s53 = ssub.s32 128, 128
      %54 = vsyncadd [#allocation9], %s53
      %s56 = sshll.u32 [#allocation8], 4
      %s57 = int_to_ptr.vmem [resolvable:$true] %s56
      %59 = dma.hbm_to_vmem [thread:$0]  %s3, 128, %s57, [#allocation9]
    $region17: #{tpu_custom_call.1} parent=1 // pred_fallthru
      _
    // Predicated region
    $region18: #{tpu_custom_call.1} parent=1 // pred_check
      _
    $region19: #{tpu_custom_call.1} parent=1 // pred_check_branch
      %61 = sbr.rel (0) target = $region21
    $region20: #{tpu_custom_call.1} parent=1 // pred_region
      %s63 = ssub.s32 128, 128
      %64 = vsyncadd [#allocation9], %s63
      %s66 = sshll.u32 [#allocation10], 4
      %s67 = int_to_ptr.vmem [resolvable:$true] %s66
      %69 = dma.hbm_to_vmem [thread:$0]  %s4, 128, %s67, [#allocation9]
    $region21: #{tpu_custom_call.1} parent=1 // pred_fallthru
      _
    // Predicated region
    $region22: #{tpu_custom_call.1} parent=1 // pred_check
      _
    $region23: #{tpu_custom_call.1} parent=1 // pred_check_branch
      %71 = sbr.rel (0) target = $region25
    $region24: #{tpu_custom_call.1} parent=1 // pred_region
      %s73 = ssub.s32 32768, 32768
      %74 = vsyncadd [#allocation12], %s73
      %s75 = sshll.u32 [#allocation11], 4
      %s76 = int_to_ptr.vmem [resolvable:$true] %s75
      %81 = dma.hbm_to_vmem [thread:$0]  %s5, 32768, %s76, [#allocation12], 1024, 1024, 64
    $region25: #{tpu_custom_call.1} parent=1 // pred_fallthru
      _
    // Predicated region
    $region26: #{tpu_custom_call.1} parent=1 // pred_check
      _
    $region27: #{tpu_custom_call.1} parent=1 // pred_check_branch
      %83 = sbr.rel (0) target = $region29
    $region28: #{tpu_custom_call.1} parent=1 // pred_region
      %s85 = ssub.s32 32768, 32768
      %86 = vsyncadd [#allocation12], %s85
      %s87 = sshll.u32 [#allocation13], 4
      %s88 = int_to_ptr.vmem [resolvable:$true] %s87
      %93 = dma.hbm_to_vmem [thread:$0]  %s6, 32768, %s88, [#allocation12], 1024, 1024, 64
    $region29: #{tpu_custom_call.1} parent=1 // pred_fallthru
      _
    // Predicated region
    $region30: #{tpu_custom_call.1} parent=1 // pred_check
      _
    $region31: #{tpu_custom_call.1} parent=1 // pred_check_branch
      %95 = sbr.rel (0) target = $region33
    $region32: #{tpu_custom_call.1} parent=1 // pred_region
      %s97 = ssub.s32 768, 768
      %98 = vsyncadd [#allocation15], %s97
      %s99 = sshll.u32 [#allocation14], 4
      %s100 = int_to_ptr.vmem [resolvable:$true] %s99
      %105 = dma.hbm_to_vmem [thread:$0]  %s7, 768, %s100, [#allocation15], 256, 256, 16
    $region33: #{tpu_custom_call.1} parent=1 // pred_fallthru
      _
    // Predicated region
    $region34: #{tpu_custom_call.1} parent=1 // pred_check
      _
    $region35: #{tpu_custom_call.1} parent=1 // pred_check_branch
      %107 = sbr.rel (0) target = $region37
    $region36: #{tpu_custom_call.1} parent=1 // pred_region
      %s109 = ssub.s32 768, 768
      %110 = vsyncadd [#allocation15], %s109
      %s111 = sshll.u32 [#allocation16], 4
      %s112 = int_to_ptr.vmem [resolvable:$true] %s111
      %117 = dma.hbm_to_vmem [thread:$0]  %s8, 768, %s112, [#allocation15], 256, 256, 16
    $region37: #{tpu_custom_call.1} parent=1 // pred_fallthru
      _
    // Predicated region
    $region38: #{tpu_custom_call.1} parent=1 // pred_check
      _
    $region39: #{tpu_custom_call.1} parent=1 // pred_check_branch
      %119 = sbr.rel (0) target = $region41
    $region40: #{tpu_custom_call.1} parent=1 // pred_region
      %120 = dma.done [#allocation3], 256
    $region41: #{tpu_custom_call.1} parent=1 // pred_fallthru
      _
    // Predicated region
    $region42: #{tpu_custom_call.1} parent=1 // pred_check
      _
    $region43: #{tpu_custom_call.1} parent=1 // pred_check_branch
      %122 = sbr.rel (0) target = $region45
    $region44: #{tpu_custom_call.1} parent=1 // pred_region
      %123 = dma.done [#allocation6], 128
    $region45: #{tpu_custom_call.1} parent=1 // pred_fallthru
      _
    // Predicated region
    $region46: #{tpu_custom_call.1} parent=1 // pred_check
      _
    $region47: #{tpu_custom_call.1} parent=1 // pred_check_branch
      %125 = sbr.rel (0) target = $region49
    $region48: #{tpu_custom_call.1} parent=1 // pred_region
      %126 = dma.done [#allocation6], 128
    $region49: #{tpu_custom_call.1} parent=1 // pred_fallthru
      _
    // Predicated region
    $region50: #{tpu_custom_call.1} parent=1 // pred_check
      _
    $region51: #{tpu_custom_call.1} parent=1 // pred_check_branch
      %128 = sbr.rel (0) target = $region53
    $region52: #{tpu_custom_call.1} parent=1 // pred_region
      %129 = dma.done [#allocation9], 128
    $region53: #{tpu_custom_call.1} parent=1 // pred_fallthru
      _
    // Predicated region
    $region54: #{tpu_custom_call.1} parent=1 // pred_check
      _
    $region55: #{tpu_custom_call.1} parent=1 // pred_check_branch
      %131 = sbr.rel (0) target = $region57
    $region56: #{tpu_custom_call.1} parent=1 // pred_region
      %132 = dma.done [#allocation9], 128
    $region57: #{tpu_custom_call.1} parent=1 // pred_fallthru
      _
    // Predicated region
    $region58: #{tpu_custom_call.1} parent=1 // pred_check
      _
    $region59: #{tpu_custom_call.1} parent=1 // pred_check_branch
      %134 = sbr.rel (0) target = $region61
    $region60: #{tpu_custom_call.1} parent=1 // pred_region
      %135 = dma.done [#allocation12], 32768
    $region61: #{tpu_custom_call.1} parent=1 // pred_fallthru
      _
    // Predicated region
    $region62: #{tpu_custom_call.1} parent=1 // pred_check
      _
    $region63: #{tpu_custom_call.1} parent=1 // pred_check_branch
      %137 = sbr.rel (0) target = $region65
    $region64: #{tpu_custom_call.1} parent=1 // pred_region
      %138 = dma.done [#allocation12], 32768
    $region65: #{tpu_custom_call.1} parent=1 // pred_fallthru
      _
    // Predicated region
    $region66: #{tpu_custom_call.1} parent=1 // pred_check
      _
    $region67: #{tpu_custom_call.1} parent=1 // pred_check_branch
      %140 = sbr.rel (0) target = $region69
    $region68: #{tpu_custom_call.1} parent=1 // pred_region
      %141 = dma.done [#allocation15], 768
    $region69: #{tpu_custom_call.1} parent=1 // pred_fallthru
      _
    // Predicated region
    $region70: #{tpu_custom_call.1} parent=1 // pred_check
      _
    $region71: #{tpu_custom_call.1} parent=1 // pred_check_branch
      %143 = sbr.rel (0) target = $region73
    $region72: #{tpu_custom_call.1} parent=1 // pred_region
      %144 = dma.done [#allocation15], 768
    $region73: #{tpu_custom_call.1} parent=1 // pred_fallthru
      _
    %v145 = vld [vmem:[#allocation2] sm:$0xff]
    %v146 = vld [vmem:[#allocation2 + $0x8] sm:$0xff]
    %v147 = vld [vmem:[#allocation5] sm:$0xff]
    %v148 = vld [vmem:[#allocation7] sm:$0xff]
    %v149 = vld [vmem:[#allocation8] sm:$0xff]
    %v150 = vld [vmem:[#allocation14] sm:$0xff]
    %v151 = vld [vmem:[#allocation14 + $0x8] sm:$0xff]
    %v152 = vld [vmem:[#allocation14 + $0x10] sm:$0xff]
    %v153 = vld [vmem:[#allocation14 + $0x18] sm:$0xff]
    %v154 = vld [vmem:[#allocation14 + $0x20] sm:$0x1f]
    %v155 = vld [vmem:[#allocation14 + $0x28] sm:$0x1f]
    %v156 = vld [vmem:[#allocation16] sm:$0xff]
    %v157 = vld [vmem:[#allocation16 + $0x8] sm:$0xff]
    %v158 = vld [vmem:[#allocation16 + $0x10] sm:$0xff]
    %v159 = vld [vmem:[#allocation16 + $0x18] sm:$0xff]
    %v160 = vld [vmem:[#allocation16 + $0x20] sm:$0x1f]
    %v161 = vld [vmem:[#allocation16 + $0x28] sm:$0x1f]
    %163 = vset.pattern.permute.xlu0 0
    %164 = vperm.xlu0 %163, %v148
    %v165 = vpop.permute.xlu0 %164
    %vm167 = vcmask 64512
    %v169 = vsel %vm167, %v147, 0
    %171 = vmatprep.subr.mxu0 0.0
    %172 = vmatpush1.msra.mxu0 0.0
    %173 = vmatprep.subr.mxu0 0.0
    %174 = vmatpush1.msra.mxu0 0.0
    %175 = vmatprep.subr.mxu0 0.0
    %176 = vmatpush1.msra.mxu0 0.0
    %177 = vmatprep.subr.mxu0 0.0
    %178 = vmatpush1.msra.mxu0 0.0
    %179 = vmatprep.subr.mxu0 0.0
    %180 = vmatpush1.msra.mxu0 0.0
    %181 = vmatprep.subr.mxu0 0.0
    %182 = vmatpush1.msra.mxu0 0.0
    %183 = vmatprep.subr.mxu0 0.0
    %184 = vmatpush1.msra.mxu0 0.0
    %185 = vmatprep.subr.mxu0 0.0
    %186 = vmatpush1.msra.mxu0 0.0
    %187 = vmatprep.subr.mxu0 0.0
    %188 = vmatpush1.msra.mxu0 0.0
    %189 = vmatprep.subr.mxu0 0.0
    %190 = vmatpush1.msra.mxu0 0.0
    %191 = vmatprep.subr.mxu0 0.0
    %192 = vmatpush1.msra.mxu0 0.0
    %193 = vmatprep.subr.mxu0 0.0
    %194 = vmatpush1.msra.mxu0 0.0
    %195 = vmatprep.subr.mxu0 0.0
    %196 = vmatpush1.msra.mxu0 0.0
    %197 = vmatprep.subr.mxu0 0.0
    %198 = vmatpush1.msra.mxu0 0.0
    %199 = vmatprep.subr.mxu0 0.0
    %200 = vmatpush1.msra.mxu0 0.0
    %201 = vmatprep.subr.mxu0 %v146
    %202 = vmatpush1.msra.mxu0 %v145
    %203 = vmatprep.subr.mxu0 0.0
    %204 = vmatpush2.msra.mxu0 0.0
    %205 = vmatprep.subr.mxu0 0.0
    %206 = vmatpush2.msra.mxu0 0.0
    %207 = vmatprep.subr.mxu0 0.0
    %208 = vmatpush2.msra.mxu0 0.0
    %209 = vmatprep.subr.mxu0 0.0
    %210 = vmatpush2.msra.mxu0 0.0
    %211 = vmatprep.subr.mxu0 0.0
    %212 = vmatpush2.msra.mxu0 0.0
    %213 = vmatprep.subr.mxu0 0.0
    %214 = vmatpush2.msra.mxu0 0.0
    %215 = vmatprep.subr.mxu0 0.0
    %216 = vmatpush2.msra.mxu0 0.0
    %217 = vmatprep.subr.mxu0 0.0
    %218 = vmatpush2.msra.mxu0 0.0
    %219 = vmatprep.subr.mxu0 0.0
    %220 = vmatpush2.msra.mxu0 0.0
    %221 = vmatprep.subr.mxu0 0.0
    %222 = vmatpush2.msra.mxu0 0.0
    %223 = vmatprep.subr.mxu0 0.0
    %224 = vmatpush2.msra.mxu0 0.0
    %225 = vmatprep.subr.mxu0 0.0
    %226 = vmatpush2.msra.mxu0 0.0
    %227 = vmatprep.subr.mxu0 0.0
    %228 = vmatpush2.msra.mxu0 0.0
    %229 = vmatprep.subr.mxu0 0.0
    %230 = vmatpush2.msra.mxu0 0.0
    %231 = vmatprep.subr.mxu0 0.0
    %232 = vmatpush2.msra.mxu0 0.0
    %233 = vmatprep.subr.mxu0 0.0
    %234 = vmatpush2.msra.mxu0 0.0
    %235 = vmatprep.mubr.f32.mxu0 0.0
    %236 = vmatmul.mubr.f32.gmra.mxu0 %v169
    %v237 = vpop.f32.mrf.mxu0
    %v238 = vadd.f32 %v165, %v237
    %v239 = vpop.f32.mrf.mxu0
    %v240 = vadd.f32 %v165, %v239
    %241 = vdwg.mxu0
    %v242 = vmul.f32 %v238, 0.5
    %v243 = vmul.f32 %v240, 0.5
    %v244 = vmul.f32 %v238, 0.70710677
    %v245 = vmul.f32 %v240, 0.70710677
    %vm246 = vcmp.ge.f32.partialorder %v244, 0.0
    %vm247 = vcmp.ge.f32.partialorder %v245, 0.0
    %v248 = vsel %vm246, 1.0, -1.0
    %v249 = vsel %vm247, 1.0, -1.0
    %v250 = vand.u32 2147483647, %v244
    %v251 = vand.u32 2147483647, %v245
    %v252 = vmul.f32 %v250, 0.3275911
    %v253 = vmul.f32 %v251, 0.3275911
    %v254 = vadd.f32 %v252, 1.0
    %v255 = vadd.f32 %v253, 1.0
    %v256 = vrcp.pop %v254
    %v257 = vmul.f32 1.0, %v256
    %v258 = vrcp.pop %v255
    %v259 = vmul.f32 1.0, %v258
    %v260 = vmul.f32 %v257, 1.0614054
    %v261 = vmul.f32 %v259, 1.0614054
    %v262 = vadd.f32 %v260, -1.4531521
    %v263 = vadd.f32 %v261, -1.4531521
    %v264 = vmul.f32 %v262, %v257
    %v265 = vmul.f32 %v263, %v259
    %v266 = vadd.f32 %v264, 1.4214138
    %v267 = vadd.f32 %v265, 1.4214138
    %v268 = vmul.f32 %v266, %v257
    %v269 = vmul.f32 %v267, %v259
    %v270 = vadd.f32 %v268, -0.28449672
    %v271 = vadd.f32 %v269, -0.28449672
    %v272 = vmul.f32 %v270, %v257
    %v273 = vmul.f32 %v271, %v259
    %v274 = vadd.f32 %v272, 0.2548296
    %v275 = vadd.f32 %v273, 0.2548296
    %v276 = vmul.f32 %v274, %v257
    %v277 = vmul.f32 %v275, %v259
    %v278 = vsub.f32 0.0, %v250
    %v279 = vsub.f32 0.0, %v251
    %v280 = vmul.f32 %v278, %v250
    %v281 = vmul.f32 %v279, %v251
    %v282 = vmul.f32 %v280, 1.442695
    %v283 = vpow.pop %v282
    %v284 = vmul.f32 %v281, 1.442695
    %v285 = vpow.pop %v284
    %v286 = vmul.f32 %v276, %v283
    %v287 = vmul.f32 %v277, %v285
    %v288 = vsub.f32 1.0, %v286
    %v289 = vsub.f32 1.0, %v287
    %v290 = vmul.f32 %v248, %v288
    %v291 = vmul.f32 %v249, %v289
    %v292 = vadd.f32 %v290, 1.0
    %v293 = vadd.f32 %v291, 1.0
    %v294 = vmul.f32 %v242, %v292
    %v295 = vmul.f32 %v243, %v293
    %296 = vrot.lane.b32.xlu0 %v294, 34
    %v297 = vpop.permute.xlu0 %296
    %298 = vrot.lane.b32.xlu0 %v295, 34
    %v299 = vpop.permute.xlu0 %298
    %v300 = vlaneseq
    %v301 = vand.u32 %v300, 127
    %vm302 = vcmp.lt.s32.totalorder %v301, 34
    %v303 = vsel %vm302, %v297, %v299
    %v304 = vsel %vm302, %v299, %v297
    %v305 = vmul.f32 %v152, %v158
    %v306 = vmul.f32 %v153, %v159
    %v307 = vlaneseq
    %v308 = vshrl.u32 %v307, 7
    %v309 = vsub.s32 0, %v308
    %v310 = vrot.slane %v305, %v309
    %v311 = vlaneseq
    %v312 = vshrl.u32 %v311, 7
    %v313 = vsub.s32 0, %v312
    %v314 = vrot.slane %v306, %v313
    %v315 = vmul.f32 %v304, %v310
    %v316 = vmul.f32 %v303, %v314
    %318 = vset.pattern.permute.xlu0 0
    %319 = vperm.xlu0 %318, %v149
    %v320 = vpop.permute.xlu0 %319
    %v322 = vmul.f32 %v320, %v315
    %v323 = vmul.f32 %v320, %v316
    %v324 = vadd.f32 %v322, 0.0
    %v325 = vadd.f32 %v323, 0.0
    %326 = vrot.lane.b32.xlu0 %v294, 33
    %v327 = vpop.permute.xlu0 %326
    %328 = vrot.lane.b32.xlu0 %v295, 33
    %v329 = vpop.permute.xlu0 %328
    %vm330 = vcmp.lt.s32.totalorder %v301, 33
    %v331 = vsel %vm330, %v327, %v329
    %v332 = vsel %vm330, %v329, %v327
    %v335 = vrot.slane %v158, 7
    %v336 = vrot.slane %v159, 7
    %v339 = vmul.f32 %v152, %v335
    %v340 = vmul.f32 %v153, %v336
    %v341 = vlaneseq
    %v342 = vshrl.u32 %v341, 7
    %v343 = vsub.s32 1, %v342
    %v344 = vrot.slane %v339, %v343
    %v345 = vlaneseq
    %v346 = vshrl.u32 %v345, 7
    %v347 = vsub.s32 1, %v346
    %v348 = vrot.slane %v340, %v347
    %v349 = vmul.f32 %v332, %v344
    %v350 = vmul.f32 %v331, %v348
    %351 = vset.pattern.permute.xlu0 1
    %352 = vperm.xlu0 %351, %v149
    %v353 = vpop.permute.xlu0 %352
    %v355 = vmul.f32 %v353, %v349
    %v356 = vmul.f32 %v353, %v350
    %v357 = vadd.f32 %v324, %v355
    %v358 = vadd.f32 %v325, %v356
    %359 = vrot.lane.b32.xlu0 %v294, 32
    %v360 = vpop.permute.xlu0 %359
    %361 = vrot.lane.b32.xlu0 %v295, 32
    %v362 = vpop.permute.xlu0 %361
    %vm363 = vcmp.lt.s32.totalorder %v301, 32
    %v364 = vsel %vm363, %v360, %v362
    %v365 = vsel %vm363, %v362, %v360
    %v366 = vlaneseq
    %v367 = vshrl.u32 %v366, 7
    %v368 = vsub.s32 0, %v367
    %v369 = vrot.slane %v158, %v368
    %v370 = vlaneseq
    %v371 = vshrl.u32 %v370, 7
    %v372 = vsub.s32 0, %v371
    %v373 = vrot.slane %v159, %v372
    %v374 = vmul.f32 %v365, %v369
    %v375 = vmul.f32 %v364, %v373
    %376 = vset.pattern.permute.xlu0 2
    %377 = vperm.xlu0 %376, %v149
    %v378 = vpop.permute.xlu0 %377
    %v380 = vmul.f32 %v378, %v374
    %v381 = vmul.f32 %v378, %v375
    %v382 = vadd.f32 %v357, %v380
    %v383 = vadd.f32 %v358, %v381
    %384 = vrot.lane.b32.xlu0 %v294, 31
    %v385 = vpop.permute.xlu0 %384
    %386 = vrot.lane.b32.xlu0 %v295, 31
    %v387 = vpop.permute.xlu0 %386
    %vm388 = vcmp.lt.s32.totalorder %v301, 31
    %v389 = vsel %vm388, %v385, %v387
    %v390 = vsel %vm388, %v387, %v385
    %v391 = vrot.slane %v158, 5
    %v392 = vrot.slane %v159, 5
    %v395 = vmul.f32 %v152, %v391
    %v396 = vmul.f32 %v153, %v392
    %v397 = vlaneseq
    %v398 = vshrl.u32 %v397, 7
    %v399 = vsub.s32 3, %v398
    %v400 = vrot.slane %v395, %v399
    %v401 = vlaneseq
    %v402 = vshrl.u32 %v401, 7
    %v403 = vsub.s32 3, %v402
    %v404 = vrot.slane %v396, %v403
    %v405 = vmul.f32 %v390, %v400
    %v406 = vmul.f32 %v389, %v404
    %407 = vset.pattern.permute.xlu0 3
    %408 = vperm.xlu0 %407, %v149
    %v409 = vpop.permute.xlu0 %408
    %v411 = vmul.f32 %v409, %v405
    %v412 = vmul.f32 %v409, %v406
    %v413 = vadd.f32 %v382, %v411
    %v414 = vadd.f32 %v383, %v412
    %415 = vrot.lane.b32.xlu0 %v294, 30
    %v416 = vpop.permute.xlu0 %415
    %417 = vrot.lane.b32.xlu0 %v295, 30
    %v418 = vpop.permute.xlu0 %417
    %vm419 = vcmp.lt.s32.totalorder %v301, 30
    %v420 = vsel %vm419, %v416, %v418
    %v421 = vsel %vm419, %v418, %v416
    %v422 = vrot.slane %v158, 4
    %v423 = vrot.slane %v159, 4
    %v426 = vmul.f32 %v152, %v422
    %v427 = vmul.f32 %v153, %v423
    %v428 = vlaneseq
    %v429 = vshrl.u32 %v428, 7
    %v430 = vsub.s32 4, %v429
    %v431 = vrot.slane %v426, %v430
    %v432 = vlaneseq
    %v433 = vshrl.u32 %v432, 7
    %v434 = vsub.s32 4, %v433
    %v435 = vrot.slane %v427, %v434
    %v436 = vmul.f32 %v421, %v431
    %v437 = vmul.f32 %v420, %v435
    %438 = vset.pattern.permute.xlu0 4
    %439 = vperm.xlu0 %438, %v149
    %v440 = vpop.permute.xlu0 %439
    %v442 = vmul.f32 %v440, %v436
    %v443 = vmul.f32 %v440, %v437
    %v444 = vadd.f32 %v413, %v442
    %v445 = vadd.f32 %v414, %v443
    %446 = vrot.lane.b32.xlu0 %v294, 18
    %v447 = vpop.permute.xlu0 %446
    %448 = vrot.lane.b32.xlu0 %v295, 18
    %v449 = vpop.permute.xlu0 %448
    %vm450 = vcmp.lt.s32.totalorder %v301, 18
    %v451 = vsel %vm450, %v447, %v449
    %v452 = vsel %vm450, %v449, %v447
    %v453 = vrot.slane %v158, 1
    %v454 = vrot.slane %v159, 1
    %v457 = vmul.f32 %v152, %v453
    %v458 = vmul.f32 %v153, %v454
    %v459 = vlaneseq
    %v460 = vshrl.u32 %v459, 7
    %v461 = vsub.s32 0, %v460
    %v462 = vrot.slane %v457, %v461
    %v463 = vlaneseq
    %v464 = vshrl.u32 %v463, 7
    %v465 = vsub.s32 0, %v464
    %v466 = vrot.slane %v458, %v465
    %v467 = vmul.f32 %v452, %v462
    %v468 = vmul.f32 %v451, %v466
    %469 = vset.pattern.permute.xlu0 5
    %470 = vperm.xlu0 %469, %v149
    %v471 = vpop.permute.xlu0 %470
    %v473 = vmul.f32 %v471, %v467
    %v474 = vmul.f32 %v471, %v468
    %v475 = vadd.f32 %v444, %v473
    %v476 = vadd.f32 %v445, %v474
    %477 = vrot.lane.b32.xlu0 %v294, 17
    %v478 = vpop.permute.xlu0 %477
    %479 = vrot.lane.b32.xlu0 %v295, 17
    %v480 = vpop.permute.xlu0 %479
    %vm481 = vcmp.lt.s32.totalorder %v301, 17
    %v482 = vsel %vm481, %v478, %v480
    %v483 = vsel %vm481, %v480, %v478
    %v484 = vlaneseq
    %v485 = vshrl.u32 %v484, 7
    %v486 = vsub.s32 1, %v485
    %v487 = vrot.slane %v305, %v486
    %v488 = vlaneseq
    %v489 = vshrl.u32 %v488, 7
    %v490 = vsub.s32 1, %v489
    %v491 = vrot.slane %v306, %v490
    %v492 = vmul.f32 %v483, %v487
    %v493 = vmul.f32 %v482, %v491
    %494 = vset.pattern.permute.xlu0 6
    %495 = vperm.xlu0 %494, %v149
    %v496 = vpop.permute.xlu0 %495
    %v498 = vmul.f32 %v496, %v492
    %v499 = vmul.f32 %v496, %v493
    %v500 = vadd.f32 %v475, %v498
    %v501 = vadd.f32 %v476, %v499
    %502 = vrot.lane.b32.xlu0 %v294, 16
    %v503 = vpop.permute.xlu0 %502
    %504 = vrot.lane.b32.xlu0 %v295, 16
    %v505 = vpop.permute.xlu0 %504
    %vm506 = vcmp.lt.s32.totalorder %v301, 16
    %v507 = vsel %vm506, %v503, %v505
    %v508 = vsel %vm506, %v505, %v503
    %v509 = vlaneseq
    %v510 = vshrl.u32 %v509, 7
    %v511 = vsub.s32 1, %v510
    %v512 = vrot.slane %v158, %v511
    %v513 = vlaneseq
    %v514 = vshrl.u32 %v513, 7
    %v515 = vsub.s32 1, %v514
    %v516 = vrot.slane %v159, %v515
    %v517 = vmul.f32 %v508, %v512
    %v518 = vmul.f32 %v507, %v516
    %519 = vset.pattern.permute.xlu0 7
    %520 = vperm.xlu0 %519, %v149
    %v521 = vpop.permute.xlu0 %520
    %v523 = vmul.f32 %v521, %v517
    %v524 = vmul.f32 %v521, %v518
    %v525 = vadd.f32 %v500, %v523
    %v526 = vadd.f32 %v501, %v524
    %527 = vrot.lane.b32.xlu0 %v294, 15
    %v528 = vpop.permute.xlu0 %527
    %529 = vrot.lane.b32.xlu0 %v295, 15
    %v530 = vpop.permute.xlu0 %529
    %vm531 = vcmp.lt.s32.totalorder %v301, 15
    %v532 = vsel %vm531, %v528, %v530
    %v533 = vsel %vm531, %v530, %v528
    %v534 = vrot.slane %v158, 6
    %v535 = vrot.slane %v159, 6
    %v538 = vmul.f32 %v152, %v534
    %v539 = vmul.f32 %v153, %v535
    %v540 = vlaneseq
    %v541 = vshrl.u32 %v540, 7
    %v542 = vsub.s32 3, %v541
    %v543 = vrot.slane %v538, %v542
    %v544 = vlaneseq
    %v545 = vshrl.u32 %v544, 7
    %v546 = vsub.s32 3, %v545
    %v547 = vrot.slane %v539, %v546
    %v548 = vmul.f32 %v533, %v543
    %v549 = vmul.f32 %v532, %v547
    %550 = vset.pattern.permute.xlu0 8
    %551 = vperm.xlu0 %550, %v149
    %v552 = vpop.permute.xlu0 %551
    %v554 = vmul.f32 %v552, %v548
    %v555 = vmul.f32 %v552, %v549
    %v556 = vadd.f32 %v525, %v554
    %v557 = vadd.f32 %v526, %v555
    %558 = vrot.lane.b32.xlu0 %v294, 14
    %v559 = vpop.permute.xlu0 %558
    %560 = vrot.lane.b32.xlu0 %v295, 14
    %v561 = vpop.permute.xlu0 %560
    %vm562 = vcmp.lt.s32.totalorder %v301, 14
    %v563 = vsel %vm562, %v559, %v561
    %v564 = vsel %vm562, %v561, %v559
    %v565 = vlaneseq
    %v566 = vshrl.u32 %v565, 7
    %v567 = vsub.s32 4, %v566
    %v568 = vrot.slane %v395, %v567
    %v569 = vlaneseq
    %v570 = vshrl.u32 %v569, 7
    %v571 = vsub.s32 4, %v570
    %v572 = vrot.slane %v396, %v571
    %v573 = vmul.f32 %v564, %v568
    %v574 = vmul.f32 %v563, %v572
    %575 = vset.pattern.permute.xlu0 9
    %576 = vperm.xlu0 %575, %v149
    %v577 = vpop.permute.xlu0 %576
    %v579 = vmul.f32 %v577, %v573
    %v580 = vmul.f32 %v577, %v574
    %v581 = vadd.f32 %v556, %v579
    %v582 = vadd.f32 %v557, %v580
    %583 = vrot.lane.b32.xlu0 %v294, 2
    %v584 = vpop.permute.xlu0 %583
    %585 = vrot.lane.b32.xlu0 %v295, 2
    %v586 = vpop.permute.xlu0 %585
    %vm587 = vcmp.lt.s32.totalorder %v301, 2
    %v588 = vsel %vm587, %v584, %v586
    %v589 = vsel %vm587, %v586, %v584
    %v590 = vlaneseq
    %v591 = vshrl.u32 %v590, 7
    %v592 = vsub.s32 0, %v591
    %v593 = vrot.slane %v152, %v592
    %v594 = vlaneseq
    %v595 = vshrl.u32 %v594, 7
    %v596 = vsub.s32 0, %v595
    %v597 = vrot.slane %v153, %v596
    %v598 = vmul.f32 %v589, %v593
    %v599 = vmul.f32 %v588, %v597
    %600 = vset.pattern.permute.xlu0 10
    %601 = vperm.xlu0 %600, %v149
    %v602 = vpop.permute.xlu0 %601
    %v604 = vmul.f32 %v602, %v598
    %v605 = vmul.f32 %v602, %v599
    %v606 = vadd.f32 %v581, %v604
    %v607 = vadd.f32 %v582, %v605
    %608 = vrot.lane.b32.xlu0 %v294, 1
    %v609 = vpop.permute.xlu0 %608
    %610 = vrot.lane.b32.xlu0 %v295, 1
    %v611 = vpop.permute.xlu0 %610
    %vm612 = vcmp.lt.s32.totalorder %v301, 1
    %v613 = vsel %vm612, %v609, %v611
    %v614 = vsel %vm612, %v611, %v609
    %v615 = vlaneseq
    %v616 = vshrl.u32 %v615, 7
    %v617 = vsub.s32 1, %v616
    %v618 = vrot.slane %v152, %v617
    %v619 = vlaneseq
    %v620 = vshrl.u32 %v619, 7
    %v621 = vsub.s32 1, %v620
    %v622 = vrot.slane %v153, %v621
    %v623 = vmul.f32 %v614, %v618
    %v624 = vmul.f32 %v613, %v622
    %625 = vset.pattern.permute.xlu0 11
    %626 = vperm.xlu0 %625, %v149
    %v627 = vpop.permute.xlu0 %626
    %v629 = vmul.f32 %v627, %v623
    %v630 = vmul.f32 %v627, %v624
    %v631 = vadd.f32 %v606, %v629
    %v632 = vadd.f32 %v607, %v630
    %633 = vset.pattern.permute.xlu0 12
    %634 = vperm.xlu0 %633, %v149
    %v635 = vpop.permute.xlu0 %634
    %v637 = vmul.f32 %v635, %v294
    %v638 = vmul.f32 %v635, %v295
    %v639 = vadd.f32 %v631, %v637
    %v640 = vadd.f32 %v632, %v638
    %641 = vrot.lane.b32.xlu0 %v294, 127
    %v642 = vpop.permute.xlu0 %641
    %643 = vrot.lane.b32.xlu0 %v295, 127
    %v644 = vpop.permute.xlu0 %643
    %vm645 = vcmp.lt.s32.totalorder %v301, 127
    %v646 = vsel %vm645, %v642, %v644
    %v647 = vsel %vm645, %v644, %v642
    %v648 = vlaneseq
    %v649 = vshrl.u32 %v648, 7
    %v650 = vsub.s32 3, %v649
    %v651 = vrot.slane %v152, %v650
    %v652 = vlaneseq
    %v653 = vshrl.u32 %v652, 7
    %v654 = vsub.s32 3, %v653
    %v655 = vrot.slane %v153, %v654
    %v656 = vmul.f32 %v646, %v651
    %v657 = vmul.f32 %v647, %v655
    %658 = vset.pattern.permute.xlu0 13
    %659 = vperm.xlu0 %658, %v149
    %v660 = vpop.permute.xlu0 %659
    %v662 = vmul.f32 %v660, %v656
    %v663 = vmul.f32 %v660, %v657
    %v664 = vadd.f32 %v639, %v662
    %v665 = vadd.f32 %v640, %v663
    %666 = vrot.lane.b32.xlu0 %v294, 126
    %v667 = vpop.permute.xlu0 %666
    %668 = vrot.lane.b32.xlu0 %v295, 126
    %v669 = vpop.permute.xlu0 %668
    %vm670 = vcmp.lt.s32.totalorder %v301, 126
    %v671 = vsel %vm670, %v667, %v669
    %v672 = vsel %vm670, %v669, %v667
    %v673 = vlaneseq
    %v674 = vshrl.u32 %v673, 7
    %v675 = vsub.s32 4, %v674
    %v676 = vrot.slane %v152, %v675
    %v677 = vlaneseq
    %v678 = vshrl.u32 %v677, 7
    %v679 = vsub.s32 4, %v678
    %v680 = vrot.slane %v153, %v679
    %v681 = vmul.f32 %v671, %v676
    %v682 = vmul.f32 %v672, %v680
    %683 = vset.pattern.permute.xlu0 14
    %684 = vperm.xlu0 %683, %v149
    %v685 = vpop.permute.xlu0 %684
    %v687 = vmul.f32 %v685, %v681
    %v688 = vmul.f32 %v685, %v682
    %v689 = vadd.f32 %v664, %v687
    %v690 = vadd.f32 %v665, %v688
    %691 = vrot.lane.b32.xlu0 %v294, 114
    %v692 = vpop.permute.xlu0 %691
    %693 = vrot.lane.b32.xlu0 %v295, 114
    %v694 = vpop.permute.xlu0 %693
    %vm695 = vcmp.lt.s32.totalorder %v301, 114
    %v696 = vsel %vm695, %v692, %v694
    %v697 = vsel %vm695, %v694, %v692
    %v698 = vrot.slane %v158, 3
    %v699 = vrot.slane %v159, 3
    %v702 = vmul.f32 %v152, %v698
    %v703 = vmul.f32 %v153, %v699
    %v704 = vlaneseq
    %v705 = vshrl.u32 %v704, 7
    %v706 = vsub.s32 0, %v705
    %v707 = vrot.slane %v702, %v706
    %v708 = vlaneseq
    %v709 = vshrl.u32 %v708, 7
    %v710 = vsub.s32 0, %v709
    %v711 = vrot.slane %v703, %v710
    %v712 = vmul.f32 %v696, %v707
    %v713 = vmul.f32 %v697, %v711
    %714 = vset.pattern.permute.xlu0 15
    %715 = vperm.xlu0 %714, %v149
    %v716 = vpop.permute.xlu0 %715
    %v718 = vmul.f32 %v716, %v712
    %v719 = vmul.f32 %v716, %v713
    %v720 = vadd.f32 %v689, %v718
    %v721 = vadd.f32 %v690, %v719
    %722 = vrot.lane.b32.xlu0 %v294, 113
    %v723 = vpop.permute.xlu0 %722
    %724 = vrot.lane.b32.xlu0 %v295, 113
    %v725 = vpop.permute.xlu0 %724
    %vm726 = vcmp.lt.s32.totalorder %v301, 113
    %v727 = vsel %vm726, %v723, %v725
    %v728 = vsel %vm726, %v725, %v723
    %v729 = vrot.slane %v158, 2
    %v730 = vrot.slane %v159, 2
    %v733 = vmul.f32 %v152, %v729
    %v734 = vmul.f32 %v153, %v730
    %v735 = vlaneseq
    %v736 = vshrl.u32 %v735, 7
    %v737 = vsub.s32 1, %v736
    %v738 = vrot.slane %v733, %v737
    %v739 = vlaneseq
    %v740 = vshrl.u32 %v739, 7
    %v741 = vsub.s32 1, %v740
    %v742 = vrot.slane %v734, %v741
    %v743 = vmul.f32 %v727, %v738
    %v744 = vmul.f32 %v728, %v742
    %745 = vset.pattern.permute.xlu0 16
    %746 = vperm.xlu0 %745, %v149
    %v747 = vpop.permute.xlu0 %746
    %v749 = vmul.f32 %v747, %v743
    %v750 = vmul.f32 %v747, %v744
    %v751 = vadd.f32 %v720, %v749
    %v752 = vadd.f32 %v721, %v750
    %753 = vrot.lane.b32.xlu0 %v294, 112
    %v754 = vpop.permute.xlu0 %753
    %755 = vrot.lane.b32.xlu0 %v295, 112
    %v756 = vpop.permute.xlu0 %755
    %vm757 = vcmp.lt.s32.totalorder %v301, 112
    %v758 = vsel %vm757, %v754, %v756
    %v759 = vsel %vm757, %v756, %v754
    %v760 = vlaneseq
    %v761 = vshrl.u32 %v760, 7
    %v762 = vsub.s32 3, %v761
    %v763 = vrot.slane %v158, %v762
    %v764 = vlaneseq
    %v765 = vshrl.u32 %v764, 7
    %v766 = vsub.s32 3, %v765
    %v767 = vrot.slane %v159, %v766
    %v768 = vmul.f32 %v758, %v763
    %v769 = vmul.f32 %v759, %v767
    %770 = vset.pattern.permute.xlu0 17
    %771 = vperm.xlu0 %770, %v149
    %v772 = vpop.permute.xlu0 %771
    %v774 = vmul.f32 %v772, %v768
    %v775 = vmul.f32 %v772, %v769
    %v776 = vadd.f32 %v751, %v774
    %v777 = vadd.f32 %v752, %v775
    %778 = vrot.lane.b32.xlu0 %v294, 111
    %v779 = vpop.permute.xlu0 %778
    %780 = vrot.lane.b32.xlu0 %v295, 111
    %v781 = vpop.permute.xlu0 %780
    %vm782 = vcmp.lt.s32.totalorder %v301, 111
    %v783 = vsel %vm782, %v779, %v781
    %v784 = vsel %vm782, %v781, %v779
    %v785 = vlaneseq
    %v786 = vshrl.u32 %v785, 7
    %v787 = vsub.s32 3, %v786
    %v788 = vrot.slane %v305, %v787
    %v789 = vlaneseq
    %v790 = vshrl.u32 %v789, 7
    %v791 = vsub.s32 3, %v790
    %v792 = vrot.slane %v306, %v791
    %v793 = vmul.f32 %v783, %v788
    %v794 = vmul.f32 %v784, %v792
    %795 = vset.pattern.permute.xlu0 18
    %796 = vperm.xlu0 %795, %v149
    %v797 = vpop.permute.xlu0 %796
    %v799 = vmul.f32 %v797, %v793
    %v800 = vmul.f32 %v797, %v794
    %v801 = vadd.f32 %v776, %v799
    %v802 = vadd.f32 %v777, %v800
    %803 = vrot.lane.b32.xlu0 %v294, 110
    %v804 = vpop.permute.xlu0 %803
    %805 = vrot.lane.b32.xlu0 %v295, 110
    %v806 = vpop.permute.xlu0 %805
    %vm807 = vcmp.lt.s32.totalorder %v301, 110
    %v808 = vsel %vm807, %v804, %v806
    %v809 = vsel %vm807, %v806, %v804
    %v810 = vlaneseq
    %v811 = vshrl.u32 %v810, 7
    %v812 = vsub.s32 4, %v811
    %v813 = vrot.slane %v339, %v812
    %v814 = vlaneseq
    %v815 = vshrl.u32 %v814, 7
    %v816 = vsub.s32 4, %v815
    %v817 = vrot.slane %v340, %v816
    %v818 = vmul.f32 %v808, %v813
    %v819 = vmul.f32 %v809, %v817
    %820 = vset.pattern.permute.xlu0 19
    %821 = vperm.xlu0 %820, %v149
    %v822 = vpop.permute.xlu0 %821
    %v824 = vmul.f32 %v822, %v818
    %v825 = vmul.f32 %v822, %v819
    %v826 = vadd.f32 %v801, %v824
    %v827 = vadd.f32 %v802, %v825
    %828 = vrot.lane.b32.xlu0 %v294, 98
    %v829 = vpop.permute.xlu0 %828
    %830 = vrot.lane.b32.xlu0 %v295, 98
    %v831 = vpop.permute.xlu0 %830
    %vm832 = vcmp.lt.s32.totalorder %v301, 98
    %v833 = vsel %vm832, %v829, %v831
    %v834 = vsel %vm832, %v831, %v829
    %v835 = vlaneseq
    %v836 = vshrl.u32 %v835, 7
    %v837 = vsub.s32 0, %v836
    %v838 = vrot.slane %v426, %v837
    %v839 = vlaneseq
    %v840 = vshrl.u32 %v839, 7
    %v841 = vsub.s32 0, %v840
    %v842 = vrot.slane %v427, %v841
    %v843 = vmul.f32 %v833, %v838
    %v844 = vmul.f32 %v834, %v842
    %845 = vset.pattern.permute.xlu0 20
    %846 = vperm.xlu0 %845, %v149
    %v847 = vpop.permute.xlu0 %846
    %v849 = vmul.f32 %v847, %v843
    %v850 = vmul.f32 %v847, %v844
    %v851 = vadd.f32 %v826, %v849
    %v852 = vadd.f32 %v827, %v850
    %853 = vrot.lane.b32.xlu0 %v294, 97
    %v854 = vpop.permute.xlu0 %853
    %855 = vrot.lane.b32.xlu0 %v295, 97
    %v856 = vpop.permute.xlu0 %855
    %vm857 = vcmp.lt.s32.totalorder %v301, 97
    %v858 = vsel %vm857, %v854, %v856
    %v859 = vsel %vm857, %v856, %v854
    %v860 = vlaneseq
    %v861 = vshrl.u32 %v860, 7
    %v862 = vsub.s32 1, %v861
    %v863 = vrot.slane %v702, %v862
    %v864 = vlaneseq
    %v865 = vshrl.u32 %v864, 7
    %v866 = vsub.s32 1, %v865
    %v867 = vrot.slane %v703, %v866
    %v868 = vmul.f32 %v858, %v863
    %v869 = vmul.f32 %v859, %v867
    %870 = vset.pattern.permute.xlu0 21
    %871 = vperm.xlu0 %870, %v149
    %v872 = vpop.permute.xlu0 %871
    %v874 = vmul.f32 %v872, %v868
    %v875 = vmul.f32 %v872, %v869
    %v876 = vadd.f32 %v851, %v874
    %v877 = vadd.f32 %v852, %v875
    %878 = vrot.lane.b32.xlu0 %v294, 96
    %v879 = vpop.permute.xlu0 %878
    %880 = vrot.lane.b32.xlu0 %v295, 96
    %v881 = vpop.permute.xlu0 %880
    %vm882 = vcmp.lt.s32.totalorder %v301, 96
    %v883 = vsel %vm882, %v879, %v881
    %v884 = vsel %vm882, %v881, %v879
    %v885 = vlaneseq
    %v886 = vshrl.u32 %v885, 7
    %v887 = vsub.s32 4, %v886
    %v888 = vrot.slane %v158, %v887
    %v889 = vlaneseq
    %v890 = vshrl.u32 %v889, 7
    %v891 = vsub.s32 4, %v890
    %v892 = vrot.slane %v159, %v891
    %v893 = vmul.f32 %v883, %v888
    %v894 = vmul.f32 %v884, %v892
    %895 = vset.pattern.permute.xlu0 22
    %896 = vperm.xlu0 %895, %v149
    %v897 = vpop.permute.xlu0 %896
    %v899 = vmul.f32 %v897, %v893
    %v900 = vmul.f32 %v897, %v894
    %v901 = vadd.f32 %v876, %v899
    %v902 = vadd.f32 %v877, %v900
    %903 = vrot.lane.b32.xlu0 %v294, 95
    %v904 = vpop.permute.xlu0 %903
    %905 = vrot.lane.b32.xlu0 %v295, 95
    %v906 = vpop.permute.xlu0 %905
    %vm907 = vcmp.lt.s32.totalorder %v301, 95
    %v908 = vsel %vm907, %v904, %v906
    %v909 = vsel %vm907, %v906, %v904
    %v910 = vlaneseq
    %v911 = vshrl.u32 %v910, 7
    %v912 = vsub.s32 3, %v911
    %v913 = vrot.slane %v457, %v912
    %v914 = vlaneseq
    %v915 = vshrl.u32 %v914, 7
    %v916 = vsub.s32 3, %v915
    %v917 = vrot.slane %v458, %v916
    %v918 = vmul.f32 %v908, %v913
    %v919 = vmul.f32 %v909, %v917
    %920 = vset.pattern.permute.xlu0 23
    %921 = vperm.xlu0 %920, %v149
    %v922 = vpop.permute.xlu0 %921
    %v924 = vmul.f32 %v922, %v918
    %v925 = vmul.f32 %v922, %v919
    %v926 = vadd.f32 %v901, %v924
    %v927 = vadd.f32 %v902, %v925
    %928 = vrot.lane.b32.xlu0 %v294, 94
    %v929 = vpop.permute.xlu0 %928
    %930 = vrot.lane.b32.xlu0 %v295, 94
    %v931 = vpop.permute.xlu0 %930
    %vm932 = vcmp.lt.s32.totalorder %v301, 94
    %v933 = vsel %vm932, %v929, %v931
    %v934 = vsel %vm932, %v931, %v929
    %v935 = vlaneseq
    %v936 = vshrl.u32 %v935, 7
    %v937 = vsub.s32 4, %v936
    %v938 = vrot.slane %v305, %v937
    %v939 = vlaneseq
    %v940 = vshrl.u32 %v939, 7
    %v941 = vsub.s32 4, %v940
    %v942 = vrot.slane %v306, %v941
    %v943 = vmul.f32 %v933, %v938
    %v944 = vmul.f32 %v934, %v942
    %945 = vset.pattern.permute.xlu0 24
    %946 = vperm.xlu0 %945, %v149
    %v947 = vpop.permute.xlu0 %946
    %v949 = vmul.f32 %v947, %v943
    %v950 = vmul.f32 %v947, %v944
    %v951 = vadd.f32 %v926, %v949
    %v952 = vadd.f32 %v927, %v950
    %953 = vset.pattern.permute.xlu0 4
    %954 = vperm.xlu0 %953, %v148
    %v955 = vpop.permute.xlu0 %954
    %v957 = vadd.f32 %v951, %v955
    %v958 = vadd.f32 %v952, %v955
    %v959 = vld [vmem:[#allocation11] sm:$0xff]
    %v960 = vld [vmem:[#allocation11 + $0x8] sm:$0xff]
    %v961 = vld [vmem:[#allocation11 + $0x10] sm:$0xff]
    %v962 = vld [vmem:[#allocation11 + $0x18] sm:$0xff]
    %v963 = vld [vmem:[#allocation11 + $0x20] sm:$0xff]
    %v964 = vld [vmem:[#allocation11 + $0x28] sm:$0xff]
    %v965 = vld [vmem:[#allocation11 + $0x30] sm:$0xff]
    %v966 = vld [vmem:[#allocation11 + $0x38] sm:$0xff]
    %v967 = vld [vmem:[#allocation11 + $0x40] sm:$0xff]
    %v968 = vld [vmem:[#allocation11 + $0x48] sm:$0xff]
    %v969 = vld [vmem:[#allocation11 + $0x50] sm:$0xff]
    %v970 = vld [vmem:[#allocation11 + $0x58] sm:$0xff]
    %v971 = vld [vmem:[#allocation11 + $0x60] sm:$0xff]
    %v972 = vld [vmem:[#allocation11 + $0x68] sm:$0xff]
    %v973 = vld [vmem:[#allocation11 + $0x70] sm:$0xff]
    %v974 = vld [vmem:[#allocation11 + $0x78] sm:$0xff]
    %v975 = vld [vmem:[#allocation11 + $0x80] sm:$0xff]
    %v976 = vld [vmem:[#allocation11 + $0x88] sm:$0xff]
    %v977 = vld [vmem:[#allocation11 + $0x90] sm:$0xff]
    %v978 = vld [vmem:[#allocation11 + $0x98] sm:$0xff]
    %v979 = vld [vmem:[#allocation11 + $0xa0] sm:$0xff]
    %v980 = vld [vmem:[#allocation11 + $0xa8] sm:$0xff]
    %v981 = vld [vmem:[#allocation11 + $0xb0] sm:$0xff]
    %v982 = vld [vmem:[#allocation11 + $0xb8] sm:$0xff]
    %v983 = vld [vmem:[#allocation11 + $0xc0] sm:$0xff]
    %v984 = vld [vmem:[#allocation11 + $0xc8] sm:$0xff]
    %v985 = vld [vmem:[#allocation11 + $0xd0] sm:$0xff]
    %v986 = vld [vmem:[#allocation11 + $0xd8] sm:$0xff]
    %v987 = vld [vmem:[#allocation11 + $0xe0] sm:$0xff]
    %v988 = vld [vmem:[#allocation11 + $0xe8] sm:$0xff]
    %v989 = vld [vmem:[#allocation11 + $0xf0] sm:$0xff]
    %v990 = vld [vmem:[#allocation11 + $0xf8] sm:$0xff]
    %v991 = vld [vmem:[#allocation11 + $0x100] sm:$0xff]
    %v992 = vld [vmem:[#allocation11 + $0x108] sm:$0xff]
    %v993 = vld [vmem:[#allocation11 + $0x110] sm:$0xff]
    %v994 = vld [vmem:[#allocation11 + $0x118] sm:$0xff]
    %v995 = vld [vmem:[#allocation11 + $0x120] sm:$0xff]
    %v996 = vld [vmem:[#allocation11 + $0x128] sm:$0xff]
    %v997 = vld [vmem:[#allocation11 + $0x130] sm:$0xff]
    %v998 = vld [vmem:[#allocation11 + $0x138] sm:$0xff]
    %v999 = vld [vmem:[#allocation11 + $0x140] sm:$0xff]
    %v1000 = vld [vmem:[#allocation11 + $0x148] sm:$0xff]
    %v1001 = vld [vmem:[#allocation11 + $0x150] sm:$0xff]
    %v1002 = vld [vmem:[#allocation11 + $0x158] sm:$0xff]
    %v1003 = vld [vmem:[#allocation11 + $0x160] sm:$0xff]
    %v1004 = vld [vmem:[#allocation11 + $0x168] sm:$0xff]
    %v1005 = vld [vmem:[#allocation11 + $0x170] sm:$0xff]
    %v1006 = vld [vmem:[#allocation11 + $0x178] sm:$0xff]
    %v1007 = vld [vmem:[#allocation11 + $0x180] sm:$0xff]
    %v1008 = vld [vmem:[#allocation11 + $0x188] sm:$0xff]
    %v1009 = vld [vmem:[#allocation11 + $0x190] sm:$0xff]
    %v1010 = vld [vmem:[#allocation11 + $0x198] sm:$0xff]
    %v1011 = vld [vmem:[#allocation11 + $0x1a0] sm:$0xff]
    %v1012 = vld [vmem:[#allocation11 + $0x1a8] sm:$0xff]
    %v1013 = vld [vmem:[#allocation11 + $0x1b0] sm:$0xff]
    %v1014 = vld [vmem:[#allocation11 + $0x1b8] sm:$0xff]
    %v1015 = vld [vmem:[#allocation11 + $0x1c0] sm:$0xff]
    %v1016 = vld [vmem:[#allocation11 + $0x1c8] sm:$0xff]
    %v1017 = vld [vmem:[#allocation11 + $0x1d0] sm:$0xff]
    %v1018 = vld [vmem:[#allocation11 + $0x1d8] sm:$0xff]
    %v1019 = vld [vmem:[#allocation11 + $0x1e0] sm:$0xff]
    %v1020 = vld [vmem:[#allocation11 + $0x1e8] sm:$0xff]
    %v1021 = vld [vmem:[#allocation11 + $0x1f0] sm:$0xff]
    %v1022 = vld [vmem:[#allocation11 + $0x1f8] sm:$0xff]
    %v1023 = vld [vmem:[#allocation11 + $0x200] sm:$0xff]
    %v1024 = vld [vmem:[#allocation11 + $0x208] sm:$0xff]
    %v1025 = vld [vmem:[#allocation11 + $0x210] sm:$0xff]
    %v1026 = vld [vmem:[#allocation11 + $0x218] sm:$0xff]
    %v1027 = vld [vmem:[#allocation11 + $0x220] sm:$0xff]
    %v1028 = vld [vmem:[#allocation11 + $0x228] sm:$0xff]
    %v1029 = vld [vmem:[#allocation11 + $0x230] sm:$0xff]
    %v1030 = vld [vmem:[#allocation11 + $0x238] sm:$0xff]
    %v1031 = vld [vmem:[#allocation11 + $0x240] sm:$0xff]
    %v1032 = vld [vmem:[#allocation11 + $0x248] sm:$0xff]
    %v1033 = vld [vmem:[#allocation11 + $0x250] sm:$0xff]
    %v1034 = vld [vmem:[#allocation11 + $0x258] sm:$0xff]
    %v1035 = vld [vmem:[#allocation11 + $0x260] sm:$0xff]
    %v1036 = vld [vmem:[#allocation11 + $0x268] sm:$0xff]
    %v1037 = vld [vmem:[#allocation11 + $0x270] sm:$0xff]
    %v1038 = vld [vmem:[#allocation11 + $0x278] sm:$0xff]
    %v1039 = vld [vmem:[#allocation11 + $0x280] sm:$0xff]
    %v1040 = vld [vmem:[#allocation11 + $0x288] sm:$0xff]
    %v1041 = vld [vmem:[#allocation11 + $0x290] sm:$0xff]
    %v1042 = vld [vmem:[#allocation11 + $0x298] sm:$0xff]
    %v1043 = vld [vmem:[#allocation11 + $0x2a0] sm:$0xff]
    %v1044 = vld [vmem:[#allocation11 + $0x2a8] sm:$0xff]
    %v1045 = vld [vmem:[#allocation11 + $0x2b0] sm:$0xff]
    %v1046 = vld [vmem:[#allocation11 + $0x2b8] sm:$0xff]
    %v1047 = vld [vmem:[#allocation11 + $0x2c0] sm:$0xff]
    %v1048 = vld [vmem:[#allocation11 + $0x2c8] sm:$0xff]
    %v1049 = vld [vmem:[#allocation11 + $0x2d0] sm:$0xff]
    %v1050 = vld [vmem:[#allocation11 + $0x2d8] sm:$0xff]
    %v1051 = vld [vmem:[#allocation11 + $0x2e0] sm:$0xff]
    %v1052 = vld [vmem:[#allocation11 + $0x2e8] sm:$0xff]
    %v1053 = vld [vmem:[#allocation11 + $0x2f0] sm:$0xff]
    %v1054 = vld [vmem:[#allocation11 + $0x2f8] sm:$0xff]
    %v1055 = vld [vmem:[#allocation11 + $0x300] sm:$0xff]
    %v1056 = vld [vmem:[#allocation11 + $0x308] sm:$0xff]
    %v1057 = vld [vmem:[#allocation11 + $0x310] sm:$0xff]
    %v1058 = vld [vmem:[#allocation11 + $0x318] sm:$0xff]
    %v1059 = vld [vmem:[#allocation11 + $0x320] sm:$0xff]
    %v1060 = vld [vmem:[#allocation11 + $0x328] sm:$0xff]
    %v1061 = vld [vmem:[#allocation11 + $0x330] sm:$0xff]
    %v1062 = vld [vmem:[#allocation11 + $0x338] sm:$0xff]
    %v1063 = vld [vmem:[#allocation11 + $0x340] sm:$0xff]
    %v1064 = vld [vmem:[#allocation11 + $0x348] sm:$0xff]
    %v1065 = vld [vmem:[#allocation11 + $0x350] sm:$0xff]
    %v1066 = vld [vmem:[#allocation11 + $0x358] sm:$0xff]
    %v1067 = vld [vmem:[#allocation11 + $0x360] sm:$0xff]
    %v1068 = vld [vmem:[#allocation11 + $0x368] sm:$0xff]
    %v1069 = vld [vmem:[#allocation11 + $0x370] sm:$0xff]
    %v1070 = vld [vmem:[#allocation11 + $0x378] sm:$0xff]
    %v1071 = vld [vmem:[#allocation11 + $0x380] sm:$0xff]
    %v1072 = vld [vmem:[#allocation11 + $0x388] sm:$0xff]
    %v1073 = vld [vmem:[#allocation11 + $0x390] sm:$0xff]
    %v1074 = vld [vmem:[#allocation11 + $0x398] sm:$0xff]
    %v1075 = vld [vmem:[#allocation11 + $0x3a0] sm:$0xff]
    %v1076 = vld [vmem:[#allocation11 + $0x3a8] sm:$0xff]
    %v1077 = vld [vmem:[#allocation11 + $0x3b0] sm:$0xff]
    %v1078 = vld [vmem:[#allocation11 + $0x3b8] sm:$0xff]
    %v1079 = vld [vmem:[#allocation11 + $0x3c0] sm:$0xff]
    %v1080 = vld [vmem:[#allocation11 + $0x3c8] sm:$0xff]
    %v1081 = vld [vmem:[#allocation11 + $0x3d0] sm:$0xff]
    %v1082 = vld [vmem:[#allocation11 + $0x3d8] sm:$0xff]
    %v1083 = vld [vmem:[#allocation11 + $0x3e0] sm:$0xff]
    %v1084 = vld [vmem:[#allocation11 + $0x3e8] sm:$0xff]
    %v1085 = vld [vmem:[#allocation11 + $0x3f0] sm:$0xff]
    %v1086 = vld [vmem:[#allocation11 + $0x3f8] sm:$0xff]
    %v1087 = vld [vmem:[#allocation11 + $0x400] sm:$0xff]
    %v1088 = vld [vmem:[#allocation11 + $0x408] sm:$0xff]
    %v1089 = vld [vmem:[#allocation11 + $0x410] sm:$0xff]
    %v1090 = vld [vmem:[#allocation11 + $0x418] sm:$0xff]
    %v1091 = vld [vmem:[#allocation11 + $0x420] sm:$0xff]
    %v1092 = vld [vmem:[#allocation11 + $0x428] sm:$0xff]
    %v1093 = vld [vmem:[#allocation11 + $0x430] sm:$0xff]
    %v1094 = vld [vmem:[#allocation11 + $0x438] sm:$0xff]
    %v1095 = vld [vmem:[#allocation11 + $0x440] sm:$0xff]
    %v1096 = vld [vmem:[#allocation11 + $0x448] sm:$0xff]
    %v1097 = vld [vmem:[#allocation11 + $0x450] sm:$0xff]
    %v1098 = vld [vmem:[#allocation11 + $0x458] sm:$0xff]
    %v1099 = vld [vmem:[#allocation11 + $0x460] sm:$0xff]
    %v1100 = vld [vmem:[#allocation11 + $0x468] sm:$0xff]
    %v1101 = vld [vmem:[#allocation11 + $0x470] sm:$0xff]
    %v1102 = vld [vmem:[#allocation11 + $0x478] sm:$0xff]
    %v1103 = vld [vmem:[#allocation11 + $0x480] sm:$0xff]
    %v1104 = vld [vmem:[#allocation11 + $0x488] sm:$0xff]
    %v1105 = vld [vmem:[#allocation11 + $0x490] sm:$0xff]
    %v1106 = vld [vmem:[#allocation11 + $0x498] sm:$0xff]
    %v1107 = vld [vmem:[#allocation11 + $0x4a0] sm:$0xff]
    %v1108 = vld [vmem:[#allocation11 + $0x4a8] sm:$0xff]
    %v1109 = vld [vmem:[#allocation11 + $0x4b0] sm:$0xff]
    %v1110 = vld [vmem:[#allocation11 + $0x4b8] sm:$0xff]
    %v1111 = vld [vmem:[#allocation11 + $0x4c0] sm:$0xff]
    %v1112 = vld [vmem:[#allocation11 + $0x4c8] sm:$0xff]
    %v1113 = vld [vmem:[#allocation11 + $0x4d0] sm:$0xff]
    %v1114 = vld [vmem:[#allocation11 + $0x4d8] sm:$0xff]
    %v1115 = vld [vmem:[#allocation11 + $0x4e0] sm:$0xff]
    %v1116 = vld [vmem:[#allocation11 + $0x4e8] sm:$0xff]
    %v1117 = vld [vmem:[#allocation11 + $0x4f0] sm:$0xff]
    %v1118 = vld [vmem:[#allocation11 + $0x4f8] sm:$0xff]
    %v1119 = vld [vmem:[#allocation11 + $0x500] sm:$0xff]
    %v1120 = vld [vmem:[#allocation11 + $0x508] sm:$0xff]
    %v1121 = vld [vmem:[#allocation11 + $0x510] sm:$0xff]
    %v1122 = vld [vmem:[#allocation11 + $0x518] sm:$0xff]
    %v1123 = vld [vmem:[#allocation11 + $0x520] sm:$0xff]
    %v1124 = vld [vmem:[#allocation11 + $0x528] sm:$0xff]
    %v1125 = vld [vmem:[#allocation11 + $0x530] sm:$0xff]
    %v1126 = vld [vmem:[#allocation11 + $0x538] sm:$0xff]
    %v1127 = vld [vmem:[#allocation11 + $0x540] sm:$0xff]
    %v1128 = vld [vmem:[#allocation11 + $0x548] sm:$0xff]
    %v1129 = vld [vmem:[#allocation11 + $0x550] sm:$0xff]
    %v1130 = vld [vmem:[#allocation11 + $0x558] sm:$0xff]
    %v1131 = vld [vmem:[#allocation11 + $0x560] sm:$0xff]
    %v1132 = vld [vmem:[#allocation11 + $0x568] sm:$0xff]
    %v1133 = vld [vmem:[#allocation11 + $0x570] sm:$0xff]
    %v1134 = vld [vmem:[#allocation11 + $0x578] sm:$0xff]
    %v1135 = vld [vmem:[#allocation11 + $0x580] sm:$0xff]
    %v1136 = vld [vmem:[#allocation11 + $0x588] sm:$0xff]
    %v1137 = vld [vmem:[#allocation11 + $0x590] sm:$0xff]
    %v1138 = vld [vmem:[#allocation11 + $0x598] sm:$0xff]
    %v1139 = vld [vmem:[#allocation11 + $0x5a0] sm:$0xff]
    %v1140 = vld [vmem:[#allocation11 + $0x5a8] sm:$0xff]
    %v1141 = vld [vmem:[#allocation11 + $0x5b0] sm:$0xff]
    %v1142 = vld [vmem:[#allocation11 + $0x5b8] sm:$0xff]
    %v1143 = vld [vmem:[#allocation11 + $0x5c0] sm:$0xff]
    %v1144 = vld [vmem:[#allocation11 + $0x5c8] sm:$0xff]
    %v1145 = vld [vmem:[#allocation11 + $0x5d0] sm:$0xff]
    %v1146 = vld [vmem:[#allocation11 + $0x5d8] sm:$0xff]
    %v1147 = vld [vmem:[#allocation11 + $0x5e0] sm:$0xff]
    %v1148 = vld [vmem:[#allocation11 + $0x5e8] sm:$0xff]
    %v1149 = vld [vmem:[#allocation11 + $0x5f0] sm:$0xff]
    %v1150 = vld [vmem:[#allocation11 + $0x5f8] sm:$0xff]
    %v1151 = vld [vmem:[#allocation11 + $0x600] sm:$0xff]
    %v1152 = vld [vmem:[#allocation11 + $0x608] sm:$0xff]
    %v1153 = vld [vmem:[#allocation11 + $0x610] sm:$0xff]
    %v1154 = vld [vmem:[#allocation11 + $0x618] sm:$0xff]
    %v1155 = vld [vmem:[#allocation11 + $0x620] sm:$0xff]
    %v1156 = vld [vmem:[#allocation11 + $0x628] sm:$0xff]
    %v1157 = vld [vmem:[#allocation11 + $0x630] sm:$0xff]
    %v1158 = vld [vmem:[#allocation11 + $0x638] sm:$0xff]
    %v1159 = vld [vmem:[#allocation11 + $0x640] sm:$0xff]
    %v1160 = vld [vmem:[#allocation11 + $0x648] sm:$0xff]
    %v1161 = vld [vmem:[#allocation11 + $0x650] sm:$0xff]
    %v1162 = vld [vmem:[#allocation11 + $0x658] sm:$0xff]
    %v1163 = vld [vmem:[#allocation11 + $0x660] sm:$0xff]
    %v1164 = vld [vmem:[#allocation11 + $0x668] sm:$0xff]
    %v1165 = vld [vmem:[#allocation11 + $0x670] sm:$0xff]
    %v1166 = vld [vmem:[#allocation11 + $0x678] sm:$0xff]
    %v1167 = vld [vmem:[#allocation11 + $0x680] sm:$0xff]
    %v1168 = vld [vmem:[#allocation11 + $0x688] sm:$0xff]
    %v1169 = vld [vmem:[#allocation11 + $0x690] sm:$0xff]
    %v1170 = vld [vmem:[#allocation11 + $0x698] sm:$0xff]
    %v1171 = vld [vmem:[#allocation11 + $0x6a0] sm:$0xff]
    %v1172 = vld [vmem:[#allocation11 + $0x6a8] sm:$0xff]
    %v1173 = vld [vmem:[#allocation11 + $0x6b0] sm:$0xff]
    %v1174 = vld [vmem:[#allocation11 + $0x6b8] sm:$0xff]
    %v1175 = vld [vmem:[#allocation11 + $0x6c0] sm:$0xff]
    %v1176 = vld [vmem:[#allocation11 + $0x6c8] sm:$0xff]
    %v1177 = vld [vmem:[#allocation11 + $0x6d0] sm:$0xff]
    %v1178 = vld [vmem:[#allocation11 + $0x6d8] sm:$0xff]
    %v1179 = vld [vmem:[#allocation11 + $0x6e0] sm:$0xff]
    %v1180 = vld [vmem:[#allocation11 + $0x6e8] sm:$0xff]
    %v1181 = vld [vmem:[#allocation11 + $0x6f0] sm:$0xff]
    %v1182 = vld [vmem:[#allocation11 + $0x6f8] sm:$0xff]
    %v1183 = vld [vmem:[#allocation11 + $0x700] sm:$0xff]
    %v1184 = vld [vmem:[#allocation11 + $0x708] sm:$0xff]
    %v1185 = vld [vmem:[#allocation11 + $0x710] sm:$0xff]
    %v1186 = vld [vmem:[#allocation11 + $0x718] sm:$0xff]
    %v1187 = vld [vmem:[#allocation11 + $0x720] sm:$0xff]
    %v1188 = vld [vmem:[#allocation11 + $0x728] sm:$0xff]
    %v1189 = vld [vmem:[#allocation11 + $0x730] sm:$0xff]
    %v1190 = vld [vmem:[#allocation11 + $0x738] sm:$0xff]
    %v1191 = vld [vmem:[#allocation11 + $0x740] sm:$0xff]
    %v1192 = vld [vmem:[#allocation11 + $0x748] sm:$0xff]
    %v1193 = vld [vmem:[#allocation11 + $0x750] sm:$0xff]
    %v1194 = vld [vmem:[#allocation11 + $0x758] sm:$0xff]
    %v1195 = vld [vmem:[#allocation11 + $0x760] sm:$0xff]
    %v1196 = vld [vmem:[#allocation11 + $0x768] sm:$0xff]
    %v1197 = vld [vmem:[#allocation11 + $0x770] sm:$0xff]
    %v1198 = vld [vmem:[#allocation11 + $0x778] sm:$0xff]
    %v1199 = vld [vmem:[#allocation11 + $0x780] sm:$0xff]
    %v1200 = vld [vmem:[#allocation11 + $0x788] sm:$0xff]
    %v1201 = vld [vmem:[#allocation11 + $0x790] sm:$0xff]
    %v1202 = vld [vmem:[#allocation11 + $0x798] sm:$0xff]
    %v1203 = vld [vmem:[#allocation11 + $0x7a0] sm:$0xff]
    %v1204 = vld [vmem:[#allocation11 + $0x7a8] sm:$0xff]
    %v1205 = vld [vmem:[#allocation11 + $0x7b0] sm:$0xff]
    %v1206 = vld [vmem:[#allocation11 + $0x7b8] sm:$0xff]
    %v1207 = vld [vmem:[#allocation11 + $0x7c0] sm:$0xff]
    %v1208 = vld [vmem:[#allocation11 + $0x7c8] sm:$0xff]
    %v1209 = vld [vmem:[#allocation11 + $0x7d0] sm:$0xff]
    %v1210 = vld [vmem:[#allocation11 + $0x7d8] sm:$0xff]
    %v1211 = vld [vmem:[#allocation11 + $0x7e0] sm:$0xff]
    %v1212 = vld [vmem:[#allocation11 + $0x7e8] sm:$0xff]
    %v1213 = vld [vmem:[#allocation11 + $0x7f0] sm:$0xff]
    %v1214 = vld [vmem:[#allocation11 + $0x7f8] sm:$0xff]
    %1215 = vmatprep.subr.mxu0 %v1080
    %1216 = vmatpush1.msra.mxu0 %v1079
    %1217 = vmatprep.subr.mxu0 %v1072
    %1218 = vmatpush1.msra.mxu0 %v1071
    %1219 = vmatprep.subr.mxu0 %v1064
    %1220 = vmatpush1.msra.mxu0 %v1063
    %1221 = vmatprep.subr.mxu0 %v1056
    %1222 = vmatpush1.msra.mxu0 %v1055
    %1223 = vmatprep.subr.mxu0 %v1048
    %1224 = vmatpush1.msra.mxu0 %v1047
    %1225 = vmatprep.subr.mxu0 %v1040
    %1226 = vmatpush1.msra.mxu0 %v1039
    %1227 = vmatprep.subr.mxu0 %v1032
    %1228 = vmatpush1.msra.mxu0 %v1031
    %1229 = vmatprep.subr.mxu0 %v1024
    %1230 = vmatpush1.msra.mxu0 %v1023
    %1231 = vmatprep.subr.mxu0 %v1016
    %1232 = vmatpush1.msra.mxu0 %v1015
    %1233 = vmatprep.subr.mxu0 %v1008
    %1234 = vmatpush1.msra.mxu0 %v1007
    %1235 = vmatprep.subr.mxu0 %v1000
    %1236 = vmatpush1.msra.mxu0 %v999
    %1237 = vmatprep.subr.mxu0 %v992
    %1238 = vmatpush1.msra.mxu0 %v991
    %1239 = vmatprep.subr.mxu0 %v984
    %1240 = vmatpush1.msra.mxu0 %v983
    %1241 = vmatprep.subr.mxu0 %v976
    %1242 = vmatpush1.msra.mxu0 %v975
    %1243 = vmatprep.subr.mxu0 %v968
    %1244 = vmatpush1.msra.mxu0 %v967
    %1245 = vmatprep.subr.mxu0 %v960
    %1246 = vmatpush1.msra.mxu0 %v959
    %1247 = vmatprep.subr.mxu0 %v1208
    %1248 = vmatpush2.msra.mxu0 %v1207
    %1249 = vmatprep.subr.mxu0 %v1200
    %1250 = vmatpush2.msra.mxu0 %v1199
    %1251 = vmatprep.subr.mxu0 %v1192
    %1252 = vmatpush2.msra.mxu0 %v1191
    %1253 = vmatprep.subr.mxu0 %v1184
    %1254 = vmatpush2.msra.mxu0 %v1183
    %1255 = vmatprep.subr.mxu0 %v1176
    %1256 = vmatpush2.msra.mxu0 %v1175
    %1257 = vmatprep.subr.mxu0 %v1168
    %1258 = vmatpush2.msra.mxu0 %v1167
    %1259 = vmatprep.subr.mxu0 %v1160
    %1260 = vmatpush2.msra.mxu0 %v1159
    %1261 = vmatprep.subr.mxu0 %v1152
    %1262 = vmatpush2.msra.mxu0 %v1151
    %1263 = vmatprep.subr.mxu0 %v1144
    %1264 = vmatpush2.msra.mxu0 %v1143
    %1265 = vmatprep.subr.mxu0 %v1136
    %1266 = vmatpush2.msra.mxu0 %v1135
    %1267 = vmatprep.subr.mxu0 %v1128
    %1268 = vmatpush2.msra.mxu0 %v1127
    %1269 = vmatprep.subr.mxu0 %v1120
    %1270 = vmatpush2.msra.mxu0 %v1119
    %1271 = vmatprep.subr.mxu0 %v1112
    %1272 = vmatpush2.msra.mxu0 %v1111
    %1273 = vmatprep.subr.mxu0 %v1104
    %1274 = vmatpush2.msra.mxu0 %v1103
    %1275 = vmatprep.subr.mxu0 %v1096
    %1276 = vmatpush2.msra.mxu0 %v1095
    %1277 = vmatprep.subr.mxu0 %v1088
    %1278 = vmatpush2.msra.mxu0 %v1087
    %1279 = vmatprep.mubr.f32.mxu0 %v295
    %1280 = vmatmul.mubr.f32.gmra.mxu0 %v294
    %v1281 = vpop.f32.mrf.mxu0
    %v1282 = vadd.f32 0.0, %v1281
    %v1283 = vpop.f32.mrf.mxu0
    %v1284 = vadd.f32 0.0, %v1283
    %1285 = vdwg.mxu0
    %1286 = vmatprep.subr.mxu0 %v1082
    %1287 = vmatpush1.msra.mxu0 %v1081
    %1288 = vmatprep.subr.mxu0 %v1074
    %1289 = vmatpush1.msra.mxu0 %v1073
    %1290 = vmatprep.subr.mxu0 %v1066
    %1291 = vmatpush1.msra.mxu0 %v1065
    %1292 = vmatprep.subr.mxu0 %v1058
    %1293 = vmatpush1.msra.mxu0 %v1057
    %1294 = vmatprep.subr.mxu0 %v1050
    %1295 = vmatpush1.msra.mxu0 %v1049
    %1296 = vmatprep.subr.mxu0 %v1042
    %1297 = vmatpush1.msra.mxu0 %v1041
    %1298 = vmatprep.subr.mxu0 %v1034
    %1299 = vmatpush1.msra.mxu0 %v1033
    %1300 = vmatprep.subr.mxu0 %v1026
    %1301 = vmatpush1.msra.mxu0 %v1025
    %1302 = vmatprep.subr.mxu0 %v1018
    %1303 = vmatpush1.msra.mxu0 %v1017
    %1304 = vmatprep.subr.mxu0 %v1010
    %1305 = vmatpush1.msra.mxu0 %v1009
    %1306 = vmatprep.subr.mxu0 %v1002
    %1307 = vmatpush1.msra.mxu0 %v1001
    %1308 = vmatprep.subr.mxu0 %v994
    %1309 = vmatpush1.msra.mxu0 %v993
    %1310 = vmatprep.subr.mxu0 %v986
    %1311 = vmatpush1.msra.mxu0 %v985
    %1312 = vmatprep.subr.mxu0 %v978
    %1313 = vmatpush1.msra.mxu0 %v977
    %1314 = vmatprep.subr.mxu0 %v970
    %1315 = vmatpush1.msra.mxu0 %v969
    %1316 = vmatprep.subr.mxu0 %v962
    %1317 = vmatpush1.msra.mxu0 %v961
    %1318 = vmatprep.subr.mxu0 %v1210
    %1319 = vmatpush2.msra.mxu0 %v1209
    %1320 = vmatprep.subr.mxu0 %v1202
    %1321 = vmatpush2.msra.mxu0 %v1201
    %1322 = vmatprep.subr.mxu0 %v1194
    %1323 = vmatpush2.msra.mxu0 %v1193
    %1324 = vmatprep.subr.mxu0 %v1186
    %1325 = vmatpush2.msra.mxu0 %v1185
    %1326 = vmatprep.subr.mxu0 %v1178
    %1327 = vmatpush2.msra.mxu0 %v1177
    %1328 = vmatprep.subr.mxu0 %v1170
    %1329 = vmatpush2.msra.mxu0 %v1169
    %1330 = vmatprep.subr.mxu0 %v1162
    %1331 = vmatpush2.msra.mxu0 %v1161
    %1332 = vmatprep.subr.mxu0 %v1154
    %1333 = vmatpush2.msra.mxu0 %v1153
    %1334 = vmatprep.subr.mxu0 %v1146
    %1335 = vmatpush2.msra.mxu0 %v1145
    %1336 = vmatprep.subr.mxu0 %v1138
    %1337 = vmatpush2.msra.mxu0 %v1137
    %1338 = vmatprep.subr.mxu0 %v1130
    %1339 = vmatpush2.msra.mxu0 %v1129
    %1340 = vmatprep.subr.mxu0 %v1122
    %1341 = vmatpush2.msra.mxu0 %v1121
    %1342 = vmatprep.subr.mxu0 %v1114
    %1343 = vmatpush2.msra.mxu0 %v1113
    %1344 = vmatprep.subr.mxu0 %v1106
    %1345 = vmatpush2.msra.mxu0 %v1105
    %1346 = vmatprep.subr.mxu0 %v1098
    %1347 = vmatpush2.msra.mxu0 %v1097
    %1348 = vmatprep.subr.mxu0 %v1090
    %1349 = vmatpush2.msra.mxu0 %v1089
    %1350 = vmatprep.mubr.f32.mxu0 %v295
    %1351 = vmatmul.mubr.f32.gmra.mxu0 %v294
    %v1352 = vpop.f32.mrf.mxu0
    %v1353 = vadd.f32 0.0, %v1352
    %v1354 = vpop.f32.mrf.mxu0
    %v1355 = vadd.f32 0.0, %v1354
    %1356 = vdwg.mxu0
    %1357 = vmatprep.subr.mxu0 %v1084
    %1358 = vmatpush1.msra.mxu0 %v1083
    %1359 = vmatprep.subr.mxu0 %v1076
    %1360 = vmatpush1.msra.mxu0 %v1075
    %1361 = vmatprep.subr.mxu0 %v1068
    %1362 = vmatpush1.msra.mxu0 %v1067
    %1363 = vmatprep.subr.mxu0 %v1060
    %1364 = vmatpush1.msra.mxu0 %v1059
    %1365 = vmatprep.subr.mxu0 %v1052
    %1366 = vmatpush1.msra.mxu0 %v1051
    %1367 = vmatprep.subr.mxu0 %v1044
    %1368 = vmatpush1.msra.mxu0 %v1043
    %1369 = vmatprep.subr.mxu0 %v1036
    %1370 = vmatpush1.msra.mxu0 %v1035
    %1371 = vmatprep.subr.mxu0 %v1028
    %1372 = vmatpush1.msra.mxu0 %v1027
    %1373 = vmatprep.subr.mxu0 %v1020
    %1374 = vmatpush1.msra.mxu0 %v1019
    %1375 = vmatprep.subr.mxu0 %v1012
    %1376 = vmatpush1.msra.mxu0 %v1011
    %1377 = vmatprep.subr.mxu0 %v1004
    %1378 = vmatpush1.msra.mxu0 %v1003
    %1379 = vmatprep.subr.mxu0 %v996
    %1380 = vmatpush1.msra.mxu0 %v995
    %1381 = vmatprep.subr.mxu0 %v988
    %1382 = vmatpush1.msra.mxu0 %v987
    %1383 = vmatprep.subr.mxu0 %v980
    %1384 = vmatpush1.msra.mxu0 %v979
    %1385 = vmatprep.subr.mxu0 %v972
    %1386 = vmatpush1.msra.mxu0 %v971
    %1387 = vmatprep.subr.mxu0 %v964
    %1388 = vmatpush1.msra.mxu0 %v963
    %1389 = vmatprep.subr.mxu0 %v1212
    %1390 = vmatpush2.msra.mxu0 %v1211
    %1391 = vmatprep.subr.mxu0 %v1204
    %1392 = vmatpush2.msra.mxu0 %v1203
    %1393 = vmatprep.subr.mxu0 %v1196
    %1394 = vmatpush2.msra.mxu0 %v1195
    %1395 = vmatprep.subr.mxu0 %v1188
    %1396 = vmatpush2.msra.mxu0 %v1187
    %1397 = vmatprep.subr.mxu0 %v1180
    %1398 = vmatpush2.msra.mxu0 %v1179
    %1399 = vmatprep.subr.mxu0 %v1172
    %1400 = vmatpush2.msra.mxu0 %v1171
    %1401 = vmatprep.subr.mxu0 %v1164
    %1402 = vmatpush2.msra.mxu0 %v1163
    %1403 = vmatprep.subr.mxu0 %v1156
    %1404 = vmatpush2.msra.mxu0 %v1155
    %1405 = vmatprep.subr.mxu0 %v1148
    %1406 = vmatpush2.msra.mxu0 %v1147
    %1407 = vmatprep.subr.mxu0 %v1140
    %1408 = vmatpush2.msra.mxu0 %v1139
    %1409 = vmatprep.subr.mxu0 %v1132
    %1410 = vmatpush2.msra.mxu0 %v1131
    %1411 = vmatprep.subr.mxu0 %v1124
    %1412 = vmatpush2.msra.mxu0 %v1123
    %1413 = vmatprep.subr.mxu0 %v1116
    %1414 = vmatpush2.msra.mxu0 %v1115
    %1415 = vmatprep.subr.mxu0 %v1108
    %1416 = vmatpush2.msra.mxu0 %v1107
    %1417 = vmatprep.subr.mxu0 %v1100
    %1418 = vmatpush2.msra.mxu0 %v1099
    %1419 = vmatprep.subr.mxu0 %v1092
    %1420 = vmatpush2.msra.mxu0 %v1091
    %1421 = vmatprep.mubr.f32.mxu0 %v295
    %1422 = vmatmul.mubr.f32.gmra.mxu0 %v294
    %v1423 = vpop.f32.mrf.mxu0
    %v1424 = vadd.f32 0.0, %v1423
    %v1425 = vpop.f32.mrf.mxu0
    %v1426 = vadd.f32 0.0, %v1425
    %1427 = vdwg.mxu0
    %1428 = vmatprep.subr.mxu0 %v1086
    %1429 = vmatpush1.msra.mxu0 %v1085
    %1430 = vmatprep.subr.mxu0 %v1078
    %1431 = vmatpush1.msra.mxu0 %v1077
    %1432 = vmatprep.subr.mxu0 %v1070
    %1433 = vmatpush1.msra.mxu0 %v1069
    %1434 = vmatprep.subr.mxu0 %v1062
    %1435 = vmatpush1.msra.mxu0 %v1061
    %1436 = vmatprep.subr.mxu0 %v1054
    %1437 = vmatpush1.msra.mxu0 %v1053
    %1438 = vmatprep.subr.mxu0 %v1046
    %1439 = vmatpush1.msra.mxu0 %v1045
    %1440 = vmatprep.subr.mxu0 %v1038
    %1441 = vmatpush1.msra.mxu0 %v1037
    %1442 = vmatprep.subr.mxu0 %v1030
    %1443 = vmatpush1.msra.mxu0 %v1029
    %1444 = vmatprep.subr.mxu0 %v1022
    %1445 = vmatpush1.msra.mxu0 %v1021
    %1446 = vmatprep.subr.mxu0 %v1014
    %1447 = vmatpush1.msra.mxu0 %v1013
    %1448 = vmatprep.subr.mxu0 %v1006
    %1449 = vmatpush1.msra.mxu0 %v1005
    %1450 = vmatprep.subr.mxu0 %v998
    %1451 = vmatpush1.msra.mxu0 %v997
    %1452 = vmatprep.subr.mxu0 %v990
    %1453 = vmatpush1.msra.mxu0 %v989
    %1454 = vmatprep.subr.mxu0 %v982
    %1455 = vmatpush1.msra.mxu0 %v981
    %1456 = vmatprep.subr.mxu0 %v974
    %1457 = vmatpush1.msra.mxu0 %v973
    %1458 = vmatprep.subr.mxu0 %v966
    %1459 = vmatpush1.msra.mxu0 %v965
    %1460 = vmatprep.subr.mxu0 %v1214
    %1461 = vmatpush2.msra.mxu0 %v1213
    %1462 = vmatprep.subr.mxu0 %v1206
    %1463 = vmatpush2.msra.mxu0 %v1205
    %1464 = vmatprep.subr.mxu0 %v1198
    %1465 = vmatpush2.msra.mxu0 %v1197
    %1466 = vmatprep.subr.mxu0 %v1190
    %1467 = vmatpush2.msra.mxu0 %v1189
    %1468 = vmatprep.subr.mxu0 %v1182
    %1469 = vmatpush2.msra.mxu0 %v1181
    %1470 = vmatprep.subr.mxu0 %v1174
    %1471 = vmatpush2.msra.mxu0 %v1173
    %1472 = vmatprep.subr.mxu0 %v1166
    %1473 = vmatpush2.msra.mxu0 %v1165
    %1474 = vmatprep.subr.mxu0 %v1158
    %1475 = vmatpush2.msra.mxu0 %v1157
    %1476 = vmatprep.subr.mxu0 %v1150
    %1477 = vmatpush2.msra.mxu0 %v1149
    %1478 = vmatprep.subr.mxu0 %v1142
    %1479 = vmatpush2.msra.mxu0 %v1141
    %1480 = vmatprep.subr.mxu0 %v1134
    %1481 = vmatpush2.msra.mxu0 %v1133
    %1482 = vmatprep.subr.mxu0 %v1126
    %1483 = vmatpush2.msra.mxu0 %v1125
    %1484 = vmatprep.subr.mxu0 %v1118
    %1485 = vmatpush2.msra.mxu0 %v1117
    %1486 = vmatprep.subr.mxu0 %v1110
    %1487 = vmatpush2.msra.mxu0 %v1109
    %1488 = vmatprep.subr.mxu0 %v1102
    %1489 = vmatpush2.msra.mxu0 %v1101
    %1490 = vmatprep.subr.mxu0 %v1094
    %1491 = vmatpush2.msra.mxu0 %v1093
    %1492 = vmatprep.mubr.f32.mxu0 %v295
    %1493 = vmatmul.mubr.f32.gmra.mxu0 %v294
    %v1494 = vpop.f32.mrf.mxu0
    %v1495 = vadd.f32 0.0, %v1494
    %v1496 = vpop.f32.mrf.mxu0
    %v1497 = vadd.f32 0.0, %v1496
    %1498 = vdwg.mxu0
    %v1499 = vld [vmem:[#allocation13] sm:$0xff]
    %v1500 = vld [vmem:[#allocation13 + $0x8] sm:$0xff]
    %v1501 = vld [vmem:[#allocation13 + $0x10] sm:$0xff]
    %v1502 = vld [vmem:[#allocation13 + $0x18] sm:$0xff]
    %v1503 = vld [vmem:[#allocation13 + $0x20] sm:$0xff]
    %v1504 = vld [vmem:[#allocation13 + $0x28] sm:$0xff]
    %v1505 = vld [vmem:[#allocation13 + $0x30] sm:$0xff]
    %v1506 = vld [vmem:[#allocation13 + $0x38] sm:$0xff]
    %v1507 = vld [vmem:[#allocation13 + $0x40] sm:$0xff]
    %v1508 = vld [vmem:[#allocation13 + $0x48] sm:$0xff]
    %v1509 = vld [vmem:[#allocation13 + $0x50] sm:$0xff]
    %v1510 = vld [vmem:[#allocation13 + $0x58] sm:$0xff]
    %v1511 = vld [vmem:[#allocation13 + $0x60] sm:$0xff]
    %v1512 = vld [vmem:[#allocation13 + $0x68] sm:$0xff]
    %v1513 = vld [vmem:[#allocation13 + $0x70] sm:$0xff]
    %v1514 = vld [vmem:[#allocation13 + $0x78] sm:$0xff]
    %v1515 = vld [vmem:[#allocation13 + $0x80] sm:$0xff]
    %v1516 = vld [vmem:[#allocation13 + $0x88] sm:$0xff]
    %v1517 = vld [vmem:[#allocation13 + $0x90] sm:$0xff]
    %v1518 = vld [vmem:[#allocation13 + $0x98] sm:$0xff]
    %v1519 = vld [vmem:[#allocation13 + $0xa0] sm:$0xff]
    %v1520 = vld [vmem:[#allocation13 + $0xa8] sm:$0xff]
    %v1521 = vld [vmem:[#allocation13 + $0xb0] sm:$0xff]
    %v1522 = vld [vmem:[#allocation13 + $0xb8] sm:$0xff]
    %v1523 = vld [vmem:[#allocation13 + $0xc0] sm:$0xff]
    %v1524 = vld [vmem:[#allocation13 + $0xc8] sm:$0xff]
    %v1525 = vld [vmem:[#allocation13 + $0xd0] sm:$0xff]
    %v1526 = vld [vmem:[#allocation13 + $0xd8] sm:$0xff]
    %v1527 = vld [vmem:[#allocation13 + $0xe0] sm:$0xff]
    %v1528 = vld [vmem:[#allocation13 + $0xe8] sm:$0xff]
    %v1529 = vld [vmem:[#allocation13 + $0xf0] sm:$0xff]
    %v1530 = vld [vmem:[#allocation13 + $0xf8] sm:$0xff]
    %v1531 = vld [vmem:[#allocation13 + $0x100] sm:$0xff]
    %v1532 = vld [vmem:[#allocation13 + $0x108] sm:$0xff]
    %v1533 = vld [vmem:[#allocation13 + $0x110] sm:$0xff]
    %v1534 = vld [vmem:[#allocation13 + $0x118] sm:$0xff]
    %v1535 = vld [vmem:[#allocation13 + $0x120] sm:$0xff]
    %v1536 = vld [vmem:[#allocation13 + $0x128] sm:$0xff]
    %v1537 = vld [vmem:[#allocation13 + $0x130] sm:$0xff]
    %v1538 = vld [vmem:[#allocation13 + $0x138] sm:$0xff]
    %v1539 = vld [vmem:[#allocation13 + $0x140] sm:$0xff]
    %v1540 = vld [vmem:[#allocation13 + $0x148] sm:$0xff]
    %v1541 = vld [vmem:[#allocation13 + $0x150] sm:$0xff]
    %v1542 = vld [vmem:[#allocation13 + $0x158] sm:$0xff]
    %v1543 = vld [vmem:[#allocation13 + $0x160] sm:$0xff]
    %v1544 = vld [vmem:[#allocation13 + $0x168] sm:$0xff]
    %v1545 = vld [vmem:[#allocation13 + $0x170] sm:$0xff]
    %v1546 = vld [vmem:[#allocation13 + $0x178] sm:$0xff]
    %v1547 = vld [vmem:[#allocation13 + $0x180] sm:$0xff]
    %v1548 = vld [vmem:[#allocation13 + $0x188] sm:$0xff]
    %v1549 = vld [vmem:[#allocation13 + $0x190] sm:$0xff]
    %v1550 = vld [vmem:[#allocation13 + $0x198] sm:$0xff]
    %v1551 = vld [vmem:[#allocation13 + $0x1a0] sm:$0xff]
    %v1552 = vld [vmem:[#allocation13 + $0x1a8] sm:$0xff]
    %v1553 = vld [vmem:[#allocation13 + $0x1b0] sm:$0xff]
    %v1554 = vld [vmem:[#allocation13 + $0x1b8] sm:$0xff]
    %v1555 = vld [vmem:[#allocation13 + $0x1c0] sm:$0xff]
    %v1556 = vld [vmem:[#allocation13 + $0x1c8] sm:$0xff]
    %v1557 = vld [vmem:[#allocation13 + $0x1d0] sm:$0xff]
    %v1558 = vld [vmem:[#allocation13 + $0x1d8] sm:$0xff]
    %v1559 = vld [vmem:[#allocation13 + $0x1e0] sm:$0xff]
    %v1560 = vld [vmem:[#allocation13 + $0x1e8] sm:$0xff]
    %v1561 = vld [vmem:[#allocation13 + $0x1f0] sm:$0xff]
    %v1562 = vld [vmem:[#allocation13 + $0x1f8] sm:$0xff]
    %v1563 = vld [vmem:[#allocation13 + $0x200] sm:$0xff]
    %v1564 = vld [vmem:[#allocation13 + $0x208] sm:$0xff]
    %v1565 = vld [vmem:[#allocation13 + $0x210] sm:$0xff]
    %v1566 = vld [vmem:[#allocation13 + $0x218] sm:$0xff]
    %v1567 = vld [vmem:[#allocation13 + $0x220] sm:$0xff]
    %v1568 = vld [vmem:[#allocation13 + $0x228] sm:$0xff]
    %v1569 = vld [vmem:[#allocation13 + $0x230] sm:$0xff]
    %v1570 = vld [vmem:[#allocation13 + $0x238] sm:$0xff]
    %v1571 = vld [vmem:[#allocation13 + $0x240] sm:$0xff]
    %v1572 = vld [vmem:[#allocation13 + $0x248] sm:$0xff]
    %v1573 = vld [vmem:[#allocation13 + $0x250] sm:$0xff]
    %v1574 = vld [vmem:[#allocation13 + $0x258] sm:$0xff]
    %v1575 = vld [vmem:[#allocation13 + $0x260] sm:$0xff]
    %v1576 = vld [vmem:[#allocation13 + $0x268] sm:$0xff]
    %v1577 = vld [vmem:[#allocation13 + $0x270] sm:$0xff]
    %v1578 = vld [vmem:[#allocation13 + $0x278] sm:$0xff]
    %v1579 = vld [vmem:[#allocation13 + $0x280] sm:$0xff]
    %v1580 = vld [vmem:[#allocation13 + $0x288] sm:$0xff]
    %v1581 = vld [vmem:[#allocation13 + $0x290] sm:$0xff]
    %v1582 = vld [vmem:[#allocation13 + $0x298] sm:$0xff]
    %v1583 = vld [vmem:[#allocation13 + $0x2a0] sm:$0xff]
    %v1584 = vld [vmem:[#allocation13 + $0x2a8] sm:$0xff]
    %v1585 = vld [vmem:[#allocation13 + $0x2b0] sm:$0xff]
    %v1586 = vld [vmem:[#allocation13 + $0x2b8] sm:$0xff]
    %v1587 = vld [vmem:[#allocation13 + $0x2c0] sm:$0xff]
    %v1588 = vld [vmem:[#allocation13 + $0x2c8] sm:$0xff]
    %v1589 = vld [vmem:[#allocation13 + $0x2d0] sm:$0xff]
    %v1590 = vld [vmem:[#allocation13 + $0x2d8] sm:$0xff]
    %v1591 = vld [vmem:[#allocation13 + $0x2e0] sm:$0xff]
    %v1592 = vld [vmem:[#allocation13 + $0x2e8] sm:$0xff]
    %v1593 = vld [vmem:[#allocation13 + $0x2f0] sm:$0xff]
    %v1594 = vld [vmem:[#allocation13 + $0x2f8] sm:$0xff]
    %v1595 = vld [vmem:[#allocation13 + $0x300] sm:$0xff]
    %v1596 = vld [vmem:[#allocation13 + $0x308] sm:$0xff]
    %v1597 = vld [vmem:[#allocation13 + $0x310] sm:$0xff]
    %v1598 = vld [vmem:[#allocation13 + $0x318] sm:$0xff]
    %v1599 = vld [vmem:[#allocation13 + $0x320] sm:$0xff]
    %v1600 = vld [vmem:[#allocation13 + $0x328] sm:$0xff]
    %v1601 = vld [vmem:[#allocation13 + $0x330] sm:$0xff]
    %v1602 = vld [vmem:[#allocation13 + $0x338] sm:$0xff]
    %v1603 = vld [vmem:[#allocation13 + $0x340] sm:$0xff]
    %v1604 = vld [vmem:[#allocation13 + $0x348] sm:$0xff]
    %v1605 = vld [vmem:[#allocation13 + $0x350] sm:$0xff]
    %v1606 = vld [vmem:[#allocation13 + $0x358] sm:$0xff]
    %v1607 = vld [vmem:[#allocation13 + $0x360] sm:$0xff]
    %v1608 = vld [vmem:[#allocation13 + $0x368] sm:$0xff]
    %v1609 = vld [vmem:[#allocation13 + $0x370] sm:$0xff]
    %v1610 = vld [vmem:[#allocation13 + $0x378] sm:$0xff]
    %v1611 = vld [vmem:[#allocation13 + $0x380] sm:$0xff]
    %v1612 = vld [vmem:[#allocation13 + $0x388] sm:$0xff]
    %v1613 = vld [vmem:[#allocation13 + $0x390] sm:$0xff]
    %v1614 = vld [vmem:[#allocation13 + $0x398] sm:$0xff]
    %v1615 = vld [vmem:[#allocation13 + $0x3a0] sm:$0xff]
    %v1616 = vld [vmem:[#allocation13 + $0x3a8] sm:$0xff]
    %v1617 = vld [vmem:[#allocation13 + $0x3b0] sm:$0xff]
    %v1618 = vld [vmem:[#allocation13 + $0x3b8] sm:$0xff]
    %v1619 = vld [vmem:[#allocation13 + $0x3c0] sm:$0xff]
    %v1620 = vld [vmem:[#allocation13 + $0x3c8] sm:$0xff]
    %v1621 = vld [vmem:[#allocation13 + $0x3d0] sm:$0xff]
    %v1622 = vld [vmem:[#allocation13 + $0x3d8] sm:$0xff]
    %v1623 = vld [vmem:[#allocation13 + $0x3e0] sm:$0xff]
    %v1624 = vld [vmem:[#allocation13 + $0x3e8] sm:$0xff]
    %v1625 = vld [vmem:[#allocation13 + $0x3f0] sm:$0xff]
    %v1626 = vld [vmem:[#allocation13 + $0x3f8] sm:$0xff]
    %v1627 = vld [vmem:[#allocation13 + $0x400] sm:$0xff]
    %v1628 = vld [vmem:[#allocation13 + $0x408] sm:$0xff]
    %v1629 = vld [vmem:[#allocation13 + $0x410] sm:$0xff]
    %v1630 = vld [vmem:[#allocation13 + $0x418] sm:$0xff]
    %v1631 = vld [vmem:[#allocation13 + $0x420] sm:$0xff]
    %v1632 = vld [vmem:[#allocation13 + $0x428] sm:$0xff]
    %v1633 = vld [vmem:[#allocation13 + $0x430] sm:$0xff]
    %v1634 = vld [vmem:[#allocation13 + $0x438] sm:$0xff]
    %v1635 = vld [vmem:[#allocation13 + $0x440] sm:$0xff]
    %v1636 = vld [vmem:[#allocation13 + $0x448] sm:$0xff]
    %v1637 = vld [vmem:[#allocation13 + $0x450] sm:$0xff]
    %v1638 = vld [vmem:[#allocation13 + $0x458] sm:$0xff]
    %v1639 = vld [vmem:[#allocation13 + $0x460] sm:$0xff]
    %v1640 = vld [vmem:[#allocation13 + $0x468] sm:$0xff]
    %v1641 = vld [vmem:[#allocation13 + $0x470] sm:$0xff]
    %v1642 = vld [vmem:[#allocation13 + $0x478] sm:$0xff]
    %v1643 = vld [vmem:[#allocation13 + $0x480] sm:$0xff]
    %v1644 = vld [vmem:[#allocation13 + $0x488] sm:$0xff]
    %v1645 = vld [vmem:[#allocation13 + $0x490] sm:$0xff]
    %v1646 = vld [vmem:[#allocation13 + $0x498] sm:$0xff]
    %v1647 = vld [vmem:[#allocation13 + $0x4a0] sm:$0xff]
    %v1648 = vld [vmem:[#allocation13 + $0x4a8] sm:$0xff]
    %v1649 = vld [vmem:[#allocation13 + $0x4b0] sm:$0xff]
    %v1650 = vld [vmem:[#allocation13 + $0x4b8] sm:$0xff]
    %v1651 = vld [vmem:[#allocation13 + $0x4c0] sm:$0xff]
    %v1652 = vld [vmem:[#allocation13 + $0x4c8] sm:$0xff]
    %v1653 = vld [vmem:[#allocation13 + $0x4d0] sm:$0xff]
    %v1654 = vld [vmem:[#allocation13 + $0x4d8] sm:$0xff]
    %v1655 = vld [vmem:[#allocation13 + $0x4e0] sm:$0xff]
    %v1656 = vld [vmem:[#allocation13 + $0x4e8] sm:$0xff]
    %v1657 = vld [vmem:[#allocation13 + $0x4f0] sm:$0xff]
    %v1658 = vld [vmem:[#allocation13 + $0x4f8] sm:$0xff]
    %v1659 = vld [vmem:[#allocation13 + $0x500] sm:$0xff]
    %v1660 = vld [vmem:[#allocation13 + $0x508] sm:$0xff]
    %v1661 = vld [vmem:[#allocation13 + $0x510] sm:$0xff]
    %v1662 = vld [vmem:[#allocation13 + $0x518] sm:$0xff]
    %v1663 = vld [vmem:[#allocation13 + $0x520] sm:$0xff]
    %v1664 = vld [vmem:[#allocation13 + $0x528] sm:$0xff]
    %v1665 = vld [vmem:[#allocation13 + $0x530] sm:$0xff]
    %v1666 = vld [vmem:[#allocation13 + $0x538] sm:$0xff]
    %v1667 = vld [vmem:[#allocation13 + $0x540] sm:$0xff]
    %v1668 = vld [vmem:[#allocation13 + $0x548] sm:$0xff]
    %v1669 = vld [vmem:[#allocation13 + $0x550] sm:$0xff]
    %v1670 = vld [vmem:[#allocation13 + $0x558] sm:$0xff]
    %v1671 = vld [vmem:[#allocation13 + $0x560] sm:$0xff]
    %v1672 = vld [vmem:[#allocation13 + $0x568] sm:$0xff]
    %v1673 = vld [vmem:[#allocation13 + $0x570] sm:$0xff]
    %v1674 = vld [vmem:[#allocation13 + $0x578] sm:$0xff]
    %v1675 = vld [vmem:[#allocation13 + $0x580] sm:$0xff]
    %v1676 = vld [vmem:[#allocation13 + $0x588] sm:$0xff]
    %v1677 = vld [vmem:[#allocation13 + $0x590] sm:$0xff]
    %v1678 = vld [vmem:[#allocation13 + $0x598] sm:$0xff]
    %v1679 = vld [vmem:[#allocation13 + $0x5a0] sm:$0xff]
    %v1680 = vld [vmem:[#allocation13 + $0x5a8] sm:$0xff]
    %v1681 = vld [vmem:[#allocation13 + $0x5b0] sm:$0xff]
    %v1682 = vld [vmem:[#allocation13 + $0x5b8] sm:$0xff]
    %v1683 = vld [vmem:[#allocation13 + $0x5c0] sm:$0xff]
    %v1684 = vld [vmem:[#allocation13 + $0x5c8] sm:$0xff]
    %v1685 = vld [vmem:[#allocation13 + $0x5d0] sm:$0xff]
    %v1686 = vld [vmem:[#allocation13 + $0x5d8] sm:$0xff]
    %v1687 = vld [vmem:[#allocation13 + $0x5e0] sm:$0xff]
    %v1688 = vld [vmem:[#allocation13 + $0x5e8] sm:$0xff]
    %v1689 = vld [vmem:[#allocation13 + $0x5f0] sm:$0xff]
    %v1690 = vld [vmem:[#allocation13 + $0x5f8] sm:$0xff]
    %v1691 = vld [vmem:[#allocation13 + $0x600] sm:$0xff]
    %v1692 = vld [vmem:[#allocation13 + $0x608] sm:$0xff]
    %v1693 = vld [vmem:[#allocation13 + $0x610] sm:$0xff]
    %v1694 = vld [vmem:[#allocation13 + $0x618] sm:$0xff]
    %v1695 = vld [vmem:[#allocation13 + $0x620] sm:$0xff]
    %v1696 = vld [vmem:[#allocation13 + $0x628] sm:$0xff]
    %v1697 = vld [vmem:[#allocation13 + $0x630] sm:$0xff]
    %v1698 = vld [vmem:[#allocation13 + $0x638] sm:$0xff]
    %v1699 = vld [vmem:[#allocation13 + $0x640] sm:$0xff]
    %v1700 = vld [vmem:[#allocation13 + $0x648] sm:$0xff]
    %v1701 = vld [vmem:[#allocation13 + $0x650] sm:$0xff]
    %v1702 = vld [vmem:[#allocation13 + $0x658] sm:$0xff]
    %v1703 = vld [vmem:[#allocation13 + $0x660] sm:$0xff]
    %v1704 = vld [vmem:[#allocation13 + $0x668] sm:$0xff]
    %v1705 = vld [vmem:[#allocation13 + $0x670] sm:$0xff]
    %v1706 = vld [vmem:[#allocation13 + $0x678] sm:$0xff]
    %v1707 = vld [vmem:[#allocation13 + $0x680] sm:$0xff]
    %v1708 = vld [vmem:[#allocation13 + $0x688] sm:$0xff]
    %v1709 = vld [vmem:[#allocation13 + $0x690] sm:$0xff]
    %v1710 = vld [vmem:[#allocation13 + $0x698] sm:$0xff]
    %v1711 = vld [vmem:[#allocation13 + $0x6a0] sm:$0xff]
    %v1712 = vld [vmem:[#allocation13 + $0x6a8] sm:$0xff]
    %v1713 = vld [vmem:[#allocation13 + $0x6b0] sm:$0xff]
    %v1714 = vld [vmem:[#allocation13 + $0x6b8] sm:$0xff]
    %v1715 = vld [vmem:[#allocation13 + $0x6c0] sm:$0xff]
    %v1716 = vld [vmem:[#allocation13 + $0x6c8] sm:$0xff]
    %v1717 = vld [vmem:[#allocation13 + $0x6d0] sm:$0xff]
    %v1718 = vld [vmem:[#allocation13 + $0x6d8] sm:$0xff]
    %v1719 = vld [vmem:[#allocation13 + $0x6e0] sm:$0xff]
    %v1720 = vld [vmem:[#allocation13 + $0x6e8] sm:$0xff]
    %v1721 = vld [vmem:[#allocation13 + $0x6f0] sm:$0xff]
    %v1722 = vld [vmem:[#allocation13 + $0x6f8] sm:$0xff]
    %v1723 = vld [vmem:[#allocation13 + $0x700] sm:$0xff]
    %v1724 = vld [vmem:[#allocation13 + $0x708] sm:$0xff]
    %v1725 = vld [vmem:[#allocation13 + $0x710] sm:$0xff]
    %v1726 = vld [vmem:[#allocation13 + $0x718] sm:$0xff]
    %v1727 = vld [vmem:[#allocation13 + $0x720] sm:$0xff]
    %v1728 = vld [vmem:[#allocation13 + $0x728] sm:$0xff]
    %v1729 = vld [vmem:[#allocation13 + $0x730] sm:$0xff]
    %v1730 = vld [vmem:[#allocation13 + $0x738] sm:$0xff]
    %v1731 = vld [vmem:[#allocation13 + $0x740] sm:$0xff]
    %v1732 = vld [vmem:[#allocation13 + $0x748] sm:$0xff]
    %v1733 = vld [vmem:[#allocation13 + $0x750] sm:$0xff]
    %v1734 = vld [vmem:[#allocation13 + $0x758] sm:$0xff]
    %v1735 = vld [vmem:[#allocation13 + $0x760] sm:$0xff]
    %v1736 = vld [vmem:[#allocation13 + $0x768] sm:$0xff]
    %v1737 = vld [vmem:[#allocation13 + $0x770] sm:$0xff]
    %v1738 = vld [vmem:[#allocation13 + $0x778] sm:$0xff]
    %v1739 = vld [vmem:[#allocation13 + $0x780] sm:$0xff]
    %v1740 = vld [vmem:[#allocation13 + $0x788] sm:$0xff]
    %v1741 = vld [vmem:[#allocation13 + $0x790] sm:$0xff]
    %v1742 = vld [vmem:[#allocation13 + $0x798] sm:$0xff]
    %v1743 = vld [vmem:[#allocation13 + $0x7a0] sm:$0xff]
    %v1744 = vld [vmem:[#allocation13 + $0x7a8] sm:$0xff]
    %v1745 = vld [vmem:[#allocation13 + $0x7b0] sm:$0xff]
    %v1746 = vld [vmem:[#allocation13 + $0x7b8] sm:$0xff]
    %v1747 = vld [vmem:[#allocation13 + $0x7c0] sm:$0xff]
    %v1748 = vld [vmem:[#allocation13 + $0x7c8] sm:$0xff]
    %v1749 = vld [vmem:[#allocation13 + $0x7d0] sm:$0xff]
    %v1750 = vld [vmem:[#allocation13 + $0x7d8] sm:$0xff]
    %v1751 = vld [vmem:[#allocation13 + $0x7e0] sm:$0xff]
    %v1752 = vld [vmem:[#allocation13 + $0x7e8] sm:$0xff]
    %v1753 = vld [vmem:[#allocation13 + $0x7f0] sm:$0xff]
    %v1754 = vld [vmem:[#allocation13 + $0x7f8] sm:$0xff]
    %1755 = vmatprep.subr.mxu0 %v1620
    %1756 = vmatpush1.msra.mxu0 %v1619
    %1757 = vmatprep.subr.mxu0 %v1612
    %1758 = vmatpush1.msra.mxu0 %v1611
    %1759 = vmatprep.subr.mxu0 %v1604
    %1760 = vmatpush1.msra.mxu0 %v1603
    %1761 = vmatprep.subr.mxu0 %v1596
    %1762 = vmatpush1.msra.mxu0 %v1595
    %1763 = vmatprep.subr.mxu0 %v1588
    %1764 = vmatpush1.msra.mxu0 %v1587
    %1765 = vmatprep.subr.mxu0 %v1580
    %1766 = vmatpush1.msra.mxu0 %v1579
    %1767 = vmatprep.subr.mxu0 %v1572
    %1768 = vmatpush1.msra.mxu0 %v1571
    %1769 = vmatprep.subr.mxu0 %v1564
    %1770 = vmatpush1.msra.mxu0 %v1563
    %1771 = vmatprep.subr.mxu0 %v1556
    %1772 = vmatpush1.msra.mxu0 %v1555
    %1773 = vmatprep.subr.mxu0 %v1548
    %1774 = vmatpush1.msra.mxu0 %v1547
    %1775 = vmatprep.subr.mxu0 %v1540
    %1776 = vmatpush1.msra.mxu0 %v1539
    %1777 = vmatprep.subr.mxu0 %v1532
    %1778 = vmatpush1.msra.mxu0 %v1531
    %1779 = vmatprep.subr.mxu0 %v1524
    %1780 = vmatpush1.msra.mxu0 %v1523
    %1781 = vmatprep.subr.mxu0 %v1516
    %1782 = vmatpush1.msra.mxu0 %v1515
    %1783 = vmatprep.subr.mxu0 %v1508
    %1784 = vmatpush1.msra.mxu0 %v1507
    %1785 = vmatprep.subr.mxu0 %v1500
    %1786 = vmatpush1.msra.mxu0 %v1499
    %1787 = vmatprep.subr.mxu0 %v1748
    %1788 = vmatpush2.msra.mxu0 %v1747
    %1789 = vmatprep.subr.mxu0 %v1740
    %1790 = vmatpush2.msra.mxu0 %v1739
    %1791 = vmatprep.subr.mxu0 %v1732
    %1792 = vmatpush2.msra.mxu0 %v1731
    %1793 = vmatprep.subr.mxu0 %v1724
    %1794 = vmatpush2.msra.mxu0 %v1723
    %1795 = vmatprep.subr.mxu0 %v1716
    %1796 = vmatpush2.msra.mxu0 %v1715
    %1797 = vmatprep.subr.mxu0 %v1708
    %1798 = vmatpush2.msra.mxu0 %v1707
    %1799 = vmatprep.subr.mxu0 %v1700
    %1800 = vmatpush2.msra.mxu0 %v1699
    %1801 = vmatprep.subr.mxu0 %v1692
    %1802 = vmatpush2.msra.mxu0 %v1691
    %1803 = vmatprep.subr.mxu0 %v1684
    %1804 = vmatpush2.msra.mxu0 %v1683
    %1805 = vmatprep.subr.mxu0 %v1676
    %1806 = vmatpush2.msra.mxu0 %v1675
    %1807 = vmatprep.subr.mxu0 %v1668
    %1808 = vmatpush2.msra.mxu0 %v1667
    %1809 = vmatprep.subr.mxu0 %v1660
    %1810 = vmatpush2.msra.mxu0 %v1659
    %1811 = vmatprep.subr.mxu0 %v1652
    %1812 = vmatpush2.msra.mxu0 %v1651
    %1813 = vmatprep.subr.mxu0 %v1644
    %1814 = vmatpush2.msra.mxu0 %v1643
    %1815 = vmatprep.subr.mxu0 %v1636
    %1816 = vmatpush2.msra.mxu0 %v1635
    %1817 = vmatprep.subr.mxu0 %v1628
    %1818 = vmatpush2.msra.mxu0 %v1627
    %1819 = vmatprep.mubr.f32.mxu0 %v295
    %1820 = vmatmul.mubr.f32.gmra.mxu0 %v294
    %v1821 = vpop.f32.mrf.mxu0
    %v1822 = vadd.f32 0.0, %v1821
    %v1823 = vpop.f32.mrf.mxu0
    %v1824 = vadd.f32 0.0, %v1823
    %1825 = vdwg.mxu0
    %1826 = vmatprep.subr.mxu0 %v1622
    %1827 = vmatpush1.msra.mxu0 %v1621
    %1828 = vmatprep.subr.mxu0 %v1614
    %1829 = vmatpush1.msra.mxu0 %v1613
    %1830 = vmatprep.subr.mxu0 %v1606
    %1831 = vmatpush1.msra.mxu0 %v1605
    %1832 = vmatprep.subr.mxu0 %v1598
    %1833 = vmatpush1.msra.mxu0 %v1597
    %1834 = vmatprep.subr.mxu0 %v1590
    %1835 = vmatpush1.msra.mxu0 %v1589
    %1836 = vmatprep.subr.mxu0 %v1582
    %1837 = vmatpush1.msra.mxu0 %v1581
    %1838 = vmatprep.subr.mxu0 %v1574
    %1839 = vmatpush1.msra.mxu0 %v1573
    %1840 = vmatprep.subr.mxu0 %v1566
    %1841 = vmatpush1.msra.mxu0 %v1565
    %1842 = vmatprep.subr.mxu0 %v1558
    %1843 = vmatpush1.msra.mxu0 %v1557
    %1844 = vmatprep.subr.mxu0 %v1550
    %1845 = vmatpush1.msra.mxu0 %v1549
    %1846 = vmatprep.subr.mxu0 %v1542
    %1847 = vmatpush1.msra.mxu0 %v1541
    %1848 = vmatprep.subr.mxu0 %v1534
    %1849 = vmatpush1.msra.mxu0 %v1533
    %1850 = vmatprep.subr.mxu0 %v1526
    %1851 = vmatpush1.msra.mxu0 %v1525
    %1852 = vmatprep.subr.mxu0 %v1518
    %1853 = vmatpush1.msra.mxu0 %v1517
    %1854 = vmatprep.subr.mxu0 %v1510
    %1855 = vmatpush1.msra.mxu0 %v1509
    %1856 = vmatprep.subr.mxu0 %v1502
    %1857 = vmatpush1.msra.mxu0 %v1501
    %1858 = vmatprep.subr.mxu0 %v1750
    %1859 = vmatpush2.msra.mxu0 %v1749
    %1860 = vmatprep.subr.mxu0 %v1742
    %1861 = vmatpush2.msra.mxu0 %v1741
    %1862 = vmatprep.subr.mxu0 %v1734
    %1863 = vmatpush2.msra.mxu0 %v1733
    %1864 = vmatprep.subr.mxu0 %v1726
    %1865 = vmatpush2.msra.mxu0 %v1725
    %1866 = vmatprep.subr.mxu0 %v1718
    %1867 = vmatpush2.msra.mxu0 %v1717
    %1868 = vmatprep.subr.mxu0 %v1710
    %1869 = vmatpush2.msra.mxu0 %v1709
    %1870 = vmatprep.subr.mxu0 %v1702
    %1871 = vmatpush2.msra.mxu0 %v1701
    %1872 = vmatprep.subr.mxu0 %v1694
    %1873 = vmatpush2.msra.mxu0 %v1693
    %1874 = vmatprep.subr.mxu0 %v1686
    %1875 = vmatpush2.msra.mxu0 %v1685
    %1876 = vmatprep.subr.mxu0 %v1678
    %1877 = vmatpush2.msra.mxu0 %v1677
    %1878 = vmatprep.subr.mxu0 %v1670
    %1879 = vmatpush2.msra.mxu0 %v1669
    %1880 = vmatprep.subr.mxu0 %v1662
    %1881 = vmatpush2.msra.mxu0 %v1661
    %1882 = vmatprep.subr.mxu0 %v1654
    %1883 = vmatpush2.msra.mxu0 %v1653
    %1884 = vmatprep.subr.mxu0 %v1646
    %1885 = vmatpush2.msra.mxu0 %v1645
    %1886 = vmatprep.subr.mxu0 %v1638
    %1887 = vmatpush2.msra.mxu0 %v1637
    %1888 = vmatprep.subr.mxu0 %v1630
    %1889 = vmatpush2.msra.mxu0 %v1629
    %1890 = vmatprep.mubr.f32.mxu0 %v295
    %1891 = vmatmul.mubr.f32.gmra.mxu0 %v294
    %v1892 = vpop.f32.mrf.mxu0
    %v1893 = vadd.f32 0.0, %v1892
    %v1894 = vpop.f32.mrf.mxu0
    %v1895 = vadd.f32 0.0, %v1894
    %1896 = vdwg.mxu0
    %1897 = vmatprep.subr.mxu0 %v1624
    %1898 = vmatpush1.msra.mxu0 %v1623
    %1899 = vmatprep.subr.mxu0 %v1616
    %1900 = vmatpush1.msra.mxu0 %v1615
    %1901 = vmatprep.subr.mxu0 %v1608
    %1902 = vmatpush1.msra.mxu0 %v1607
    %1903 = vmatprep.subr.mxu0 %v1600
    %1904 = vmatpush1.msra.mxu0 %v1599
    %1905 = vmatprep.subr.mxu0 %v1592
    %1906 = vmatpush1.msra.mxu0 %v1591
    %1907 = vmatprep.subr.mxu0 %v1584
    %1908 = vmatpush1.msra.mxu0 %v1583
    %1909 = vmatprep.subr.mxu0 %v1576
    %1910 = vmatpush1.msra.mxu0 %v1575
    %1911 = vmatprep.subr.mxu0 %v1568
    %1912 = vmatpush1.msra.mxu0 %v1567
    %1913 = vmatprep.subr.mxu0 %v1560
    %1914 = vmatpush1.msra.mxu0 %v1559
    %1915 = vmatprep.subr.mxu0 %v1552
    %1916 = vmatpush1.msra.mxu0 %v1551
    %1917 = vmatprep.subr.mxu0 %v1544
    %1918 = vmatpush1.msra.mxu0 %v1543
    %1919 = vmatprep.subr.mxu0 %v1536
    %1920 = vmatpush1.msra.mxu0 %v1535
    %1921 = vmatprep.subr.mxu0 %v1528
    %1922 = vmatpush1.msra.mxu0 %v1527
    %1923 = vmatprep.subr.mxu0 %v1520
    %1924 = vmatpush1.msra.mxu0 %v1519
    %1925 = vmatprep.subr.mxu0 %v1512
    %1926 = vmatpush1.msra.mxu0 %v1511
    %1927 = vmatprep.subr.mxu0 %v1504
    %1928 = vmatpush1.msra.mxu0 %v1503
    %1929 = vmatprep.subr.mxu0 %v1752
    %1930 = vmatpush2.msra.mxu0 %v1751
    %1931 = vmatprep.subr.mxu0 %v1744
    %1932 = vmatpush2.msra.mxu0 %v1743
    %1933 = vmatprep.subr.mxu0 %v1736
    %1934 = vmatpush2.msra.mxu0 %v1735
    %1935 = vmatprep.subr.mxu0 %v1728
    %1936 = vmatpush2.msra.mxu0 %v1727
    %1937 = vmatprep.subr.mxu0 %v1720
    %1938 = vmatpush2.msra.mxu0 %v1719
    %1939 = vmatprep.subr.mxu0 %v1712
    %1940 = vmatpush2.msra.mxu0 %v1711
    %1941 = vmatprep.subr.mxu0 %v1704
    %1942 = vmatpush2.msra.mxu0 %v1703
    %1943 = vmatprep.subr.mxu0 %v1696
    %1944 = vmatpush2.msra.mxu0 %v1695
    %1945 = vmatprep.subr.mxu0 %v1688
    %1946 = vmatpush2.msra.mxu0 %v1687
    %1947 = vmatprep.subr.mxu0 %v1680
    %1948 = vmatpush2.msra.mxu0 %v1679
    %1949 = vmatprep.subr.mxu0 %v1672
    %1950 = vmatpush2.msra.mxu0 %v1671
    %1951 = vmatprep.subr.mxu0 %v1664
    %1952 = vmatpush2.msra.mxu0 %v1663
    %1953 = vmatprep.subr.mxu0 %v1656
    %1954 = vmatpush2.msra.mxu0 %v1655
    %1955 = vmatprep.subr.mxu0 %v1648
    %1956 = vmatpush2.msra.mxu0 %v1647
    %1957 = vmatprep.subr.mxu0 %v1640
    %1958 = vmatpush2.msra.mxu0 %v1639
    %1959 = vmatprep.subr.mxu0 %v1632
    %1960 = vmatpush2.msra.mxu0 %v1631
    %1961 = vmatprep.mubr.f32.mxu0 %v295
    %1962 = vmatmul.mubr.f32.gmra.mxu0 %v294
    %v1963 = vpop.f32.mrf.mxu0
    %v1964 = vadd.f32 0.0, %v1963
    %v1965 = vpop.f32.mrf.mxu0
    %v1966 = vadd.f32 0.0, %v1965
    %1967 = vdwg.mxu0
    %1968 = vmatprep.subr.mxu0 %v1626
    %1969 = vmatpush1.msra.mxu0 %v1625
    %1970 = vmatprep.subr.mxu0 %v1618
    %1971 = vmatpush1.msra.mxu0 %v1617
    %1972 = vmatprep.subr.mxu0 %v1610
    %1973 = vmatpush1.msra.mxu0 %v1609
    %1974 = vmatprep.subr.mxu0 %v1602
    %1975 = vmatpush1.msra.mxu0 %v1601
    %1976 = vmatprep.subr.mxu0 %v1594
    %1977 = vmatpush1.msra.mxu0 %v1593
    %1978 = vmatprep.subr.mxu0 %v1586
    %1979 = vmatpush1.msra.mxu0 %v1585
    %1980 = vmatprep.subr.mxu0 %v1578
    %1981 = vmatpush1.msra.mxu0 %v1577
    %1982 = vmatprep.subr.mxu0 %v1570
    %1983 = vmatpush1.msra.mxu0 %v1569
    %1984 = vmatprep.subr.mxu0 %v1562
    %1985 = vmatpush1.msra.mxu0 %v1561
    %1986 = vmatprep.subr.mxu0 %v1554
    %1987 = vmatpush1.msra.mxu0 %v1553
    %1988 = vmatprep.subr.mxu0 %v1546
    %1989 = vmatpush1.msra.mxu0 %v1545
    %1990 = vmatprep.subr.mxu0 %v1538
    %1991 = vmatpush1.msra.mxu0 %v1537
    %1992 = vmatprep.subr.mxu0 %v1530
    %1993 = vmatpush1.msra.mxu0 %v1529
    %1994 = vmatprep.subr.mxu0 %v1522
    %1995 = vmatpush1.msra.mxu0 %v1521
    %1996 = vmatprep.subr.mxu0 %v1514
    %1997 = vmatpush1.msra.mxu0 %v1513
    %1998 = vmatprep.subr.mxu0 %v1506
    %1999 = vmatpush1.msra.mxu0 %v1505
    %2000 = vmatprep.subr.mxu0 %v1754
    %2001 = vmatpush2.msra.mxu0 %v1753
    %2002 = vmatprep.subr.mxu0 %v1746
    %2003 = vmatpush2.msra.mxu0 %v1745
    %2004 = vmatprep.subr.mxu0 %v1738
    %2005 = vmatpush2.msra.mxu0 %v1737
    %2006 = vmatprep.subr.mxu0 %v1730
    %2007 = vmatpush2.msra.mxu0 %v1729
    %2008 = vmatprep.subr.mxu0 %v1722
    %2009 = vmatpush2.msra.mxu0 %v1721
    %2010 = vmatprep.subr.mxu0 %v1714
    %2011 = vmatpush2.msra.mxu0 %v1713
    %2012 = vmatprep.subr.mxu0 %v1706
    %2013 = vmatpush2.msra.mxu0 %v1705
    %2014 = vmatprep.subr.mxu0 %v1698
    %2015 = vmatpush2.msra.mxu0 %v1697
    %2016 = vmatprep.subr.mxu0 %v1690
    %2017 = vmatpush2.msra.mxu0 %v1689
    %2018 = vmatprep.subr.mxu0 %v1682
    %2019 = vmatpush2.msra.mxu0 %v1681
    %2020 = vmatprep.subr.mxu0 %v1674
    %2021 = vmatpush2.msra.mxu0 %v1673
    %2022 = vmatprep.subr.mxu0 %v1666
    %2023 = vmatpush2.msra.mxu0 %v1665
    %2024 = vmatprep.subr.mxu0 %v1658
    %2025 = vmatpush2.msra.mxu0 %v1657
    %2026 = vmatprep.subr.mxu0 %v1650
    %2027 = vmatpush2.msra.mxu0 %v1649
    %2028 = vmatprep.subr.mxu0 %v1642
    %2029 = vmatpush2.msra.mxu0 %v1641
    %2030 = vmatprep.subr.mxu0 %v1634
    %2031 = vmatpush2.msra.mxu0 %v1633
    %2032 = vmatprep.mubr.f32.mxu0 %v295
    %2033 = vmatmul.mubr.f32.gmra.mxu0 %v294
    %v2034 = vpop.f32.mrf.mxu0
    %v2035 = vadd.f32 0.0, %v2034
    %v2036 = vpop.f32.mrf.mxu0
    %v2037 = vadd.f32 0.0, %v2036
    %2038 = vdwg.mxu0
    %v2039 = vmul.f32 %v1282, %v1282
    %v2040 = vmul.f32 %v1284, %v1284
    %v2041 = vmul.f32 %v1353, %v1353
    %v2042 = vmul.f32 %v1355, %v1355
    %v2043 = vmul.f32 %v1424, %v1424
    %v2044 = vmul.f32 %v1426, %v1426
    %v2045 = vmul.f32 %v1495, %v1495
    %v2046 = vmul.f32 %v1497, %v1497
    %v2047 = vmul.f32 %v1822, %v1822
    %v2048 = vmul.f32 %v1824, %v1824
    %v2049 = vmul.f32 %v1893, %v1893
    %v2050 = vmul.f32 %v1895, %v1895
    %v2051 = vmul.f32 %v1964, %v1964
    %v2052 = vmul.f32 %v1966, %v1966
    %v2053 = vmul.f32 %v2035, %v2035
    %v2054 = vmul.f32 %v2037, %v2037
    %v2055 = vadd.f32 %v2039, %v2047
    %v2056 = vadd.f32 %v2040, %v2048
    %v2057 = vadd.f32 %v2041, %v2049
    %v2058 = vadd.f32 %v2042, %v2050
    %v2059 = vadd.f32 %v2043, %v2051
    %v2060 = vadd.f32 %v2044, %v2052
    %v2061 = vadd.f32 %v2045, %v2053
    %v2062 = vadd.f32 %v2046, %v2054
    %v2063 = vrsqrt.pop %v2055
    %v2064 = vmul.f32 %v2055, %v2063
    %vm2065 = vcmp.eq.f32.partialorder %v2055, inf
    %v2066 = vsel %vm2065, %v2055, %v2064
    %vm2067 = vcmp.eq.f32.partialorder %v2055, 0.0
    %v2068 = vand.u32 %v2055, 2147483648
    %v2069 = vsel %vm2067, %v2068, %v2066
    %v2070 = vrsqrt.pop %v2056
    %v2071 = vmul.f32 %v2056, %v2070
    %vm2072 = vcmp.eq.f32.partialorder %v2056, inf
    %v2073 = vsel %vm2072, %v2056, %v2071
    %vm2074 = vcmp.eq.f32.partialorder %v2056, 0.0
    %v2075 = vand.u32 %v2056, 2147483648
    %v2076 = vsel %vm2074, %v2075, %v2073
    %v2077 = vrsqrt.pop %v2057
    %v2078 = vmul.f32 %v2057, %v2077
    %vm2079 = vcmp.eq.f32.partialorder %v2057, inf
    %v2080 = vsel %vm2079, %v2057, %v2078
    %vm2081 = vcmp.eq.f32.partialorder %v2057, 0.0
    %v2082 = vand.u32 %v2057, 2147483648
    %v2083 = vsel %vm2081, %v2082, %v2080
    %v2084 = vrsqrt.pop %v2058
    %v2085 = vmul.f32 %v2058, %v2084
    %vm2086 = vcmp.eq.f32.partialorder %v2058, inf
    %v2087 = vsel %vm2086, %v2058, %v2085
    %vm2088 = vcmp.eq.f32.partialorder %v2058, 0.0
    %v2089 = vand.u32 %v2058, 2147483648
    %v2090 = vsel %vm2088, %v2089, %v2087
    %v2091 = vrsqrt.pop %v2059
    %v2092 = vmul.f32 %v2059, %v2091
    %vm2093 = vcmp.eq.f32.partialorder %v2059, inf
    %v2094 = vsel %vm2093, %v2059, %v2092
    %vm2095 = vcmp.eq.f32.partialorder %v2059, 0.0
    %v2096 = vand.u32 %v2059, 2147483648
    %v2097 = vsel %vm2095, %v2096, %v2094
    %v2098 = vrsqrt.pop %v2060
    %v2099 = vmul.f32 %v2060, %v2098
    %vm2100 = vcmp.eq.f32.partialorder %v2060, inf
    %v2101 = vsel %vm2100, %v2060, %v2099
    %vm2102 = vcmp.eq.f32.partialorder %v2060, 0.0
    %v2103 = vand.u32 %v2060, 2147483648
    %v2104 = vsel %vm2102, %v2103, %v2101
    %v2105 = vrsqrt.pop %v2061
    %v2106 = vmul.f32 %v2061, %v2105
    %vm2107 = vcmp.eq.f32.partialorder %v2061, inf
    %v2108 = vsel %vm2107, %v2061, %v2106
    %vm2109 = vcmp.eq.f32.partialorder %v2061, 0.0
    %v2110 = vand.u32 %v2061, 2147483648
    %v2111 = vsel %vm2109, %v2110, %v2108
    %v2112 = vrsqrt.pop %v2062
    %v2113 = vmul.f32 %v2062, %v2112
    %vm2114 = vcmp.eq.f32.partialorder %v2062, inf
    %v2115 = vsel %vm2114, %v2062, %v2113
    %vm2116 = vcmp.eq.f32.partialorder %v2062, 0.0
    %v2117 = vand.u32 %v2062, 2147483648
    %v2118 = vsel %vm2116, %v2117, %v2115
    %v2119 = vadd.f32 %v2069, %v2083
    %v2120 = vadd.f32 %v2076, %v2090
    %v2121 = vadd.f32 %v2119, %v2097
    %v2122 = vadd.f32 %v2120, %v2104
    %v2123 = vadd.f32 %v2121, %v2111
    %v2124 = vadd.f32 %v2122, %v2118
    %v2125 = vmul.f32 %v2123, 0.25
    %v2126 = vmul.f32 %v2124, 0.25
    %2127 = vset.pattern.permute.xlu0 2
    %2128 = vperm.xlu0 %2127, %v148
    %v2129 = vpop.permute.xlu0 %2128
    %2131 = vrot.lane.b32.xlu0 %v147, 112
    %v2132 = vpop.permute.xlu0 %2131
    %v2133 = vsel %vm167, %v2132, 0
    %2135 = vmatprep.subr.mxu0 0.0
    %2136 = vmatpush1.msra.mxu0 0.0
    %2137 = vmatprep.subr.mxu0 0.0
    %2138 = vmatpush1.msra.mxu0 0.0
    %2139 = vmatprep.subr.mxu0 0.0
    %2140 = vmatpush1.msra.mxu0 0.0
    %2141 = vmatprep.subr.mxu0 0.0
    %2142 = vmatpush1.msra.mxu0 0.0
    %2143 = vmatprep.subr.mxu0 0.0
    %2144 = vmatpush1.msra.mxu0 0.0
    %2145 = vmatprep.subr.mxu0 0.0
    %2146 = vmatpush1.msra.mxu0 0.0
    %2147 = vmatprep.subr.mxu0 0.0
    %2148 = vmatpush1.msra.mxu0 0.0
    %2149 = vmatprep.subr.mxu0 0.0
    %2150 = vmatpush1.msra.mxu0 0.0
    %2151 = vmatprep.subr.mxu0 0.0
    %2152 = vmatpush1.msra.mxu0 0.0
    %2153 = vmatprep.subr.mxu0 0.0
    %2154 = vmatpush1.msra.mxu0 0.0
    %2155 = vmatprep.subr.mxu0 0.0
    %2156 = vmatpush1.msra.mxu0 0.0
    %2157 = vmatprep.subr.mxu0 0.0
    %2158 = vmatpush1.msra.mxu0 0.0
    %2159 = vmatprep.subr.mxu0 0.0
    %2160 = vmatpush1.msra.mxu0 0.0
    %2161 = vmatprep.subr.mxu0 0.0
    %2162 = vmatpush1.msra.mxu0 0.0
    %2163 = vmatprep.subr.mxu0 0.0
    %2164 = vmatpush1.msra.mxu0 0.0
    %2165 = vmatprep.subr.mxu0 %v2126
    %2166 = vmatpush1.msra.mxu0 %v2125
    %2167 = vmatprep.subr.mxu0 0.0
    %2168 = vmatpush2.msra.mxu0 0.0
    %2169 = vmatprep.subr.mxu0 0.0
    %2170 = vmatpush2.msra.mxu0 0.0
    %2171 = vmatprep.subr.mxu0 0.0
    %2172 = vmatpush2.msra.mxu0 0.0
    %2173 = vmatprep.subr.mxu0 0.0
    %2174 = vmatpush2.msra.mxu0 0.0
    %2175 = vmatprep.subr.mxu0 0.0
    %2176 = vmatpush2.msra.mxu0 0.0
    %2177 = vmatprep.subr.mxu0 0.0
    %2178 = vmatpush2.msra.mxu0 0.0
    %2179 = vmatprep.subr.mxu0 0.0
    %2180 = vmatpush2.msra.mxu0 0.0
    %2181 = vmatprep.subr.mxu0 0.0
    %2182 = vmatpush2.msra.mxu0 0.0
    %2183 = vmatprep.subr.mxu0 0.0
    %2184 = vmatpush2.msra.mxu0 0.0
    %2185 = vmatprep.subr.mxu0 0.0
    %2186 = vmatpush2.msra.mxu0 0.0
    %2187 = vmatprep.subr.mxu0 0.0
    %2188 = vmatpush2.msra.mxu0 0.0
    %2189 = vmatprep.subr.mxu0 0.0
    %2190 = vmatpush2.msra.mxu0 0.0
    %2191 = vmatprep.subr.mxu0 0.0
    %2192 = vmatpush2.msra.mxu0 0.0
    %2193 = vmatprep.subr.mxu0 0.0
    %2194 = vmatpush2.msra.mxu0 0.0
    %2195 = vmatprep.subr.mxu0 0.0
    %2196 = vmatpush2.msra.mxu0 0.0
    %2197 = vmatprep.subr.mxu0 0.0
    %2198 = vmatpush2.msra.mxu0 0.0
    %2199 = vmatprep.mubr.f32.mxu0 0.0
    %2200 = vmatmul.mubr.f32.gmra.mxu0 %v2133
    %v2201 = vpop.f32.mrf.mxu0
    %v2202 = vadd.f32 %v2129, %v2201
    %v2203 = vpop.f32.mrf.mxu0
    %v2204 = vadd.f32 %v2129, %v2203
    %2205 = vdwg.mxu0
    %v2206 = vmul.f32 %v957, %v2202
    %v2207 = vmul.f32 %v958, %v2204
    %2208 = vrot.lane.b32.xlu0 %v2206, 17
    %v2209 = vpop.permute.xlu0 %2208
    %2210 = vrot.lane.b32.xlu0 %v2207, 17
    %v2211 = vpop.permute.xlu0 %2210
    %v2212 = vsel %vm481, %v2209, %v2211
    %v2213 = vsel %vm481, %v2211, %v2209
    %v2214 = vmul.f32 %v2213, %v487
    %v2215 = vmul.f32 %v2212, %v491
    %2216 = vrot.lane.b32.xlu0 %v2206, 16
    %v2217 = vpop.permute.xlu0 %2216
    %2218 = vrot.lane.b32.xlu0 %v2207, 16
    %v2219 = vpop.permute.xlu0 %2218
    %v2220 = vsel %vm506, %v2217, %v2219
    %v2221 = vsel %vm506, %v2219, %v2217
    %v2222 = vmul.f32 %v2221, %v512
    %v2223 = vmul.f32 %v2220, %v516
    %2224 = vrot.lane.b32.xlu0 %v2206, 15
    %v2225 = vpop.permute.xlu0 %2224
    %2226 = vrot.lane.b32.xlu0 %v2207, 15
    %v2227 = vpop.permute.xlu0 %2226
    %v2228 = vsel %vm531, %v2225, %v2227
    %v2229 = vsel %vm531, %v2227, %v2225
    %v2230 = vmul.f32 %v2229, %v543
    %v2231 = vmul.f32 %v2228, %v547
    %2232 = vrot.lane.b32.xlu0 %v2206, 1
    %v2233 = vpop.permute.xlu0 %2232
    %2234 = vrot.lane.b32.xlu0 %v2207, 1
    %v2235 = vpop.permute.xlu0 %2234
    %v2236 = vsel %vm612, %v2233, %v2235
    %v2237 = vsel %vm612, %v2235, %v2233
    %v2238 = vmul.f32 %v2237, %v618
    %v2239 = vmul.f32 %v2236, %v622
    %2240 = vrot.lane.b32.xlu0 %v2206, 127
    %v2241 = vpop.permute.xlu0 %2240
    %2242 = vrot.lane.b32.xlu0 %v2207, 127
    %v2243 = vpop.permute.xlu0 %2242
    %v2244 = vsel %vm645, %v2241, %v2243
    %v2245 = vsel %vm645, %v2243, %v2241
    %v2246 = vmul.f32 %v2244, %v651
    %v2247 = vmul.f32 %v2245, %v655
    %2248 = vrot.lane.b32.xlu0 %v2206, 113
    %v2249 = vpop.permute.xlu0 %2248
    %2250 = vrot.lane.b32.xlu0 %v2207, 113
    %v2251 = vpop.permute.xlu0 %2250
    %v2252 = vsel %vm726, %v2249, %v2251
    %v2253 = vsel %vm726, %v2251, %v2249
    %v2254 = vmul.f32 %v2252, %v738
    %v2255 = vmul.f32 %v2253, %v742
    %2256 = vrot.lane.b32.xlu0 %v2206, 112
    %v2257 = vpop.permute.xlu0 %2256
    %2258 = vrot.lane.b32.xlu0 %v2207, 112
    %v2259 = vpop.permute.xlu0 %2258
    %v2260 = vsel %vm757, %v2257, %v2259
    %v2261 = vsel %vm757, %v2259, %v2257
    %v2262 = vmul.f32 %v2260, %v763
    %v2263 = vmul.f32 %v2261, %v767
    %2264 = vrot.lane.b32.xlu0 %v2206, 111
    %v2265 = vpop.permute.xlu0 %2264
    %2266 = vrot.lane.b32.xlu0 %v2207, 111
    %v2267 = vpop.permute.xlu0 %2266
    %v2268 = vsel %vm782, %v2265, %v2267
    %v2269 = vsel %vm782, %v2267, %v2265
    %v2270 = vmul.f32 %v2268, %v788
    %v2271 = vmul.f32 %v2269, %v792
    %v2272 = vld [vmem:[#allocation10] sm:$0xff]
    %vm2273 = vcmask 588800
    %v2275 = vsel %vm2273, %v2272, 0
    %2277 = vmatprep.subr.mxu0 0.0
    %2278 = vmatpush1.msra.mxu0 0.0
    %2279 = vmatprep.subr.mxu0 0.0
    %2280 = vmatpush1.msra.mxu0 0.0
    %2281 = vmatprep.subr.mxu0 0.0
    %2282 = vmatpush1.msra.mxu0 0.0
    %2283 = vmatprep.subr.mxu0 0.0
    %2284 = vmatpush1.msra.mxu0 0.0
    %2285 = vmatprep.subr.mxu0 0.0
    %2286 = vmatpush1.msra.mxu0 0.0
    %2287 = vmatprep.subr.mxu0 0.0
    %2288 = vmatpush1.msra.mxu0 0.0
    %2289 = vmatprep.subr.mxu0 0.0
    %2290 = vmatpush1.msra.mxu0 0.0
    %2291 = vmatprep.subr.mxu0 %v2271
    %2292 = vmatpush1.msra.mxu0 %v2270
    %2293 = vmatprep.subr.mxu0 %v2263
    %2294 = vmatpush1.msra.mxu0 %v2262
    %2295 = vmatprep.subr.mxu0 %v2255
    %2296 = vmatpush1.msra.mxu0 %v2254
    %2297 = vmatprep.subr.mxu0 %v2247
    %2298 = vmatpush1.msra.mxu0 %v2246
    %2299 = vmatprep.subr.mxu0 %v2207
    %2300 = vmatpush1.msra.mxu0 %v2206
    %2301 = vmatprep.subr.mxu0 %v2239
    %2302 = vmatpush1.msra.mxu0 %v2238
    %2303 = vmatprep.subr.mxu0 %v2231
    %2304 = vmatpush1.msra.mxu0 %v2230
    %2305 = vmatprep.subr.mxu0 %v2223
    %2306 = vmatpush1.msra.mxu0 %v2222
    %2307 = vmatprep.subr.mxu0 %v2215
    %2308 = vmatpush1.msra.mxu0 %v2214
    %2309 = vmatprep.subr.mxu0 0.0
    %2310 = vmatpush2.msra.mxu0 0.0
    %2311 = vmatprep.subr.mxu0 0.0
    %2312 = vmatpush2.msra.mxu0 0.0
    %2313 = vmatprep.subr.mxu0 0.0
    %2314 = vmatpush2.msra.mxu0 0.0
    %2315 = vmatprep.subr.mxu0 0.0
    %2316 = vmatpush2.msra.mxu0 0.0
    %2317 = vmatprep.subr.mxu0 0.0
    %2318 = vmatpush2.msra.mxu0 0.0
    %2319 = vmatprep.subr.mxu0 0.0
    %2320 = vmatpush2.msra.mxu0 0.0
    %2321 = vmatprep.subr.mxu0 0.0
    %2322 = vmatpush2.msra.mxu0 0.0
    %2323 = vmatprep.subr.mxu0 0.0
    %2324 = vmatpush2.msra.mxu0 0.0
    %2325 = vmatprep.subr.mxu0 0.0
    %2326 = vmatpush2.msra.mxu0 0.0
    %2327 = vmatprep.subr.mxu0 0.0
    %2328 = vmatpush2.msra.mxu0 0.0
    %2329 = vmatprep.subr.mxu0 0.0
    %2330 = vmatpush2.msra.mxu0 0.0
    %2331 = vmatprep.subr.mxu0 0.0
    %2332 = vmatpush2.msra.mxu0 0.0
    %2333 = vmatprep.subr.mxu0 0.0
    %2334 = vmatpush2.msra.mxu0 0.0
    %2335 = vmatprep.subr.mxu0 0.0
    %2336 = vmatpush2.msra.mxu0 0.0
    %2337 = vmatprep.subr.mxu0 0.0
    %2338 = vmatpush2.msra.mxu0 0.0
    %2339 = vmatprep.subr.mxu0 0.0
    %2340 = vmatpush2.msra.mxu0 0.0
    %2341 = vmatprep.mubr.f32.mxu0 0.0
    %2342 = vmatmul.mubr.f32.gmra.mxu0 %v2275
    %v2343 = vpop.f32.mrf.mxu0
    %v2344 = vadd.f32 0.0, %v2343
    %v2345 = vpop.f32.mrf.mxu0
    %v2346 = vadd.f32 0.0, %v2345
    %2347 = vdwg.mxu0
    %2348 = vrot.lane.b32.xlu0 %v2206, 10
    %v2349 = vpop.permute.xlu0 %2348
    %2350 = vrot.lane.b32.xlu0 %v2207, 10
    %v2351 = vpop.permute.xlu0 %2350
    %vm2352 = vcmp.lt.s32.totalorder %v301, 10
    %v2353 = vsel %vm2352, %v2349, %v2351
    %v2354 = vsel %vm2352, %v2351, %v2349
    %v2355 = vlaneseq
    %v2356 = vshrl.u32 %v2355, 7
    %v2357 = vsub.s32 0, %v2356
    %v2358 = vrot.slane %v150, %v2357
    %v2359 = vlaneseq
    %v2360 = vshrl.u32 %v2359, 7
    %v2361 = vsub.s32 0, %v2360
    %v2362 = vrot.slane %v151, %v2361
    %v2363 = vmul.f32 %v2354, %v2358
    %v2364 = vmul.f32 %v2353, %v2362
    %2365 = vrot.lane.b32.xlu0 %v2206, 9
    %v2366 = vpop.permute.xlu0 %2365
    %2367 = vrot.lane.b32.xlu0 %v2207, 9
    %v2368 = vpop.permute.xlu0 %2367
    %vm2369 = vcmp.lt.s32.totalorder %v301, 9
    %v2370 = vsel %vm2369, %v2366, %v2368
    %v2371 = vsel %vm2369, %v2368, %v2366
    %v2372 = vlaneseq
    %v2373 = vshrl.u32 %v2372, 7
    %v2374 = vsub.s32 1, %v2373
    %v2375 = vrot.slane %v150, %v2374
    %v2376 = vlaneseq
    %v2377 = vshrl.u32 %v2376, 7
    %v2378 = vsub.s32 1, %v2377
    %v2379 = vrot.slane %v151, %v2378
    %v2380 = vmul.f32 %v2371, %v2375
    %v2381 = vmul.f32 %v2370, %v2379
    %2382 = vrot.lane.b32.xlu0 %v2206, 8
    %v2383 = vpop.permute.xlu0 %2382
    %2384 = vrot.lane.b32.xlu0 %v2207, 8
    %v2385 = vpop.permute.xlu0 %2384
    %vm2386 = vcmp.lt.s32.totalorder %v301, 8
    %v2387 = vsel %vm2386, %v2383, %v2385
    %v2388 = vsel %vm2386, %v2385, %v2383
    %v2389 = vlaneseq
    %v2390 = vshrl.u32 %v2389, 7
    %v2391 = vsub.s32 2, %v2390
    %v2392 = vrot.slane %v150, %v2391
    %v2393 = vlaneseq
    %v2394 = vshrl.u32 %v2393, 7
    %v2395 = vsub.s32 2, %v2394
    %v2396 = vrot.slane %v151, %v2395
    %v2397 = vmul.f32 %v2388, %v2392
    %v2398 = vmul.f32 %v2387, %v2396
    %2399 = vrot.lane.b32.xlu0 %v2206, 7
    %v2400 = vpop.permute.xlu0 %2399
    %2401 = vrot.lane.b32.xlu0 %v2207, 7
    %v2402 = vpop.permute.xlu0 %2401
    %vm2403 = vcmp.lt.s32.totalorder %v301, 7
    %v2404 = vsel %vm2403, %v2400, %v2402
    %v2405 = vsel %vm2403, %v2402, %v2400
    %v2406 = vlaneseq
    %v2407 = vshrl.u32 %v2406, 7
    %v2408 = vsub.s32 3, %v2407
    %v2409 = vrot.slane %v150, %v2408
    %v2410 = vlaneseq
    %v2411 = vshrl.u32 %v2410, 7
    %v2412 = vsub.s32 3, %v2411
    %v2413 = vrot.slane %v151, %v2412
    %v2414 = vmul.f32 %v2405, %v2409
    %v2415 = vmul.f32 %v2404, %v2413
    %2416 = vrot.lane.b32.xlu0 %v2206, 6
    %v2417 = vpop.permute.xlu0 %2416
    %2418 = vrot.lane.b32.xlu0 %v2207, 6
    %v2419 = vpop.permute.xlu0 %2418
    %vm2420 = vcmp.lt.s32.totalorder %v301, 6
    %v2421 = vsel %vm2420, %v2417, %v2419
    %v2422 = vsel %vm2420, %v2419, %v2417
    %v2423 = vlaneseq
    %v2424 = vshrl.u32 %v2423, 7
    %v2425 = vsub.s32 4, %v2424
    %v2426 = vrot.slane %v150, %v2425
    %v2427 = vlaneseq
    %v2428 = vshrl.u32 %v2427, 7
    %v2429 = vsub.s32 4, %v2428
    %v2430 = vrot.slane %v151, %v2429
    %v2431 = vmul.f32 %v2422, %v2426
    %v2432 = vmul.f32 %v2421, %v2430
    %2433 = vrot.lane.b32.xlu0 %v2206, 5
    %v2434 = vpop.permute.xlu0 %2433
    %2435 = vrot.lane.b32.xlu0 %v2207, 5
    %v2436 = vpop.permute.xlu0 %2435
    %vm2437 = vcmp.lt.s32.totalorder %v301, 5
    %v2438 = vsel %vm2437, %v2434, %v2436
    %v2439 = vsel %vm2437, %v2436, %v2434
    %v2440 = vlaneseq
    %v2441 = vshrl.u32 %v2440, 7
    %v2442 = vsub.s32 5, %v2441
    %v2443 = vrot.slane %v150, %v2442
    %v2444 = vlaneseq
    %v2445 = vshrl.u32 %v2444, 7
    %v2446 = vsub.s32 5, %v2445
    %v2447 = vrot.slane %v151, %v2446
    %v2448 = vmul.f32 %v2439, %v2443
    %v2449 = vmul.f32 %v2438, %v2447
    %2450 = vrot.lane.b32.xlu0 %v2206, 4
    %v2451 = vpop.permute.xlu0 %2450
    %2452 = vrot.lane.b32.xlu0 %v2207, 4
    %v2453 = vpop.permute.xlu0 %2452
    %vm2454 = vcmp.lt.s32.totalorder %v301, 4
    %v2455 = vsel %vm2454, %v2451, %v2453
    %v2456 = vsel %vm2454, %v2453, %v2451
    %v2457 = vlaneseq
    %v2458 = vshrl.u32 %v2457, 7
    %v2459 = vsub.s32 6, %v2458
    %v2460 = vrot.slane %v150, %v2459
    %v2461 = vlaneseq
    %v2462 = vshrl.u32 %v2461, 7
    %v2463 = vsub.s32 6, %v2462
    %v2464 = vrot.slane %v151, %v2463
    %v2465 = vmul.f32 %v2456, %v2460
    %v2466 = vmul.f32 %v2455, %v2464
    %2467 = vrot.lane.b32.xlu0 %v2206, 3
    %v2468 = vpop.permute.xlu0 %2467
    %2469 = vrot.lane.b32.xlu0 %v2207, 3
    %v2470 = vpop.permute.xlu0 %2469
    %vm2471 = vcmp.lt.s32.totalorder %v301, 3
    %v2472 = vsel %vm2471, %v2468, %v2470
    %v2473 = vsel %vm2471, %v2470, %v2468
    %v2474 = vlaneseq
    %v2475 = vshrl.u32 %v2474, 7
    %v2476 = vsub.s32 7, %v2475
    %v2477 = vrot.slane %v150, %v2476
    %v2478 = vlaneseq
    %v2479 = vshrl.u32 %v2478, 7
    %v2480 = vsub.s32 7, %v2479
    %v2481 = vrot.slane %v151, %v2480
    %v2482 = vmul.f32 %v2473, %v2477
    %v2483 = vmul.f32 %v2472, %v2481
    %2484 = vrot.lane.b32.xlu0 %v2206, 2
    %v2485 = vpop.permute.xlu0 %2484
    %2486 = vrot.lane.b32.xlu0 %v2207, 2
    %v2487 = vpop.permute.xlu0 %2486
    %v2488 = vsel %vm587, %v2485, %v2487
    %v2489 = vsel %vm587, %v2487, %v2485
    %v2490 = vmul.f32 %v2489, %v593
    %v2491 = vmul.f32 %v2488, %v597
    %2492 = vrot.lane.b32.xlu0 %v2206, 126
    %v2493 = vpop.permute.xlu0 %2492
    %2494 = vrot.lane.b32.xlu0 %v2207, 126
    %v2495 = vpop.permute.xlu0 %2494
    %v2496 = vsel %vm670, %v2493, %v2495
    %v2497 = vsel %vm670, %v2495, %v2493
    %v2498 = vmul.f32 %v2496, %v676
    %v2499 = vmul.f32 %v2497, %v680
    %2500 = vrot.lane.b32.xlu0 %v2206, 125
    %v2501 = vpop.permute.xlu0 %2500
    %2502 = vrot.lane.b32.xlu0 %v2207, 125
    %v2503 = vpop.permute.xlu0 %2502
    %vm2504 = vcmp.lt.s32.totalorder %v301, 125
    %v2505 = vsel %vm2504, %v2501, %v2503
    %v2506 = vsel %vm2504, %v2503, %v2501
    %v2507 = vlaneseq
    %v2508 = vshrl.u32 %v2507, 7
    %v2509 = vsub.s32 5, %v2508
    %v2510 = vrot.slane %v152, %v2509
    %v2511 = vlaneseq
    %v2512 = vshrl.u32 %v2511, 7
    %v2513 = vsub.s32 5, %v2512
    %v2514 = vrot.slane %v153, %v2513
    %v2515 = vmul.f32 %v2505, %v2510
    %v2516 = vmul.f32 %v2506, %v2514
    %2517 = vrot.lane.b32.xlu0 %v2206, 124
    %v2518 = vpop.permute.xlu0 %2517
    %2519 = vrot.lane.b32.xlu0 %v2207, 124
    %v2520 = vpop.permute.xlu0 %2519
    %vm2521 = vcmp.lt.s32.totalorder %v301, 124
    %v2522 = vsel %vm2521, %v2518, %v2520
    %v2523 = vsel %vm2521, %v2520, %v2518
    %v2524 = vlaneseq
    %v2525 = vshrl.u32 %v2524, 7
    %v2526 = vsub.s32 6, %v2525
    %v2527 = vrot.slane %v152, %v2526
    %v2528 = vlaneseq
    %v2529 = vshrl.u32 %v2528, 7
    %v2530 = vsub.s32 6, %v2529
    %v2531 = vrot.slane %v153, %v2530
    %v2532 = vmul.f32 %v2522, %v2527
    %v2533 = vmul.f32 %v2523, %v2531
    %2534 = vrot.lane.b32.xlu0 %v2206, 123
    %v2535 = vpop.permute.xlu0 %2534
    %2536 = vrot.lane.b32.xlu0 %v2207, 123
    %v2537 = vpop.permute.xlu0 %2536
    %vm2538 = vcmp.lt.s32.totalorder %v301, 123
    %v2539 = vsel %vm2538, %v2535, %v2537
    %v2540 = vsel %vm2538, %v2537, %v2535
    %v2541 = vlaneseq
    %v2542 = vshrl.u32 %v2541, 7
    %v2543 = vsub.s32 7, %v2542
    %v2544 = vrot.slane %v152, %v2543
    %v2545 = vlaneseq
    %v2546 = vshrl.u32 %v2545, 7
    %v2547 = vsub.s32 7, %v2546
    %v2548 = vrot.slane %v153, %v2547
    %v2549 = vmul.f32 %v2539, %v2544
    %v2550 = vmul.f32 %v2540, %v2548
    %2551 = vrot.lane.b32.xlu0 %v2206, 122
    %v2552 = vpop.permute.xlu0 %2551
    %2553 = vrot.lane.b32.xlu0 %v2207, 122
    %v2554 = vpop.permute.xlu0 %2553
    %vm2555 = vcmp.lt.s32.totalorder %v301, 122
    %v2556 = vsel %vm2555, %v2552, %v2554
    %v2557 = vsel %vm2555, %v2554, %v2552
    %v2558 = vlaneseq
    %v2559 = vshrl.u32 %v2558, 7
    %v2560 = vsub.s32 0, %v2559
    %v2561 = vrot.slane %v154, %v2560
    %v2562 = vlaneseq
    %v2563 = vshrl.u32 %v2562, 7
    %v2564 = vsub.s32 0, %v2563
    %v2565 = vrot.slane %v155, %v2564
    %v2566 = vmul.f32 %v2556, %v2561
    %v2567 = vmul.f32 %v2557, %v2565
    %2568 = vrot.lane.b32.xlu0 %v2206, 121
    %v2569 = vpop.permute.xlu0 %2568
    %2570 = vrot.lane.b32.xlu0 %v2207, 121
    %v2571 = vpop.permute.xlu0 %2570
    %vm2572 = vcmp.lt.s32.totalorder %v301, 121
    %v2573 = vsel %vm2572, %v2569, %v2571
    %v2574 = vsel %vm2572, %v2571, %v2569
    %v2575 = vlaneseq
    %v2576 = vshrl.u32 %v2575, 7
    %v2577 = vsub.s32 1, %v2576
    %v2578 = vrot.slane %v154, %v2577
    %v2579 = vlaneseq
    %v2580 = vshrl.u32 %v2579, 7
    %v2581 = vsub.s32 1, %v2580
    %v2582 = vrot.slane %v155, %v2581
    %v2583 = vmul.f32 %v2573, %v2578
    %v2584 = vmul.f32 %v2574, %v2582
    %2585 = vrot.lane.b32.xlu0 %v2206, 120
    %v2586 = vpop.permute.xlu0 %2585
    %2587 = vrot.lane.b32.xlu0 %v2207, 120
    %v2588 = vpop.permute.xlu0 %2587
    %vm2589 = vcmp.lt.s32.totalorder %v301, 120
    %v2590 = vsel %vm2589, %v2586, %v2588
    %v2591 = vsel %vm2589, %v2588, %v2586
    %v2592 = vlaneseq
    %v2593 = vshrl.u32 %v2592, 7
    %v2594 = vsub.s32 2, %v2593
    %v2595 = vrot.slane %v154, %v2594
    %v2596 = vlaneseq
    %v2597 = vshrl.u32 %v2596, 7
    %v2598 = vsub.s32 2, %v2597
    %v2599 = vrot.slane %v155, %v2598
    %v2600 = vmul.f32 %v2590, %v2595
    %v2601 = vmul.f32 %v2591, %v2599
    %2602 = vrot.lane.b32.xlu0 %v2206, 119
    %v2603 = vpop.permute.xlu0 %2602
    %2604 = vrot.lane.b32.xlu0 %v2207, 119
    %v2605 = vpop.permute.xlu0 %2604
    %vm2606 = vcmp.lt.s32.totalorder %v301, 119
    %v2607 = vsel %vm2606, %v2603, %v2605
    %v2608 = vsel %vm2606, %v2605, %v2603
    %v2609 = vlaneseq
    %v2610 = vshrl.u32 %v2609, 7
    %v2611 = vsub.s32 3, %v2610
    %v2612 = vrot.slane %v154, %v2611
    %v2613 = vlaneseq
    %v2614 = vshrl.u32 %v2613, 7
    %v2615 = vsub.s32 3, %v2614
    %v2616 = vrot.slane %v155, %v2615
    %v2617 = vmul.f32 %v2607, %v2612
    %v2618 = vmul.f32 %v2608, %v2616
    %2619 = vrot.lane.b32.xlu0 %v2206, 118
    %v2620 = vpop.permute.xlu0 %2619
    %2621 = vrot.lane.b32.xlu0 %v2207, 118
    %v2622 = vpop.permute.xlu0 %2621
    %vm2623 = vcmp.lt.s32.totalorder %v301, 118
    %v2624 = vsel %vm2623, %v2620, %v2622
    %v2625 = vsel %vm2623, %v2622, %v2620
    %v2626 = vlaneseq
    %v2627 = vshrl.u32 %v2626, 7
    %v2628 = vsub.s32 4, %v2627
    %v2629 = vrot.slane %v154, %v2628
    %v2630 = vlaneseq
    %v2631 = vshrl.u32 %v2630, 7
    %v2632 = vsub.s32 4, %v2631
    %v2633 = vrot.slane %v155, %v2632
    %v2634 = vmul.f32 %v2624, %v2629
    %v2635 = vmul.f32 %v2625, %v2633
    %2636 = vset.pattern.permute.xlu0 25
    %2637 = vperm.xlu0 %2636, %v149
    %v2638 = vpop.permute.xlu0 %2637
    %v2640 = vmul.f32 %v2638, %v2482
    %v2641 = vmul.f32 %v2638, %v2483
    %2642 = vset.pattern.permute.xlu0 5
    %2643 = vperm.xlu0 %2642, %v148
    %v2644 = vpop.permute.xlu0 %2643
    %v2646 = vadd.f32 %v2644, %v2640
    %v2647 = vadd.f32 %v2644, %v2641
    %2648 = vset.pattern.permute.xlu0 26
    %2649 = vperm.xlu0 %2648, %v149
    %v2650 = vpop.permute.xlu0 %2649
    %v2652 = vmul.f32 %v2650, %v2490
    %v2653 = vmul.f32 %v2650, %v2491
    %v2654 = vadd.f32 %v2646, %v2652
    %v2655 = vadd.f32 %v2647, %v2653
    %2656 = vset.pattern.permute.xlu0 27
    %2657 = vperm.xlu0 %2656, %v149
    %v2658 = vpop.permute.xlu0 %2657
    %v2660 = vmul.f32 %v2658, %v2238
    %v2661 = vmul.f32 %v2658, %v2239
    %v2662 = vadd.f32 %v2654, %v2660
    %v2663 = vadd.f32 %v2655, %v2661
    %2664 = vset.pattern.permute.xlu0 28
    %2665 = vperm.xlu0 %2664, %v149
    %v2666 = vpop.permute.xlu0 %2665
    %v2668 = vmul.f32 %v2666, %v2206
    %v2669 = vmul.f32 %v2666, %v2207
    %v2670 = vadd.f32 %v2662, %v2668
    %v2671 = vadd.f32 %v2663, %v2669
    %2672 = vset.pattern.permute.xlu0 29
    %2673 = vperm.xlu0 %2672, %v149
    %v2674 = vpop.permute.xlu0 %2673
    %v2676 = vmul.f32 %v2674, %v2246
    %v2677 = vmul.f32 %v2674, %v2247
    %v2678 = vadd.f32 %v2670, %v2676
    %v2679 = vadd.f32 %v2671, %v2677
    %2680 = vset.pattern.permute.xlu0 30
    %2681 = vperm.xlu0 %2680, %v149
    %v2682 = vpop.permute.xlu0 %2681
    %v2684 = vmul.f32 %v2682, %v2498
    %v2685 = vmul.f32 %v2682, %v2499
    %v2686 = vadd.f32 %v2678, %v2684
    %v2687 = vadd.f32 %v2679, %v2685
    %2688 = vset.pattern.permute.xlu0 31
    %2689 = vperm.xlu0 %2688, %v149
    %v2690 = vpop.permute.xlu0 %2689
    %v2692 = vmul.f32 %v2690, %v2515
    %v2693 = vmul.f32 %v2690, %v2516
    %v2694 = vadd.f32 %v2686, %v2692
    %v2695 = vadd.f32 %v2687, %v2693
    %2696 = vrot.lane.b32.xlu0 %v2694, 48
    %v2697 = vpop.permute.xlu0 %2696
    %2698 = vrot.lane.b32.xlu0 %v2695, 48
    %v2699 = vpop.permute.xlu0 %2698
    %vm2700 = vcmp.lt.s32.totalorder %v301, 48
    %v2701 = vsel %vm2700, %v2697, %v2699
    %v2702 = vsel %vm2700, %v2699, %v2697
    %v2703 = vlaneseq
    %v2704 = vshrl.u32 %v2703, 7
    %v2705 = vsub.s32 7, %v2704
    %v2706 = vrot.slane %v156, %v2705
    %v2707 = vlaneseq
    %v2708 = vshrl.u32 %v2707, 7
    %v2709 = vsub.s32 7, %v2708
    %v2710 = vrot.slane %v157, %v2709
    %v2711 = vmul.f32 %v2702, %v2706
    %v2712 = vmul.f32 %v2701, %v2710
    %2713 = vset.pattern.permute.xlu0 32
    %2714 = vperm.xlu0 %2713, %v149
    %v2715 = vpop.permute.xlu0 %2714
    %v2717 = vmul.f32 %v2715, %v2711
    %v2718 = vmul.f32 %v2715, %v2712
    %v2719 = vadd.f32 %v2717, 0.0
    %v2720 = vadd.f32 %v2718, 0.0
    %2721 = vrot.lane.b32.xlu0 %v2694, 32
    %v2722 = vpop.permute.xlu0 %2721
    %2723 = vrot.lane.b32.xlu0 %v2695, 32
    %v2724 = vpop.permute.xlu0 %2723
    %v2725 = vsel %vm363, %v2722, %v2724
    %v2726 = vsel %vm363, %v2724, %v2722
    %v2727 = vmul.f32 %v2726, %v369
    %v2728 = vmul.f32 %v2725, %v373
    %2729 = vset.pattern.permute.xlu0 33
    %2730 = vperm.xlu0 %2729, %v149
    %v2731 = vpop.permute.xlu0 %2730
    %v2733 = vmul.f32 %v2731, %v2727
    %v2734 = vmul.f32 %v2731, %v2728
    %v2735 = vadd.f32 %v2719, %v2733
    %v2736 = vadd.f32 %v2720, %v2734
    %2737 = vrot.lane.b32.xlu0 %v2694, 16
    %v2738 = vpop.permute.xlu0 %2737
    %2739 = vrot.lane.b32.xlu0 %v2695, 16
    %v2740 = vpop.permute.xlu0 %2739
    %v2741 = vsel %vm506, %v2738, %v2740
    %v2742 = vsel %vm506, %v2740, %v2738
    %v2743 = vmul.f32 %v2742, %v512
    %v2744 = vmul.f32 %v2741, %v516
    %2745 = vset.pattern.permute.xlu0 34
    %2746 = vperm.xlu0 %2745, %v149
    %v2747 = vpop.permute.xlu0 %2746
    %v2749 = vmul.f32 %v2747, %v2743
    %v2750 = vmul.f32 %v2747, %v2744
    %v2751 = vadd.f32 %v2735, %v2749
    %v2752 = vadd.f32 %v2736, %v2750
    %2753 = vset.pattern.permute.xlu0 35
    %2754 = vperm.xlu0 %2753, %v149
    %v2755 = vpop.permute.xlu0 %2754
    %v2757 = vmul.f32 %v2755, %v2694
    %v2758 = vmul.f32 %v2755, %v2695
    %v2759 = vadd.f32 %v2751, %v2757
    %v2760 = vadd.f32 %v2752, %v2758
    %2761 = vrot.lane.b32.xlu0 %v2694, 112
    %v2762 = vpop.permute.xlu0 %2761
    %2763 = vrot.lane.b32.xlu0 %v2695, 112
    %v2764 = vpop.permute.xlu0 %2763
    %v2765 = vsel %vm757, %v2762, %v2764
    %v2766 = vsel %vm757, %v2764, %v2762
    %v2767 = vmul.f32 %v2765, %v763
    %v2768 = vmul.f32 %v2766, %v767
    %2769 = vset.pattern.permute.xlu0 36
    %2770 = vperm.xlu0 %2769, %v149
    %v2771 = vpop.permute.xlu0 %2770
    %v2773 = vmul.f32 %v2771, %v2767
    %v2774 = vmul.f32 %v2771, %v2768
    %v2775 = vadd.f32 %v2759, %v2773
    %v2776 = vadd.f32 %v2760, %v2774
    %2777 = vrot.lane.b32.xlu0 %v2694, 96
    %v2778 = vpop.permute.xlu0 %2777
    %2779 = vrot.lane.b32.xlu0 %v2695, 96
    %v2780 = vpop.permute.xlu0 %2779
    %v2781 = vsel %vm882, %v2778, %v2780
    %v2782 = vsel %vm882, %v2780, %v2778
    %v2783 = vmul.f32 %v2781, %v888
    %v2784 = vmul.f32 %v2782, %v892
    %2785 = vset.pattern.permute.xlu0 37
    %2786 = vperm.xlu0 %2785, %v149
    %v2787 = vpop.permute.xlu0 %2786
    %v2789 = vmul.f32 %v2787, %v2783
    %v2790 = vmul.f32 %v2787, %v2784
    %v2791 = vadd.f32 %v2775, %v2789
    %v2792 = vadd.f32 %v2776, %v2790
    %2793 = vrot.lane.b32.xlu0 %v2694, 80
    %v2794 = vpop.permute.xlu0 %2793
    %2795 = vrot.lane.b32.xlu0 %v2695, 80
    %v2796 = vpop.permute.xlu0 %2795
    %vm2797 = vcmp.lt.s32.totalorder %v301, 80
    %v2798 = vsel %vm2797, %v2794, %v2796
    %v2799 = vsel %vm2797, %v2796, %v2794
    %v2800 = vlaneseq
    %v2801 = vshrl.u32 %v2800, 7
    %v2802 = vsub.s32 5, %v2801
    %v2803 = vrot.slane %v158, %v2802
    %v2804 = vlaneseq
    %v2805 = vshrl.u32 %v2804, 7
    %v2806 = vsub.s32 5, %v2805
    %v2807 = vrot.slane %v159, %v2806
    %v2808 = vmul.f32 %v2798, %v2803
    %v2809 = vmul.f32 %v2799, %v2807
    %2810 = vset.pattern.permute.xlu0 38
    %2811 = vperm.xlu0 %2810, %v149
    %v2812 = vpop.permute.xlu0 %2811
    %v2814 = vmul.f32 %v2812, %v2808
    %v2815 = vmul.f32 %v2812, %v2809
    %v2816 = vadd.f32 %v2791, %v2814
    %v2817 = vadd.f32 %v2792, %v2815
    %2818 = vset.pattern.permute.xlu0 6
    %2819 = vperm.xlu0 %2818, %v148
    %v2820 = vpop.permute.xlu0 %2819
    %v2822 = vadd.f32 %v2816, %v2820
    %v2823 = vadd.f32 %v2817, %v2820
    %2824 = vset.pattern.permute.xlu0 39
    %2825 = vperm.xlu0 %2824, %v149
    %v2826 = vpop.permute.xlu0 %2825
    %v2828 = vmul.f32 %v2826, %v2448
    %v2829 = vmul.f32 %v2826, %v2449
    %2830 = vset.pattern.permute.xlu0 7
    %2831 = vperm.xlu0 %2830, %v148
    %v2832 = vpop.permute.xlu0 %2831
    %v2834 = vadd.f32 %v2832, %v2828
    %v2835 = vadd.f32 %v2832, %v2829
    %2836 = vset.pattern.permute.xlu0 40
    %2837 = vperm.xlu0 %2836, %v149
    %v2838 = vpop.permute.xlu0 %2837
    %v2840 = vmul.f32 %v2838, %v2465
    %v2841 = vmul.f32 %v2838, %v2466
    %v2842 = vadd.f32 %v2834, %v2840
    %v2843 = vadd.f32 %v2835, %v2841
    %2844 = vset.pattern.permute.xlu0 41
    %2845 = vperm.xlu0 %2844, %v149
    %v2846 = vpop.permute.xlu0 %2845
    %v2848 = vmul.f32 %v2846, %v2482
    %v2849 = vmul.f32 %v2846, %v2483
    %v2850 = vadd.f32 %v2842, %v2848
    %v2851 = vadd.f32 %v2843, %v2849
    %2852 = vset.pattern.permute.xlu0 42
    %2853 = vperm.xlu0 %2852, %v149
    %v2854 = vpop.permute.xlu0 %2853
    %v2856 = vmul.f32 %v2854, %v2490
    %v2857 = vmul.f32 %v2854, %v2491
    %v2858 = vadd.f32 %v2850, %v2856
    %v2859 = vadd.f32 %v2851, %v2857
    %2860 = vset.pattern.permute.xlu0 43
    %2861 = vperm.xlu0 %2860, %v149
    %v2862 = vpop.permute.xlu0 %2861
    %v2864 = vmul.f32 %v2862, %v2238
    %v2865 = vmul.f32 %v2862, %v2239
    %v2866 = vadd.f32 %v2858, %v2864
    %v2867 = vadd.f32 %v2859, %v2865
    %2868 = vset.pattern.permute.xlu0 44
    %2869 = vperm.xlu0 %2868, %v149
    %v2870 = vpop.permute.xlu0 %2869
    %v2872 = vmul.f32 %v2870, %v2206
    %v2873 = vmul.f32 %v2870, %v2207
    %v2874 = vadd.f32 %v2866, %v2872
    %v2875 = vadd.f32 %v2867, %v2873
    %2876 = vset.pattern.permute.xlu0 45
    %2877 = vperm.xlu0 %2876, %v149
    %v2878 = vpop.permute.xlu0 %2877
    %v2880 = vmul.f32 %v2878, %v2246
    %v2881 = vmul.f32 %v2878, %v2247
    %v2882 = vadd.f32 %v2874, %v2880
    %v2883 = vadd.f32 %v2875, %v2881
    %2884 = vset.pattern.permute.xlu0 46
    %2885 = vperm.xlu0 %2884, %v149
    %v2886 = vpop.permute.xlu0 %2885
    %v2888 = vmul.f32 %v2886, %v2498
    %v2889 = vmul.f32 %v2886, %v2499
    %v2890 = vadd.f32 %v2882, %v2888
    %v2891 = vadd.f32 %v2883, %v2889
    %2892 = vset.pattern.permute.xlu0 47
    %2893 = vperm.xlu0 %2892, %v149
    %v2894 = vpop.permute.xlu0 %2893
    %v2896 = vmul.f32 %v2894, %v2515
    %v2897 = vmul.f32 %v2894, %v2516
    %v2898 = vadd.f32 %v2890, %v2896
    %v2899 = vadd.f32 %v2891, %v2897
    %2900 = vset.pattern.permute.xlu0 48
    %2901 = vperm.xlu0 %2900, %v149
    %v2902 = vpop.permute.xlu0 %2901
    %v2904 = vmul.f32 %v2902, %v2532
    %v2905 = vmul.f32 %v2902, %v2533
    %v2906 = vadd.f32 %v2898, %v2904
    %v2907 = vadd.f32 %v2899, %v2905
    %2908 = vset.pattern.permute.xlu0 49
    %2909 = vperm.xlu0 %2908, %v149
    %v2910 = vpop.permute.xlu0 %2909
    %v2912 = vmul.f32 %v2910, %v2549
    %v2913 = vmul.f32 %v2910, %v2550
    %v2914 = vadd.f32 %v2906, %v2912
    %v2915 = vadd.f32 %v2907, %v2913
    %2916 = vrot.lane.b32.xlu0 %v2914, 80
    %v2917 = vpop.permute.xlu0 %2916
    %2918 = vrot.lane.b32.xlu0 %v2915, 80
    %v2919 = vpop.permute.xlu0 %2918
    %v2920 = vsel %vm2797, %v2917, %v2919
    %v2921 = vsel %vm2797, %v2919, %v2917
    %v2922 = vlaneseq
    %v2923 = vshrl.u32 %v2922, 7
    %v2924 = vsub.s32 5, %v2923
    %v2925 = vrot.slane %v156, %v2924
    %v2926 = vlaneseq
    %v2927 = vshrl.u32 %v2926, 7
    %v2928 = vsub.s32 5, %v2927
    %v2929 = vrot.slane %v157, %v2928
    %v2930 = vmul.f32 %v2921, %v2925
    %v2931 = vmul.f32 %v2920, %v2929
    %2932 = vset.pattern.permute.xlu0 50
    %2933 = vperm.xlu0 %2932, %v149
    %v2934 = vpop.permute.xlu0 %2933
    %v2936 = vmul.f32 %v2934, %v2930
    %v2937 = vmul.f32 %v2934, %v2931
    %v2938 = vadd.f32 %v2936, 0.0
    %v2939 = vadd.f32 %v2937, 0.0
    %2940 = vrot.lane.b32.xlu0 %v2914, 64
    %v2941 = vpop.permute.xlu0 %2940
    %2942 = vrot.lane.b32.xlu0 %v2915, 64
    %v2943 = vpop.permute.xlu0 %2942
    %vm2944 = vcmp.lt.s32.totalorder %v301, 64
    %v2945 = vsel %vm2944, %v2941, %v2943
    %v2946 = vsel %vm2944, %v2943, %v2941
    %v2947 = vlaneseq
    %v2948 = vshrl.u32 %v2947, 7
    %v2949 = vsub.s32 6, %v2948
    %v2950 = vrot.slane %v156, %v2949
    %v2951 = vlaneseq
    %v2952 = vshrl.u32 %v2951, 7
    %v2953 = vsub.s32 6, %v2952
    %v2954 = vrot.slane %v157, %v2953
    %v2955 = vmul.f32 %v2946, %v2950
    %v2956 = vmul.f32 %v2945, %v2954
    %2957 = vset.pattern.permute.xlu0 51
    %2958 = vperm.xlu0 %2957, %v149
    %v2959 = vpop.permute.xlu0 %2958
    %v2961 = vmul.f32 %v2959, %v2955
    %v2962 = vmul.f32 %v2959, %v2956
    %v2963 = vadd.f32 %v2938, %v2961
    %v2964 = vadd.f32 %v2939, %v2962
    %2965 = vrot.lane.b32.xlu0 %v2914, 48
    %v2966 = vpop.permute.xlu0 %2965
    %2967 = vrot.lane.b32.xlu0 %v2915, 48
    %v2968 = vpop.permute.xlu0 %2967
    %v2969 = vsel %vm2700, %v2966, %v2968
    %v2970 = vsel %vm2700, %v2968, %v2966
    %v2971 = vmul.f32 %v2970, %v2706
    %v2972 = vmul.f32 %v2969, %v2710
    %2973 = vset.pattern.permute.xlu0 52
    %2974 = vperm.xlu0 %2973, %v149
    %v2975 = vpop.permute.xlu0 %2974
    %v2977 = vmul.f32 %v2975, %v2971
    %v2978 = vmul.f32 %v2975, %v2972
    %v2979 = vadd.f32 %v2963, %v2977
    %v2980 = vadd.f32 %v2964, %v2978
    %2981 = vrot.lane.b32.xlu0 %v2914, 32
    %v2982 = vpop.permute.xlu0 %2981
    %2983 = vrot.lane.b32.xlu0 %v2915, 32
    %v2984 = vpop.permute.xlu0 %2983
    %v2985 = vsel %vm363, %v2982, %v2984
    %v2986 = vsel %vm363, %v2984, %v2982
    %v2987 = vmul.f32 %v2986, %v369
    %v2988 = vmul.f32 %v2985, %v373
    %2989 = vset.pattern.permute.xlu0 53
    %2990 = vperm.xlu0 %2989, %v149
    %v2991 = vpop.permute.xlu0 %2990
    %v2993 = vmul.f32 %v2991, %v2987
    %v2994 = vmul.f32 %v2991, %v2988
    %v2995 = vadd.f32 %v2979, %v2993
    %v2996 = vadd.f32 %v2980, %v2994
    %2997 = vrot.lane.b32.xlu0 %v2914, 16
    %v2998 = vpop.permute.xlu0 %2997
    %2999 = vrot.lane.b32.xlu0 %v2915, 16
    %v3000 = vpop.permute.xlu0 %2999
    %v3001 = vsel %vm506, %v2998, %v3000
    %v3002 = vsel %vm506, %v3000, %v2998
    %v3003 = vmul.f32 %v3002, %v512
    %v3004 = vmul.f32 %v3001, %v516
    %3005 = vset.pattern.permute.xlu0 54
    %3006 = vperm.xlu0 %3005, %v149
    %v3007 = vpop.permute.xlu0 %3006
    %v3009 = vmul.f32 %v3007, %v3003
    %v3010 = vmul.f32 %v3007, %v3004
    %v3011 = vadd.f32 %v2995, %v3009
    %v3012 = vadd.f32 %v2996, %v3010
    %3013 = vset.pattern.permute.xlu0 55
    %3014 = vperm.xlu0 %3013, %v149
    %v3015 = vpop.permute.xlu0 %3014
    %v3017 = vmul.f32 %v3015, %v2914
    %v3018 = vmul.f32 %v3015, %v2915
    %v3019 = vadd.f32 %v3011, %v3017
    %v3020 = vadd.f32 %v3012, %v3018
    %3021 = vrot.lane.b32.xlu0 %v2914, 112
    %v3022 = vpop.permute.xlu0 %3021
    %3023 = vrot.lane.b32.xlu0 %v2915, 112
    %v3024 = vpop.permute.xlu0 %3023
    %v3025 = vsel %vm757, %v3022, %v3024
    %v3026 = vsel %vm757, %v3024, %v3022
    %v3027 = vmul.f32 %v3025, %v763
    %v3028 = vmul.f32 %v3026, %v767
    %3029 = vset.pattern.permute.xlu0 56
    %3030 = vperm.xlu0 %3029, %v149
    %v3031 = vpop.permute.xlu0 %3030
    %v3033 = vmul.f32 %v3031, %v3027
    %v3034 = vmul.f32 %v3031, %v3028
    %v3035 = vadd.f32 %v3019, %v3033
    %v3036 = vadd.f32 %v3020, %v3034
    %3037 = vrot.lane.b32.xlu0 %v2914, 96
    %v3038 = vpop.permute.xlu0 %3037
    %3039 = vrot.lane.b32.xlu0 %v2915, 96
    %v3040 = vpop.permute.xlu0 %3039
    %v3041 = vsel %vm882, %v3038, %v3040
    %v3042 = vsel %vm882, %v3040, %v3038
    %v3043 = vmul.f32 %v3041, %v888
    %v3044 = vmul.f32 %v3042, %v892
    %3045 = vset.pattern.permute.xlu0 57
    %3046 = vperm.xlu0 %3045, %v149
    %v3047 = vpop.permute.xlu0 %3046
    %v3049 = vmul.f32 %v3047, %v3043
    %v3050 = vmul.f32 %v3047, %v3044
    %v3051 = vadd.f32 %v3035, %v3049
    %v3052 = vadd.f32 %v3036, %v3050
    %v3053 = vmul.f32 %v2920, %v2803
    %v3054 = vmul.f32 %v2921, %v2807
    %3055 = vset.pattern.permute.xlu0 58
    %3056 = vperm.xlu0 %3055, %v149
    %v3057 = vpop.permute.xlu0 %3056
    %v3059 = vmul.f32 %v3057, %v3053
    %v3060 = vmul.f32 %v3057, %v3054
    %v3061 = vadd.f32 %v3051, %v3059
    %v3062 = vadd.f32 %v3052, %v3060
    %v3063 = vlaneseq
    %v3064 = vshrl.u32 %v3063, 7
    %v3065 = vsub.s32 6, %v3064
    %v3066 = vrot.slane %v158, %v3065
    %v3067 = vlaneseq
    %v3068 = vshrl.u32 %v3067, 7
    %v3069 = vsub.s32 6, %v3068
    %v3070 = vrot.slane %v159, %v3069
    %v3071 = vmul.f32 %v2945, %v3066
    %v3072 = vmul.f32 %v2946, %v3070
    %3073 = vset.pattern.permute.xlu0 59
    %3074 = vperm.xlu0 %3073, %v149
    %v3075 = vpop.permute.xlu0 %3074
    %v3077 = vmul.f32 %v3075, %v3071
    %v3078 = vmul.f32 %v3075, %v3072
    %v3079 = vadd.f32 %v3061, %v3077
    %v3080 = vadd.f32 %v3062, %v3078
    %v3081 = vlaneseq
    %v3082 = vshrl.u32 %v3081, 7
    %v3083 = vsub.s32 7, %v3082
    %v3084 = vrot.slane %v158, %v3083
    %v3085 = vlaneseq
    %v3086 = vshrl.u32 %v3085, 7
    %v3087 = vsub.s32 7, %v3086
    %v3088 = vrot.slane %v159, %v3087
    %v3089 = vmul.f32 %v2969, %v3084
    %v3090 = vmul.f32 %v2970, %v3088
    %3091 = vset.pattern.permute.xlu0 60
    %3092 = vperm.xlu0 %3091, %v149
    %v3093 = vpop.permute.xlu0 %3092
    %v3095 = vmul.f32 %v3093, %v3089
    %v3096 = vmul.f32 %v3093, %v3090
    %v3097 = vadd.f32 %v3079, %v3095
    %v3098 = vadd.f32 %v3080, %v3096
    %3099 = vset.pattern.permute.xlu0 8
    %3100 = vperm.xlu0 %3099, %v148
    %v3101 = vpop.permute.xlu0 %3100
    %v3103 = vadd.f32 %v3097, %v3101
    %v3104 = vadd.f32 %v3098, %v3101
    %3105 = vset.pattern.permute.xlu0 61
    %3106 = vperm.xlu0 %3105, %v149
    %v3107 = vpop.permute.xlu0 %3106
    %v3109 = vmul.f32 %v3107, %v2363
    %v3110 = vmul.f32 %v3107, %v2364
    %3111 = vset.pattern.permute.xlu0 9
    %3112 = vperm.xlu0 %3111, %v148
    %v3113 = vpop.permute.xlu0 %3112
    %v3115 = vadd.f32 %v3113, %v3109
    %v3116 = vadd.f32 %v3113, %v3110
    %3117 = vset.pattern.permute.xlu0 62
    %3118 = vperm.xlu0 %3117, %v149
    %v3119 = vpop.permute.xlu0 %3118
    %v3121 = vmul.f32 %v3119, %v2380
    %v3122 = vmul.f32 %v3119, %v2381
    %v3123 = vadd.f32 %v3115, %v3121
    %v3124 = vadd.f32 %v3116, %v3122
    %3125 = vset.pattern.permute.xlu0 63
    %3126 = vperm.xlu0 %3125, %v149
    %v3127 = vpop.permute.xlu0 %3126
    %v3129 = vmul.f32 %v3127, %v2397
    %v3130 = vmul.f32 %v3127, %v2398
    %v3131 = vadd.f32 %v3123, %v3129
    %v3132 = vadd.f32 %v3124, %v3130
    %3133 = vset.pattern.permute.xlu0 64
    %3134 = vperm.xlu0 %3133, %v149
    %v3135 = vpop.permute.xlu0 %3134
    %v3137 = vmul.f32 %v3135, %v2414
    %v3138 = vmul.f32 %v3135, %v2415
    %v3139 = vadd.f32 %v3131, %v3137
    %v3140 = vadd.f32 %v3132, %v3138
    %3141 = vset.pattern.permute.xlu0 65
    %3142 = vperm.xlu0 %3141, %v149
    %v3143 = vpop.permute.xlu0 %3142
    %v3145 = vmul.f32 %v3143, %v2431
    %v3146 = vmul.f32 %v3143, %v2432
    %v3147 = vadd.f32 %v3139, %v3145
    %v3148 = vadd.f32 %v3140, %v3146
    %3149 = vset.pattern.permute.xlu0 66
    %3150 = vperm.xlu0 %3149, %v149
    %v3151 = vpop.permute.xlu0 %3150
    %v3153 = vmul.f32 %v3151, %v2448
    %v3154 = vmul.f32 %v3151, %v2449
    %v3155 = vadd.f32 %v3147, %v3153
    %v3156 = vadd.f32 %v3148, %v3154
    %3157 = vset.pattern.permute.xlu0 67
    %3158 = vperm.xlu0 %3157, %v149
    %v3159 = vpop.permute.xlu0 %3158
    %v3161 = vmul.f32 %v3159, %v2465
    %v3162 = vmul.f32 %v3159, %v2466
    %v3163 = vadd.f32 %v3155, %v3161
    %v3164 = vadd.f32 %v3156, %v3162
    %3165 = vset.pattern.permute.xlu0 68
    %3166 = vperm.xlu0 %3165, %v149
    %v3167 = vpop.permute.xlu0 %3166
    %v3169 = vmul.f32 %v3167, %v2482
    %v3170 = vmul.f32 %v3167, %v2483
    %v3171 = vadd.f32 %v3163, %v3169
    %v3172 = vadd.f32 %v3164, %v3170
    %3173 = vset.pattern.permute.xlu0 69
    %3174 = vperm.xlu0 %3173, %v149
    %v3175 = vpop.permute.xlu0 %3174
    %v3177 = vmul.f32 %v3175, %v2490
    %v3178 = vmul.f32 %v3175, %v2491
    %v3179 = vadd.f32 %v3171, %v3177
    %v3180 = vadd.f32 %v3172, %v3178
    %3181 = vset.pattern.permute.xlu0 70
    %3182 = vperm.xlu0 %3181, %v149
    %v3183 = vpop.permute.xlu0 %3182
    %v3185 = vmul.f32 %v3183, %v2238
    %v3186 = vmul.f32 %v3183, %v2239
    %v3187 = vadd.f32 %v3179, %v3185
    %v3188 = vadd.f32 %v3180, %v3186
    %3189 = vset.pattern.permute.xlu0 71
    %3190 = vperm.xlu0 %3189, %v149
    %v3191 = vpop.permute.xlu0 %3190
    %v3193 = vmul.f32 %v3191, %v2206
    %v3194 = vmul.f32 %v3191, %v2207
    %v3195 = vadd.f32 %v3187, %v3193
    %v3196 = vadd.f32 %v3188, %v3194
    %3197 = vset.pattern.permute.xlu0 72
    %3198 = vperm.xlu0 %3197, %v149
    %v3199 = vpop.permute.xlu0 %3198
    %v3201 = vmul.f32 %v3199, %v2246
    %v3202 = vmul.f32 %v3199, %v2247
    %v3203 = vadd.f32 %v3195, %v3201
    %v3204 = vadd.f32 %v3196, %v3202
    %3205 = vset.pattern.permute.xlu0 73
    %3206 = vperm.xlu0 %3205, %v149
    %v3207 = vpop.permute.xlu0 %3206
    %v3209 = vmul.f32 %v3207, %v2498
    %v3210 = vmul.f32 %v3207, %v2499
    %v3211 = vadd.f32 %v3203, %v3209
    %v3212 = vadd.f32 %v3204, %v3210
    %3213 = vset.pattern.permute.xlu0 74
    %3214 = vperm.xlu0 %3213, %v149
    %v3215 = vpop.permute.xlu0 %3214
    %v3217 = vmul.f32 %v3215, %v2515
    %v3218 = vmul.f32 %v3215, %v2516
    %v3219 = vadd.f32 %v3211, %v3217
    %v3220 = vadd.f32 %v3212, %v3218
    %3221 = vset.pattern.permute.xlu0 75
    %3222 = vperm.xlu0 %3221, %v149
    %v3223 = vpop.permute.xlu0 %3222
    %v3225 = vmul.f32 %v3223, %v2532
    %v3226 = vmul.f32 %v3223, %v2533
    %v3227 = vadd.f32 %v3219, %v3225
    %v3228 = vadd.f32 %v3220, %v3226
    %3229 = vset.pattern.permute.xlu0 76
    %3230 = vperm.xlu0 %3229, %v149
    %v3231 = vpop.permute.xlu0 %3230
    %v3233 = vmul.f32 %v3231, %v2549
    %v3234 = vmul.f32 %v3231, %v2550
    %v3235 = vadd.f32 %v3227, %v3233
    %v3236 = vadd.f32 %v3228, %v3234
    %3237 = vset.pattern.permute.xlu0 77
    %3238 = vperm.xlu0 %3237, %v149
    %v3239 = vpop.permute.xlu0 %3238
    %v3241 = vmul.f32 %v3239, %v2566
    %v3242 = vmul.f32 %v3239, %v2567
    %v3243 = vadd.f32 %v3235, %v3241
    %v3244 = vadd.f32 %v3236, %v3242
    %3245 = vset.pattern.permute.xlu0 78
    %3246 = vperm.xlu0 %3245, %v149
    %v3247 = vpop.permute.xlu0 %3246
    %v3249 = vmul.f32 %v3247, %v2583
    %v3250 = vmul.f32 %v3247, %v2584
    %v3251 = vadd.f32 %v3243, %v3249
    %v3252 = vadd.f32 %v3244, %v3250
    %3253 = vset.pattern.permute.xlu0 79
    %3254 = vperm.xlu0 %3253, %v149
    %v3255 = vpop.permute.xlu0 %3254
    %v3257 = vmul.f32 %v3255, %v2600
    %v3258 = vmul.f32 %v3255, %v2601
    %v3259 = vadd.f32 %v3251, %v3257
    %v3260 = vadd.f32 %v3252, %v3258
    %3261 = vset.pattern.permute.xlu0 80
    %3262 = vperm.xlu0 %3261, %v149
    %v3263 = vpop.permute.xlu0 %3262
    %v3265 = vmul.f32 %v3263, %v2617
    %v3266 = vmul.f32 %v3263, %v2618
    %v3267 = vadd.f32 %v3259, %v3265
    %v3268 = vadd.f32 %v3260, %v3266
    %3269 = vset.pattern.permute.xlu0 81
    %3270 = vperm.xlu0 %3269, %v149
    %v3271 = vpop.permute.xlu0 %3270
    %v3273 = vmul.f32 %v3271, %v2634
    %v3274 = vmul.f32 %v3271, %v2635
    %v3275 = vadd.f32 %v3267, %v3273
    %v3276 = vadd.f32 %v3268, %v3274
    %3277 = vrot.lane.b32.xlu0 %v3275, 32
    %v3278 = vpop.permute.xlu0 %3277
    %3279 = vrot.lane.b32.xlu0 %v3276, 32
    %v3280 = vpop.permute.xlu0 %3279
    %v3281 = vsel %vm363, %v3278, %v3280
    %v3282 = vsel %vm363, %v3280, %v3278
    %v3283 = vlaneseq
    %v3284 = vshrl.u32 %v3283, 7
    %v3285 = vsub.s32 0, %v3284
    %v3286 = vrot.slane %v156, %v3285
    %v3287 = vlaneseq
    %v3288 = vshrl.u32 %v3287, 7
    %v3289 = vsub.s32 0, %v3288
    %v3290 = vrot.slane %v157, %v3289
    %v3291 = vmul.f32 %v3281, %v3286
    %v3292 = vmul.f32 %v3282, %v3290
    %3293 = vset.pattern.permute.xlu0 82
    %3294 = vperm.xlu0 %3293, %v149
    %v3295 = vpop.permute.xlu0 %3294
    %v3297 = vmul.f32 %v3295, %v3291
    %v3298 = vmul.f32 %v3295, %v3292
    %v3299 = vadd.f32 %v3297, 0.0
    %v3300 = vadd.f32 %v3298, 0.0
    %3301 = vrot.lane.b32.xlu0 %v3275, 16
    %v3302 = vpop.permute.xlu0 %3301
    %3303 = vrot.lane.b32.xlu0 %v3276, 16
    %v3304 = vpop.permute.xlu0 %3303
    %v3305 = vsel %vm506, %v3302, %v3304
    %v3306 = vsel %vm506, %v3304, %v3302
    %v3307 = vlaneseq
    %v3308 = vshrl.u32 %v3307, 7
    %v3309 = vsub.s32 1, %v3308
    %v3310 = vrot.slane %v156, %v3309
    %v3311 = vlaneseq
    %v3312 = vshrl.u32 %v3311, 7
    %v3313 = vsub.s32 1, %v3312
    %v3314 = vrot.slane %v157, %v3313
    %v3315 = vmul.f32 %v3305, %v3310
    %v3316 = vmul.f32 %v3306, %v3314
    %3317 = vset.pattern.permute.xlu0 83
    %3318 = vperm.xlu0 %3317, %v149
    %v3319 = vpop.permute.xlu0 %3318
    %v3321 = vmul.f32 %v3319, %v3315
    %v3322 = vmul.f32 %v3319, %v3316
    %v3323 = vadd.f32 %v3299, %v3321
    %v3324 = vadd.f32 %v3300, %v3322
    %v3325 = vlaneseq
    %v3326 = vshrl.u32 %v3325, 7
    %v3327 = vsub.s32 2, %v3326
    %v3328 = vrot.slane %v156, %v3327
    %v3329 = vlaneseq
    %v3330 = vshrl.u32 %v3329, 7
    %v3331 = vsub.s32 2, %v3330
    %v3332 = vrot.slane %v157, %v3331
    %v3333 = vmul.f32 %v3276, %v3328
    %v3334 = vmul.f32 %v3275, %v3332
    %3335 = vset.pattern.permute.xlu0 84
    %3336 = vperm.xlu0 %3335, %v149
    %v3337 = vpop.permute.xlu0 %3336
    %v3339 = vmul.f32 %v3337, %v3333
    %v3340 = vmul.f32 %v3337, %v3334
    %v3341 = vadd.f32 %v3323, %v3339
    %v3342 = vadd.f32 %v3324, %v3340
    %3343 = vrot.lane.b32.xlu0 %v3275, 112
    %v3344 = vpop.permute.xlu0 %3343
    %3345 = vrot.lane.b32.xlu0 %v3276, 112
    %v3346 = vpop.permute.xlu0 %3345
    %v3347 = vsel %vm757, %v3344, %v3346
    %v3348 = vsel %vm757, %v3346, %v3344
    %v3349 = vlaneseq
    %v3350 = vshrl.u32 %v3349, 7
    %v3351 = vsub.s32 3, %v3350
    %v3352 = vrot.slane %v156, %v3351
    %v3353 = vlaneseq
    %v3354 = vshrl.u32 %v3353, 7
    %v3355 = vsub.s32 3, %v3354
    %v3356 = vrot.slane %v157, %v3355
    %v3357 = vmul.f32 %v3348, %v3352
    %v3358 = vmul.f32 %v3347, %v3356
    %3359 = vset.pattern.permute.xlu0 85
    %3360 = vperm.xlu0 %3359, %v149
    %v3361 = vpop.permute.xlu0 %3360
    %v3363 = vmul.f32 %v3361, %v3357
    %v3364 = vmul.f32 %v3361, %v3358
    %v3365 = vadd.f32 %v3341, %v3363
    %v3366 = vadd.f32 %v3342, %v3364
    %3367 = vrot.lane.b32.xlu0 %v3275, 96
    %v3368 = vpop.permute.xlu0 %3367
    %3369 = vrot.lane.b32.xlu0 %v3276, 96
    %v3370 = vpop.permute.xlu0 %3369
    %v3371 = vsel %vm882, %v3368, %v3370
    %v3372 = vsel %vm882, %v3370, %v3368
    %v3373 = vlaneseq
    %v3374 = vshrl.u32 %v3373, 7
    %v3375 = vsub.s32 4, %v3374
    %v3376 = vrot.slane %v156, %v3375
    %v3377 = vlaneseq
    %v3378 = vshrl.u32 %v3377, 7
    %v3379 = vsub.s32 4, %v3378
    %v3380 = vrot.slane %v157, %v3379
    %v3381 = vmul.f32 %v3372, %v3376
    %v3382 = vmul.f32 %v3371, %v3380
    %3383 = vset.pattern.permute.xlu0 86
    %3384 = vperm.xlu0 %3383, %v149
    %v3385 = vpop.permute.xlu0 %3384
    %v3387 = vmul.f32 %v3385, %v3381
    %v3388 = vmul.f32 %v3385, %v3382
    %v3389 = vadd.f32 %v3365, %v3387
    %v3390 = vadd.f32 %v3366, %v3388
    %3391 = vrot.lane.b32.xlu0 %v3275, 80
    %v3392 = vpop.permute.xlu0 %3391
    %3393 = vrot.lane.b32.xlu0 %v3276, 80
    %v3394 = vpop.permute.xlu0 %3393
    %v3395 = vsel %vm2797, %v3392, %v3394
    %v3396 = vsel %vm2797, %v3394, %v3392
    %v3397 = vmul.f32 %v3396, %v2925
    %v3398 = vmul.f32 %v3395, %v2929
    %3399 = vset.pattern.permute.xlu0 87
    %3400 = vperm.xlu0 %3399, %v149
    %v3401 = vpop.permute.xlu0 %3400
    %v3403 = vmul.f32 %v3401, %v3397
    %v3404 = vmul.f32 %v3401, %v3398
    %v3405 = vadd.f32 %v3389, %v3403
    %v3406 = vadd.f32 %v3390, %v3404
    %3407 = vrot.lane.b32.xlu0 %v3275, 64
    %v3408 = vpop.permute.xlu0 %3407
    %3409 = vrot.lane.b32.xlu0 %v3276, 64
    %v3410 = vpop.permute.xlu0 %3409
    %v3411 = vsel %vm2944, %v3408, %v3410
    %v3412 = vsel %vm2944, %v3410, %v3408
    %v3413 = vmul.f32 %v3412, %v2950
    %v3414 = vmul.f32 %v3411, %v2954
    %3415 = vset.pattern.permute.xlu0 88
    %3416 = vperm.xlu0 %3415, %v149
    %v3417 = vpop.permute.xlu0 %3416
    %v3419 = vmul.f32 %v3417, %v3413
    %v3420 = vmul.f32 %v3417, %v3414
    %v3421 = vadd.f32 %v3405, %v3419
    %v3422 = vadd.f32 %v3406, %v3420
    %3423 = vrot.lane.b32.xlu0 %v3275, 48
    %v3424 = vpop.permute.xlu0 %3423
    %3425 = vrot.lane.b32.xlu0 %v3276, 48
    %v3426 = vpop.permute.xlu0 %3425
    %v3427 = vsel %vm2700, %v3424, %v3426
    %v3428 = vsel %vm2700, %v3426, %v3424
    %v3429 = vmul.f32 %v3428, %v2706
    %v3430 = vmul.f32 %v3427, %v2710
    %3431 = vset.pattern.permute.xlu0 89
    %3432 = vperm.xlu0 %3431, %v149
    %v3433 = vpop.permute.xlu0 %3432
    %v3435 = vmul.f32 %v3433, %v3429
    %v3436 = vmul.f32 %v3433, %v3430
    %v3437 = vadd.f32 %v3421, %v3435
    %v3438 = vadd.f32 %v3422, %v3436
    %v3439 = vmul.f32 %v3282, %v369
    %v3440 = vmul.f32 %v3281, %v373
    %3441 = vset.pattern.permute.xlu0 90
    %3442 = vperm.xlu0 %3441, %v149
    %v3443 = vpop.permute.xlu0 %3442
    %v3445 = vmul.f32 %v3443, %v3439
    %v3446 = vmul.f32 %v3443, %v3440
    %v3447 = vadd.f32 %v3437, %v3445
    %v3448 = vadd.f32 %v3438, %v3446
    %v3449 = vmul.f32 %v3306, %v512
    %v3450 = vmul.f32 %v3305, %v516
    %3451 = vset.pattern.permute.xlu0 91
    %3452 = vperm.xlu0 %3451, %v149
    %v3453 = vpop.permute.xlu0 %3452
    %v3455 = vmul.f32 %v3453, %v3449
    %v3456 = vmul.f32 %v3453, %v3450
    %v3457 = vadd.f32 %v3447, %v3455
    %v3458 = vadd.f32 %v3448, %v3456
    %3459 = vset.pattern.permute.xlu0 92
    %3460 = vperm.xlu0 %3459, %v149
    %v3461 = vpop.permute.xlu0 %3460
    %v3463 = vmul.f32 %v3461, %v3275
    %v3464 = vmul.f32 %v3461, %v3276
    %v3465 = vadd.f32 %v3457, %v3463
    %v3466 = vadd.f32 %v3458, %v3464
    %v3467 = vmul.f32 %v3347, %v763
    %v3468 = vmul.f32 %v3348, %v767
    %3469 = vset.pattern.permute.xlu0 93
    %3470 = vperm.xlu0 %3469, %v149
    %v3471 = vpop.permute.xlu0 %3470
    %v3473 = vmul.f32 %v3471, %v3467
    %v3474 = vmul.f32 %v3471, %v3468
    %v3475 = vadd.f32 %v3465, %v3473
    %v3476 = vadd.f32 %v3466, %v3474
    %v3477 = vmul.f32 %v3371, %v888
    %v3478 = vmul.f32 %v3372, %v892
    %3479 = vset.pattern.permute.xlu0 94
    %3480 = vperm.xlu0 %3479, %v149
    %v3481 = vpop.permute.xlu0 %3480
    %v3483 = vmul.f32 %v3481, %v3477
    %v3484 = vmul.f32 %v3481, %v3478
    %v3485 = vadd.f32 %v3475, %v3483
    %v3486 = vadd.f32 %v3476, %v3484
    %v3487 = vmul.f32 %v3395, %v2803
    %v3488 = vmul.f32 %v3396, %v2807
    %3489 = vset.pattern.permute.xlu0 95
    %3490 = vperm.xlu0 %3489, %v149
    %v3491 = vpop.permute.xlu0 %3490
    %v3493 = vmul.f32 %v3491, %v3487
    %v3494 = vmul.f32 %v3491, %v3488
    %v3495 = vadd.f32 %v3485, %v3493
    %v3496 = vadd.f32 %v3486, %v3494
    %v3497 = vmul.f32 %v3411, %v3066
    %v3498 = vmul.f32 %v3412, %v3070
    %3499 = vset.pattern.permute.xlu0 96
    %3500 = vperm.xlu0 %3499, %v149
    %v3501 = vpop.permute.xlu0 %3500
    %v3503 = vmul.f32 %v3501, %v3497
    %v3504 = vmul.f32 %v3501, %v3498
    %v3505 = vadd.f32 %v3495, %v3503
    %v3506 = vadd.f32 %v3496, %v3504
    %v3507 = vmul.f32 %v3427, %v3084
    %v3508 = vmul.f32 %v3428, %v3088
    %3509 = vset.pattern.permute.xlu0 97
    %3510 = vperm.xlu0 %3509, %v149
    %v3511 = vpop.permute.xlu0 %3510
    %v3513 = vmul.f32 %v3511, %v3507
    %v3514 = vmul.f32 %v3511, %v3508
    %v3515 = vadd.f32 %v3505, %v3513
    %v3516 = vadd.f32 %v3506, %v3514
    %v3517 = vlaneseq
    %v3518 = vshrl.u32 %v3517, 7
    %v3519 = vsub.s32 0, %v3518
    %v3520 = vrot.slane %v160, %v3519
    %v3521 = vlaneseq
    %v3522 = vshrl.u32 %v3521, 7
    %v3523 = vsub.s32 0, %v3522
    %v3524 = vrot.slane %v161, %v3523
    %v3525 = vmul.f32 %v3281, %v3520
    %v3526 = vmul.f32 %v3282, %v3524
    %3527 = vset.pattern.permute.xlu0 98
    %3528 = vperm.xlu0 %3527, %v149
    %v3529 = vpop.permute.xlu0 %3528
    %v3531 = vmul.f32 %v3529, %v3525
    %v3532 = vmul.f32 %v3529, %v3526
    %v3533 = vadd.f32 %v3515, %v3531
    %v3534 = vadd.f32 %v3516, %v3532
    %v3535 = vlaneseq
    %v3536 = vshrl.u32 %v3535, 7
    %v3537 = vsub.s32 1, %v3536
    %v3538 = vrot.slane %v160, %v3537
    %v3539 = vlaneseq
    %v3540 = vshrl.u32 %v3539, 7
    %v3541 = vsub.s32 1, %v3540
    %v3542 = vrot.slane %v161, %v3541
    %v3543 = vmul.f32 %v3305, %v3538
    %v3544 = vmul.f32 %v3306, %v3542
    %3545 = vset.pattern.permute.xlu0 99
    %3546 = vperm.xlu0 %3545, %v149
    %v3547 = vpop.permute.xlu0 %3546
    %v3549 = vmul.f32 %v3547, %v3543
    %v3550 = vmul.f32 %v3547, %v3544
    %v3551 = vadd.f32 %v3533, %v3549
    %v3552 = vadd.f32 %v3534, %v3550
    %v3553 = vlaneseq
    %v3554 = vshrl.u32 %v3553, 7
    %v3555 = vsub.s32 2, %v3554
    %v3556 = vrot.slane %v160, %v3555
    %v3557 = vlaneseq
    %v3558 = vshrl.u32 %v3557, 7
    %v3559 = vsub.s32 2, %v3558
    %v3560 = vrot.slane %v161, %v3559
    %v3561 = vmul.f32 %v3276, %v3556
    %v3562 = vmul.f32 %v3275, %v3560
    %3563 = vset.pattern.permute.xlu0 100
    %3564 = vperm.xlu0 %3563, %v149
    %v3565 = vpop.permute.xlu0 %3564
    %v3567 = vmul.f32 %v3565, %v3561
    %v3568 = vmul.f32 %v3565, %v3562
    %v3569 = vadd.f32 %v3551, %v3567
    %v3570 = vadd.f32 %v3552, %v3568
    %v3571 = vlaneseq
    %v3572 = vshrl.u32 %v3571, 7
    %v3573 = vsub.s32 3, %v3572
    %v3574 = vrot.slane %v160, %v3573
    %v3575 = vlaneseq
    %v3576 = vshrl.u32 %v3575, 7
    %v3577 = vsub.s32 3, %v3576
    %v3578 = vrot.slane %v161, %v3577
    %v3579 = vmul.f32 %v3348, %v3574
    %v3580 = vmul.f32 %v3347, %v3578
    %3581 = vset.pattern.permute.xlu0 101
    %3582 = vperm.xlu0 %3581, %v149
    %v3583 = vpop.permute.xlu0 %3582
    %v3585 = vmul.f32 %v3583, %v3579
    %v3586 = vmul.f32 %v3583, %v3580
    %v3587 = vadd.f32 %v3569, %v3585
    %v3588 = vadd.f32 %v3570, %v3586
    %v3589 = vlaneseq
    %v3590 = vshrl.u32 %v3589, 7
    %v3591 = vsub.s32 4, %v3590
    %v3592 = vrot.slane %v160, %v3591
    %v3593 = vlaneseq
    %v3594 = vshrl.u32 %v3593, 7
    %v3595 = vsub.s32 4, %v3594
    %v3596 = vrot.slane %v161, %v3595
    %v3597 = vmul.f32 %v3372, %v3592
    %v3598 = vmul.f32 %v3371, %v3596
    %3599 = vset.pattern.permute.xlu0 102
    %3600 = vperm.xlu0 %3599, %v149
    %v3601 = vpop.permute.xlu0 %3600
    %v3603 = vmul.f32 %v3601, %v3597
    %v3604 = vmul.f32 %v3601, %v3598
    %v3605 = vadd.f32 %v3587, %v3603
    %v3606 = vadd.f32 %v3588, %v3604
    %3607 = vset.pattern.permute.xlu0 10
    %3608 = vperm.xlu0 %3607, %v148
    %v3609 = vpop.permute.xlu0 %3608
    %v3611 = vadd.f32 %v3605, %v3609
    %v3612 = vadd.f32 %v3606, %v3609
    %v3613 = vadd.f32 %v2206, %v2344
    %v3614 = vadd.f32 %v2207, %v2346
    %v3615 = vadd.f32 %v3613, %v2822
    %v3616 = vadd.f32 %v3614, %v2823
    %v3617 = vadd.f32 %v3615, %v3103
    %v3618 = vadd.f32 %v3616, %v3104
    %v3619 = vadd.f32 %v3617, %v3611
    %v3620 = vadd.f32 %v3618, %v3612
    %3621 = vset.pattern.permute.xlu0 3
    %3622 = vperm.xlu0 %3621, %v148
    %v3623 = vpop.permute.xlu0 %3622
    %3625 = vrot.lane.b32.xlu0 %v147, 104
    %v3626 = vpop.permute.xlu0 %3625
    %v3627 = vsel %vm167, %v3626, 0
    %3629 = vmatprep.subr.mxu0 0.0
    %3630 = vmatpush1.msra.mxu0 0.0
    %3631 = vmatprep.subr.mxu0 0.0
    %3632 = vmatpush1.msra.mxu0 0.0
    %3633 = vmatprep.subr.mxu0 0.0
    %3634 = vmatpush1.msra.mxu0 0.0
    %3635 = vmatprep.subr.mxu0 0.0
    %3636 = vmatpush1.msra.mxu0 0.0
    %3637 = vmatprep.subr.mxu0 0.0
    %3638 = vmatpush1.msra.mxu0 0.0
    %3639 = vmatprep.subr.mxu0 0.0
    %3640 = vmatpush1.msra.mxu0 0.0
    %3641 = vmatprep.subr.mxu0 0.0
    %3642 = vmatpush1.msra.mxu0 0.0
    %3643 = vmatprep.subr.mxu0 0.0
    %3644 = vmatpush1.msra.mxu0 0.0
    %3645 = vmatprep.subr.mxu0 0.0
    %3646 = vmatpush1.msra.mxu0 0.0
    %3647 = vmatprep.subr.mxu0 0.0
    %3648 = vmatpush1.msra.mxu0 0.0
    %3649 = vmatprep.subr.mxu0 0.0
    %3650 = vmatpush1.msra.mxu0 0.0
    %3651 = vmatprep.subr.mxu0 0.0
    %3652 = vmatpush1.msra.mxu0 0.0
    %3653 = vmatprep.subr.mxu0 0.0
    %3654 = vmatpush1.msra.mxu0 0.0
    %3655 = vmatprep.subr.mxu0 0.0
    %3656 = vmatpush1.msra.mxu0 0.0
    %3657 = vmatprep.subr.mxu0 0.0
    %3658 = vmatpush1.msra.mxu0 0.0
    %3659 = vmatprep.subr.mxu0 %v3620
    %3660 = vmatpush1.msra.mxu0 %v3619
    %3661 = vmatprep.subr.mxu0 0.0
    %3662 = vmatpush2.msra.mxu0 0.0
    %3663 = vmatprep.subr.mxu0 0.0
    %3664 = vmatpush2.msra.mxu0 0.0
    %3665 = vmatprep.subr.mxu0 0.0
    %3666 = vmatpush2.msra.mxu0 0.0
    %3667 = vmatprep.subr.mxu0 0.0
    %3668 = vmatpush2.msra.mxu0 0.0
    %3669 = vmatprep.subr.mxu0 0.0
    %3670 = vmatpush2.msra.mxu0 0.0
    %3671 = vmatprep.subr.mxu0 0.0
    %3672 = vmatpush2.msra.mxu0 0.0
    %3673 = vmatprep.subr.mxu0 0.0
    %3674 = vmatpush2.msra.mxu0 0.0
    %3675 = vmatprep.subr.mxu0 0.0
    %3676 = vmatpush2.msra.mxu0 0.0
    %3677 = vmatprep.subr.mxu0 0.0
    %3678 = vmatpush2.msra.mxu0 0.0
    %3679 = vmatprep.subr.mxu0 0.0
    %3680 = vmatpush2.msra.mxu0 0.0
    %3681 = vmatprep.subr.mxu0 0.0
    %3682 = vmatpush2.msra.mxu0 0.0
    %3683 = vmatprep.subr.mxu0 0.0
    %3684 = vmatpush2.msra.mxu0 0.0
    %3685 = vmatprep.subr.mxu0 0.0
    %3686 = vmatpush2.msra.mxu0 0.0
    %3687 = vmatprep.subr.mxu0 0.0
    %3688 = vmatpush2.msra.mxu0 0.0
    %3689 = vmatprep.subr.mxu0 0.0
    %3690 = vmatpush2.msra.mxu0 0.0
    %3691 = vmatprep.subr.mxu0 0.0
    %3692 = vmatpush2.msra.mxu0 0.0
    %3693 = vmatprep.mubr.f32.mxu0 0.0
    %3694 = vmatmul.mubr.f32.gmra.mxu0 %v3627
    %v3695 = vpop.f32.mrf.mxu0
    %v3696 = vadd.f32 %v3623, %v3695
    %v3697 = vpop.f32.mrf.mxu0
    %v3698 = vadd.f32 %v3623, %v3697
    %3699 = vdwg.mxu0
    %v3700 = vmul.f32 %v3696, %v294
    %v3701 = vmul.f32 %v3698, %v295
    %3702 = vset.pattern.permute.xlu0 1
    %3703 = vperm.xlu0 %3702, %v148
    %v3704 = vpop.permute.xlu0 %3703
    %3706 = vrot.lane.b32.xlu0 %v147, 120
    %v3707 = vpop.permute.xlu0 %3706
    %v3708 = vsel %vm167, %v3707, 0
    %3710 = vmatprep.subr.mxu0 0.0
    %3711 = vmatpush1.msra.mxu0 0.0
    %3712 = vmatprep.subr.mxu0 0.0
    %3713 = vmatpush1.msra.mxu0 0.0
    %3714 = vmatprep.subr.mxu0 0.0
    %3715 = vmatpush1.msra.mxu0 0.0
    %3716 = vmatprep.subr.mxu0 0.0
    %3717 = vmatpush1.msra.mxu0 0.0
    %3718 = vmatprep.subr.mxu0 0.0
    %3719 = vmatpush1.msra.mxu0 0.0
    %3720 = vmatprep.subr.mxu0 0.0
    %3721 = vmatpush1.msra.mxu0 0.0
    %3722 = vmatprep.subr.mxu0 0.0
    %3723 = vmatpush1.msra.mxu0 0.0
    %3724 = vmatprep.subr.mxu0 0.0
    %3725 = vmatpush1.msra.mxu0 0.0
    %3726 = vmatprep.subr.mxu0 0.0
    %3727 = vmatpush1.msra.mxu0 0.0
    %3728 = vmatprep.subr.mxu0 0.0
    %3729 = vmatpush1.msra.mxu0 0.0
    %3730 = vmatprep.subr.mxu0 0.0
    %3731 = vmatpush1.msra.mxu0 0.0
    %3732 = vmatprep.subr.mxu0 0.0
    %3733 = vmatpush1.msra.mxu0 0.0
    %3734 = vmatprep.subr.mxu0 0.0
    %3735 = vmatpush1.msra.mxu0 0.0
    %3736 = vmatprep.subr.mxu0 0.0
    %3737 = vmatpush1.msra.mxu0 0.0
    %3738 = vmatprep.subr.mxu0 0.0
    %3739 = vmatpush1.msra.mxu0 0.0
    %3740 = vmatprep.subr.mxu0 %v3701
    %3741 = vmatpush1.msra.mxu0 %v3700
    %3742 = vmatprep.subr.mxu0 0.0
    %3743 = vmatpush2.msra.mxu0 0.0
    %3744 = vmatprep.subr.mxu0 0.0
    %3745 = vmatpush2.msra.mxu0 0.0
    %3746 = vmatprep.subr.mxu0 0.0
    %3747 = vmatpush2.msra.mxu0 0.0
    %3748 = vmatprep.subr.mxu0 0.0
    %3749 = vmatpush2.msra.mxu0 0.0
    %3750 = vmatprep.subr.mxu0 0.0
    %3751 = vmatpush2.msra.mxu0 0.0
    %3752 = vmatprep.subr.mxu0 0.0
    %3753 = vmatpush2.msra.mxu0 0.0
    %3754 = vmatprep.subr.mxu0 0.0
    %3755 = vmatpush2.msra.mxu0 0.0
    %3756 = vmatprep.subr.mxu0 0.0
    %3757 = vmatpush2.msra.mxu0 0.0
    %3758 = vmatprep.subr.mxu0 0.0
    %3759 = vmatpush2.msra.mxu0 0.0
    %3760 = vmatprep.subr.mxu0 0.0
    %3761 = vmatpush2.msra.mxu0 0.0
    %3762 = vmatprep.subr.mxu0 0.0
    %3763 = vmatpush2.msra.mxu0 0.0
    %3764 = vmatprep.subr.mxu0 0.0
    %3765 = vmatpush2.msra.mxu0 0.0
    %3766 = vmatprep.subr.mxu0 0.0
    %3767 = vmatpush2.msra.mxu0 0.0
    %3768 = vmatprep.subr.mxu0 0.0
    %3769 = vmatpush2.msra.mxu0 0.0
    %3770 = vmatprep.subr.mxu0 0.0
    %3771 = vmatpush2.msra.mxu0 0.0
    %3772 = vmatprep.subr.mxu0 0.0
    %3773 = vmatpush2.msra.mxu0 0.0
    %3774 = vmatprep.mubr.f32.mxu0 0.0
    %3775 = vmatmul.mubr.f32.gmra.mxu0 %v3708
    %v3776 = vpop.f32.mrf.mxu0
    %v3777 = vadd.f32 %v3704, %v3776
    %v3778 = vpop.f32.mrf.mxu0
    %v3779 = vadd.f32 %v3704, %v3778
    %3780 = vdwg.mxu0
    %v3781 = vadd.f32 %v3777, %v145
    %v3782 = vadd.f32 %v3779, %v146
    %3783 = vst [vmem:[#allocation17] sm:$0xff] %v3781
    %3784 = vst [vmem:[#allocation17 + $0x8] sm:$0xff] %v3782
    // Predicated region
    $region74: #{tpu_custom_call.1} parent=1 // pred_check
      _
    $region75: #{tpu_custom_call.1} parent=1 // pred_check_branch
      %3786 = sbr.rel (0) target = $region77
    $region76: #{tpu_custom_call.1} parent=1 // pred_region
      %s3788 = ssub.s32 256, 256
      %3789 = vsyncadd [#allocation4], %s3788
      %s3791 = sshll.u32 [#allocation17], 4
      %s3792 = int_to_ptr.vmem [resolvable:$true] %s3791
      %3794 = dma.vmem_to_hbm [thread:$0]  %s3792, 256, %s9, [#allocation4]
    $region77: #{tpu_custom_call.1} parent=1 // pred_fallthru
      _
    // Predicated region
    $region78: #{tpu_custom_call.1} parent=1 // pred_check
      _
    $region79: #{tpu_custom_call.1} parent=1 // pred_check_branch
      %3796 = sbr.rel (0) target = $region81
    $region80: #{tpu_custom_call.1} parent=1 // pred_region
      %3797 = dma.done [#allocation4], 256
    $region81: #{tpu_custom_call.1} parent=1 // pred_fallthru
      _
    %3798 = vsyncpa [#allocation3], 1
    %3799 = vsyncpa [#allocation6], 1
    %3800 = vsyncpa [#allocation9], 1
    %3801 = vsyncpa [#allocation12], 1
    %3802 = vsyncpa [#allocation15], 1
    %3803 = vsyncpa [#allocation4], 1

</llo_original>
